<compile_context>
chip_gen: v7x
topology: tpu7x:2x2x1
jax: 0.10.0
libtpu: 0.0.40
codegen_flags: <defaults>
</compile_context>

<pallas_src>
import functools

import jax
import jax.numpy as jnp
from jax.experimental import pallas as pl
from jax.experimental.pallas import tpu as pltpu

EPS = 1e-5  # nn.BatchNorm2d default eps


def _round_up(x, m):
    return (x + m - 1) // m * m


# ---------------------------------------------------------------------------
# shared in-kernel helpers
# ---------------------------------------------------------------------------
def _fill_pad(pad_ref, main, top, bot, r, nr, wp):
    """Write a zero-padded (th+2, >=wp+2, c) activation tile into VMEM scratch.

    `main` is the (th, wp, c) tile body, `top`/`bot` are 1-row halos (used only
    away from the image borders).  Only the 1-pixel border is zeroed.
    """
    th = pad_ref.shape[0] - 2
    c = pad_ref.shape[2]
    dt = pad_ref.dtype

    pad_ref[:, 0:1, :] = jnp.zeros((th + 2, 1, c), dt)               # left col
    pad_ref[:, wp + 1:wp + 2, :] = jnp.zeros((th + 2, 1, c), dt)     # right col
    pad_ref[0:1, 1:wp + 1, :] = jnp.zeros((1, wp, c), dt)            # top row
    pad_ref[th + 1:th + 2, 1:wp + 1, :] = jnp.zeros((1, wp, c), dt)  # bottom row
    pad_ref[1:th + 1, 1:wp + 1, :] = main                            # interior

    @pl.when(r > 0)
    def _():
        pad_ref[0:1, 1:wp + 1, :] = top

    @pl.when(r < nr - 1)
    def _():
        pad_ref[th + 1:th + 2, 1:wp + 1, :] = bot


def _conv3x3_acc(pad_ref, w_ref, wp):
    """3x3 conv over the padded tile as 9 accumulating MXU matmuls.

    Each tap is a (th*wp, c) bf16 slice matmul'd against w_ref[tap] (c, cout)
    with f32 accumulation.  Peak live data ~1x tile (no 9-tap im2col concat).
    """
    th = pad_ref.shape[0] - 2
    c = pad_ref.shape[2]
    m = th * wp
    acc = None
    for t in range(9):
        dy, dx = divmod(t, 3)
        tap = pad_ref[dy:dy + th, dx:dx + wp, :].reshape(m, c)
        part = jnp.dot(tap, w_ref[t], preferred_element_type=jnp.float32)
        acc = part if acc is None else acc + part
    return acc  # f32 (m, cout)


def _write_stats(st_ref, acc):
    """Per-tile partial sums for BatchNorm (sum, sum of squares) per channel."""
    st_ref[0, 0, 0:1, :] = jnp.sum(acc, axis=0, keepdims=True)
    st_ref[0, 0, 1:2, :] = jnp.sum(acc * acc, axis=0, keepdims=True)


# ---------------------------------------------------------------------------
# stage 1: maxpool(2) + conv1(+bias) + BN1 partial stats
# ---------------------------------------------------------------------------
def _pool_conv1_kernel(x_ref, xt_ref, xb_ref, w_ref, b_ref,
                       y_ref, st_ref, pad_ref):
    r = pl.program_id(1)
    nr = pl.num_programs(1)
    wp = y_ref.shape[2]
    cin = pad_ref.shape[2]

    def pool2x2(v):  # v: (rows, 2*wp, 2*cin) -> (rows, wp, cin)
        m = jnp.maximum(v[:, :wp, :], v[:, wp:, :])        # max over H pair
        return jnp.maximum(m[..., :cin], m[..., cin:])     # max over W pair

    _fill_pad(pad_ref, pool2x2(x_ref[0]), pool2x2(xt_ref[0]),
              pool2x2(xb_ref[0]), r, nr, wp)
    acc = _conv3x3_acc(pad_ref, w_ref, wp) + b_ref[...]    # f32 (th*wp, cout)

    y_ref[...] = acc.reshape(y_ref.shape).astype(y_ref.dtype)   # bf16 out
    _write_stats(st_ref, acc)


# ---------------------------------------------------------------------------
# stage 2: BN1-apply + ReLU + conv2(+bias) + BN2 partial stats
# ---------------------------------------------------------------------------
def _bn1_conv2_kernel(y1_ref, y1t_ref, y1b_ref, scale_ref, shift_ref,
                      w_ref, b_ref, y2_ref, st_ref, pad_ref):
    r = pl.program_id(1)
    nr = pl.num_programs(1)
    wp = y2_ref.shape[2]
    scale = scale_ref[...]
    shift = shift_ref[...]

    def bn_relu(v):  # bf16 -> f32 math -> bf16 (matmul input dtype)
        return jnp.maximum(v.astype(jnp.float32) * scale + shift,
                           0.0).astype(pad_ref.dtype)

    _fill_pad(pad_ref, bn_relu(y1_ref[0]), bn_relu(y1t_ref[0]),
              bn_relu(y1b_ref[0]), r, nr, wp)
    acc = _conv3x3_acc(pad_ref, w_ref, wp) + b_ref[...]

    y2_ref[...] = acc.reshape(y2_ref.shape).astype(y2_ref.dtype)  # bf16 out
    _write_stats(st_ref, acc)


# ---------------------------------------------------------------------------
# host-side helpers
# ---------------------------------------------------------------------------
def _vmem_budgets():
    """(vmem_limit_bytes, tile_budget_bytes) derived from the actual chip."""
    try:
        cap = int(pltpu.get_tpu_info().vmem_capacity_bytes)
    except Exception:
        cap = None
    if not cap:
        cap = 64 * 1024 * 1024                  # conservative (v7x per-TC)
    limit = min(cap * 3 // 4, 100 * 1024 * 1024)  # 96 MiB v5e/v6e, 48 MiB v7x
    budget = max(limit - (8 << 20), 8 << 20)      # headroom for compiler temps
    return limit, budget


def _pick_row_tile(hp, wp, cin, cout, n, budget_bytes, min_steps=8):
    """Largest divisor of hp whose *per-stage max* VMEM footprint fits budget,
    preferring tiles that keep the grid >= min_steps (pipelining / megacore)."""
    wpad = _round_up(wp + 2, 8)
    f32, bf16 = 4, 2

    def footprint(th):
        m = th * wp
        acc = m * cout * f32                       # f32 matmul accumulator
        st_blk = 2 * cout * f32
        # stage 1: pool + conv1
        x_main = th * (2 * wp) * (2 * cin) * bf16
        x_halo = (2 * wp) * (2 * cin) * bf16
        y1_blk = m * cout * bf16
        w1 = 9 * cin * cout * bf16
        pad1 = (th + 2) * wpad * cin * bf16
        s1 = (2 * (x_main + 2 * x_halo)            # double-buffered inputs
              + 2 * (y1_blk + st_blk)              # double-buffered outputs
              + 2 * (w1 + cout * f32)              # resident weights+bias (x2)
              + pad1 + 2 * acc)
        # stage 2: BN1 + conv2
        y_in = m * cout * bf16
        y_halo = wp * cout * bf16
        w2 = 9 * cout * cout * bf16
        pad2 = (th + 2) * wpad * cout * bf16
        s2 = (2 * (y_in + 2 * y_halo)
              + 2 * (y_in + st_blk)
              + 2 * (w2 + 3 * cout * f32)
              + pad2 + 2 * acc)
        return max(s1, s2)

    divs = [d for d in range(1, hp + 1) if hp % d == 0]
    feasible = [d for d in divs if footprint(d) <= budget_bytes] or [1]
    pref = [d for d in feasible if n * (hp // d) >= min_steps]
    return max(pref) if pref else max(feasible)


def _bn_affine(stats, gamma, beta, count):
    """Finalize BatchNorm: partial (sum, sumsq) -> per-channel scale/shift."""
    s = jnp.sum(stats[:, :, 0, :], axis=(0, 1))
    q = jnp.sum(stats[:, :, 1, :], axis=(0, 1))
    mean = s / count
    var = jnp.maximum(q / count - mean * mean, 0.0)
    inv = jax.lax.rsqrt(var + EPS)
    scale = gamma.reshape(-1) * inv
    shift = beta.reshape(-1) - mean * scale
    cout = scale.shape[0]
    return (scale.reshape(1, cout).astype(jnp.float32),
            shift.reshape(1, cout).astype(jnp.float32))


@functools.partial(jax.jit, static_argnames=("row_tile",))
def down_forward(x_nchw, params, *, row_tile=None):
    """x_nchw: (N, Cin, H, W) float32, H and W even. Returns (N, Cout, H/2, W/2)."""
    N, Cin, H, W = x_nchw.shape
    assert H % 2 == 0 and W % 2 == 0, "H and W must be even for MaxPool2d(2)"
    Hp, Wp = H // 2, W // 2
    Cout = params["w1"].shape[-1]

    vmem_limit, tile_budget = _vmem_budgets()
    if row_tile is None:
        row_tile = _pick_row_tile(Hp, Wp, Cin, Cout, N, tile_budget)
    TH = row_tile
    assert Hp % TH == 0, "row_tile must divide H/2"
    RT = Hp // TH
    WPAD = _round_up(Wp + 2, 8)

    # Layout plumbing: NCHW -> NHWC bf16, then the free reshape
    # (N, H, W, Cin) -> (N, Hp, 2*Wp, 2*Cin) so the 2x2 pool window lives in
    # the sublane/lane dims and one dense DMA feeds each tile.
    x = jnp.transpose(x_nchw, (0, 2, 3, 1)).astype(jnp.bfloat16)
    x4 = x.reshape(N, Hp, 2 * Wp, 2 * Cin)

    # Weights kept tap-major (9, C, Cout) bf16 for the accumulating matmuls.
    w1 = params["w1"].astype(jnp.bfloat16)           # (9, Cin, Cout)
    w2 = params["w2"].astype(jnp.bfloat16)           # (9, Cout, Cout)
    bc1 = params["bc1"].reshape(1, Cout).astype(jnp.float32)
    bc2 = params["bc2"].reshape(1, Cout).astype(jnp.float32)

    cp = pltpu.CompilerParams(dimension_semantics=("parallel", "parallel"),
                              vmem_limit_bytes=int(vmem_limit))

    # ---- BlockSpecs ----
    x_main_spec = pl.BlockSpec((1, TH, 2 * Wp, 2 * Cin),
                               lambda n, r: (n, r, 0, 0))
    x_top_spec = pl.BlockSpec((1, 1, 2 * Wp, 2 * Cin),
                              lambda n, r: (n, jnp.maximum(r * TH - 1, 0), 0, 0))
    x_bot_spec = pl.BlockSpec((1, 1, 2 * Wp, 2 * Cin),
                              lambda n, r: (n, jnp.minimum((r + 1) * TH, Hp - 1), 0, 0))
    w1_spec = pl.BlockSpec((9, Cin, Cout), lambda n, r: (0, 0, 0))
    w2_spec = pl.BlockSpec((9, Cout, Cout), lambda n, r: (0, 0, 0))
    vec_spec = pl.BlockSpec((1, Cout), lambda n, r: (0, 0))     # bias/scale/shift
    y_spec = pl.BlockSpec((1, TH, Wp, Cout), lambda n, r: (n, r, 0, 0))
    y_top_spec = pl.BlockSpec((1, 1, Wp, Cout),
                              lambda n, r: (n, jnp.maximum(r * TH - 1, 0), 0, 0))
    y_bot_spec = pl.BlockSpec((1, 1, Wp, Cout),
                              lambda n, r: (n, jnp.minimum((r + 1) * TH, Hp - 1), 0, 0))
    st_spec = pl.BlockSpec((1, 1, 2, Cout), lambda n, r: (n, r, 0, 0))

    # ---- stage 1: pool + conv1 + BN1 partial stats (y1 in bf16) ----
    y1, st1 = pl.pallas_call(
        _pool_conv1_kernel,
        grid=(N, RT),
        in_specs=[x_main_spec, x_top_spec, x_bot_spec, w1_spec, vec_spec],
        out_specs=(y_spec, st_spec),
        out_shape=(jax.ShapeDtypeStruct((N, Hp, Wp, Cout), jnp.bfloat16),
                   jax.ShapeDtypeStruct((N, RT, 2, Cout), jnp.float32)),
        scratch_shapes=[pltpu.VMEM((TH + 2, WPAD, Cin), jnp.bfloat16)],
        compiler_params=cp,
    )(x4, x4, x4, w1, bc1)

    count = float(N * Hp * Wp)
    scale1, shift1 = _bn_affine(st1, params["g1"], params["b1"], count)

    # ---- stage 2: BN1+ReLU + conv2 + BN2 partial stats (y2 in bf16) ----
    y2, st2 = pl.pallas_call(
        _bn1_conv2_kernel,
        grid=(N, RT),
        in_specs=[y_spec, y_top_spec, y_bot_spec, vec_spec, vec_spec,
                  w2_spec, vec_spec],
        out_specs=(y_spec, st_spec),
        out_shape=(jax.ShapeDtypeStruct((N, Hp, Wp, Cout), jnp.bfloat16),
                   jax.ShapeDtypeStruct((N, RT, 2, Cout), jnp.float32)),
        scratch_shapes=[pltpu.VMEM((TH + 2, WPAD, Cout), jnp.bfloat16)],
        compiler_params=cp,
    )(y1, y1, y1, scale1, shift1, w2, bc2)

    scale2, shift2 = _bn_affine(st2, params["g2"], params["b2"], count)

    # ---- epilogue: BN2 + ReLU fused with the NHWC->NCHW transpose (one XLA pass)
    out = jnp.maximum(y2.astype(jnp.float32) * scale2.reshape(1, 1, 1, Cout)
                      + shift2.reshape(1, 1, 1, Cout), 0.0)
    return jnp.transpose(out, (0, 3, 1, 2))


# ---------------------------------------------------------------------------
# reference + params + test
# ---------------------------------------------------------------------------
def down_reference(x_nchw, params):
    """Pure-JAX f32 reference (lax.conv / reduce_window) for validation."""
    x = jnp.transpose(x_nchw, (0, 2, 3, 1)).astype(jnp.float32)
    p = jax.lax.reduce_window(x, -jnp.inf, jax.lax.max,
                              (1, 2, 2, 1), (1, 2, 2, 1), "VALID")

    def conv_bn_relu(h, w, bc, g, b):
        cin, cout = w.shape[1], w.shape[2]
        k = w.reshape(3, 3, cin, cout)  # HWIO
        y = jax.lax.conv_general_dilated(
            h, k, window_strides=(1, 1), padding="SAME",
            dimension_numbers=("NHWC", "HWIO", "NHWC"),
            precision=jax.lax.Precision.HIGHEST) + bc.reshape(-1)
        m = jnp.mean(y, axis=(0, 1, 2))
        v = jnp.var(y, axis=(0, 1, 2))
        y = (y - m) * jax.lax.rsqrt(v + EPS) * g.reshape(-1) + b.reshape(-1)
        return jnp.maximum(y, 0.0)

    h = conv_bn_relu(p, params["w1"], params["bc1"], params["g1"], params["b1"])
    h = conv_bn_relu(h, params["w2"], params["bc2"], params["g2"], params["b2"])
    return jnp.transpose(h, (0, 3, 1, 2))


def init_params(key, in_channels, out_channels):
    """Deterministic synthetic parameters (shapes match Down(in, out))."""
    ks = jax.random.split(key, 8)
    f32 = jnp.float32
    return {
        # conv weights stored as (tap=kh*3+kw, Cin, Cout)
        "w1": 0.1 * jax.random.normal(ks[0], (9, in_channels, out_channels), f32),
        "bc1": 0.1 * jax.random.normal(ks[1], (1, out_channels), f32),
        "g1": 1.0 + 0.1 * jax.random.normal(ks[2], (1, out_channels), f32),
        "b1": 0.1 * jax.random.normal(ks[3], (1, out_channels), f32),
        "w2": 0.1 * jax.random.normal(ks[4], (9, out_channels, out_channels), f32),
        "bc2": 0.1 * jax.random.normal(ks[5], (1, out_channels), f32),
        "g2": 1.0 + 0.1 * jax.random.normal(ks[6], (1, out_channels), f32),
        "b2": 0.1 * jax.random.normal(ks[7], (1, out_channels), f32),
    }


if __name__ == "__main__":
    key = jax.random.PRNGKey(0)
    k_x, k_p = jax.random.split(key)

    N, Cin, H, W = 2, 4, 16, 16
    Cout = 8

    x = jax.random.normal(k_x, (N, Cin, H, W), jnp.float32)
    params = init_params(k_p, Cin, Cout)

    ref = jax.block_until_ready(down_reference(x, params))

    # exercise auto tile pick, an explicit multi-tile (halo) path, and the
    # single-tile (no-halo) path
    for rt in (None, 4, 8):
        out = jax.block_until_ready(down_forward(x, params, row_tile=rt))
        assert out.shape == (N, Cout, H // 2, W // 2), out.shape
        max_err = float(jnp.max(jnp.abs(out - ref)))
        assert jnp.allclose(out, ref, atol=5e-2, rtol=5e-2), (rt, max_err)

    print("KERNEL_OK")
</pallas_src>

<mosaic_0001>
module attributes {stable_mosaic.version = 11 : i64} {
  func.func @_pool_conv1_kernel(%arg0: i32, %arg1: i32, %arg2: memref<1x2x16x8xbf16, #tpu.memory_space<vmem>>, %arg3: memref<1x1x16x8xbf16, #tpu.memory_space<vmem>>, %arg4: memref<1x1x16x8xbf16, #tpu.memory_space<vmem>>, %arg5: memref<9x4x8xbf16, #tpu.memory_space<vmem>>, %arg6: memref<1x8xf32, #tpu.memory_space<vmem>>, %arg7: memref<1x2x8x8xbf16, #tpu.memory_space<vmem>>, %arg8: memref<1x1x2x8xf32, #tpu.memory_space<vmem>>, %arg9: memref<4x16x4xbf16, #tpu.memory_space<vmem>>) attributes {dimension_semantics = [#tpu.dimension_semantics<parallel>, #tpu.dimension_semantics<parallel>], iteration_bounds = array<i64: 2, 4>, scalar_prefetch = 0 : i64, scratch_operands = 1 : i64, tpu.core_type = #tpu.core_type<tc>, window_params = [{transform_indices = @transform_0, window_bounds = array<i64: 1, 2, 16, 8>}, {transform_indices = @transform_1, window_bounds = array<i64: 1, 1, 16, 8>}, {transform_indices = @transform_2, window_bounds = array<i64: 1, 1, 16, 8>}, {pipeline_mode = #tpu.pipeline_mode<synchronous>, transform_indices = @transform_3, window_bounds = array<i64: 9, 4, 8>}, {pipeline_mode = #tpu.pipeline_mode<synchronous>, transform_indices = @transform_4, window_bounds = array<i64: 1, 8>}, {transform_indices = @transform_5, window_bounds = array<i64: 1, 2, 8, 8>}, {transform_indices = @transform_6, window_bounds = array<i64: 1, 1, 2, 8>}]} {
    %c0 = arith.constant 0 : index
    %c0_0 = arith.constant 0 : index
    %c0_1 = arith.constant 0 : index
    %c0_2 = arith.constant 0 : index
    %0 = vector.load %arg2[%c0, %c0_0, %c0_1, %c0_2] : memref<1x2x16x8xbf16, #tpu.memory_space<vmem>>, vector<1x2x16x8xbf16>
    %1 = vector.shape_cast %0 : vector<1x2x16x8xbf16> to vector<2x16x8xbf16>
    %2 = vector.extract_strided_slice %1 {offsets = [0, 0, 0], sizes = [2, 8, 8], strides = [1, 1, 1]} : vector<2x16x8xbf16> to vector<2x8x8xbf16>
    %3 = vector.extract_strided_slice %1 {offsets = [0, 8, 0], sizes = [2, 8, 8], strides = [1, 1, 1]} : vector<2x16x8xbf16> to vector<2x8x8xbf16>
    %4 = arith.maximumf %2, %3 : vector<2x8x8xbf16>
    %5 = vector.extract_strided_slice %4 {offsets = [0, 0, 0], sizes = [2, 8, 4], strides = [1, 1, 1]} : vector<2x8x8xbf16> to vector<2x8x4xbf16>
    %6 = vector.extract_strided_slice %4 {offsets = [0, 0, 4], sizes = [2, 8, 4], strides = [1, 1, 1]} : vector<2x8x8xbf16> to vector<2x8x4xbf16>
    %7 = arith.maximumf %5, %6 : vector<2x8x4xbf16>
    %c0_3 = arith.constant 0 : index
    %c0_4 = arith.constant 0 : index
    %c0_5 = arith.constant 0 : index
    %c0_6 = arith.constant 0 : index
    %8 = vector.load %arg3[%c0_3, %c0_4, %c0_5, %c0_6] : memref<1x1x16x8xbf16, #tpu.memory_space<vmem>>, vector<1x1x16x8xbf16>
    %9 = vector.shape_cast %8 : vector<1x1x16x8xbf16> to vector<1x16x8xbf16>
    %10 = vector.extract_strided_slice %9 {offsets = [0, 0, 0], sizes = [1, 8, 8], strides = [1, 1, 1]} : vector<1x16x8xbf16> to vector<1x8x8xbf16>
    %11 = vector.extract_strided_slice %9 {offsets = [0, 8, 0], sizes = [1, 8, 8], strides = [1, 1, 1]} : vector<1x16x8xbf16> to vector<1x8x8xbf16>
    %12 = arith.maximumf %10, %11 : vector<1x8x8xbf16>
    %13 = vector.extract_strided_slice %12 {offsets = [0, 0, 0], sizes = [1, 8, 4], strides = [1, 1, 1]} : vector<1x8x8xbf16> to vector<1x8x4xbf16>
    %14 = vector.extract_strided_slice %12 {offsets = [0, 0, 4], sizes = [1, 8, 4], strides = [1, 1, 1]} : vector<1x8x8xbf16> to vector<1x8x4xbf16>
    %15 = arith.maximumf %13, %14 : vector<1x8x4xbf16>
    %c0_7 = arith.constant 0 : index
    %c0_8 = arith.constant 0 : index
    %c0_9 = arith.constant 0 : index
    %c0_10 = arith.constant 0 : index
    %16 = vector.load %arg4[%c0_7, %c0_8, %c0_9, %c0_10] : memref<1x1x16x8xbf16, #tpu.memory_space<vmem>>, vector<1x1x16x8xbf16>
    %17 = vector.shape_cast %16 : vector<1x1x16x8xbf16> to vector<1x16x8xbf16>
    %18 = vector.extract_strided_slice %17 {offsets = [0, 0, 0], sizes = [1, 8, 8], strides = [1, 1, 1]} : vector<1x16x8xbf16> to vector<1x8x8xbf16>
    %19 = vector.extract_strided_slice %17 {offsets = [0, 8, 0], sizes = [1, 8, 8], strides = [1, 1, 1]} : vector<1x16x8xbf16> to vector<1x8x8xbf16>
    %20 = arith.maximumf %18, %19 : vector<1x8x8xbf16>
    %21 = vector.extract_strided_slice %20 {offsets = [0, 0, 0], sizes = [1, 8, 4], strides = [1, 1, 1]} : vector<1x8x8xbf16> to vector<1x8x4xbf16>
    %22 = vector.extract_strided_slice %20 {offsets = [0, 0, 4], sizes = [1, 8, 4], strides = [1, 1, 1]} : vector<1x8x8xbf16> to vector<1x8x4xbf16>
    %23 = arith.maximumf %21, %22 : vector<1x8x4xbf16>
    %cst = arith.constant 0.000000e+00 : bf16
    %24 = vector.broadcast %cst : bf16 to vector<4x1x4xbf16>
    %c0_11 = arith.constant 0 : index
    %c0_12 = arith.constant 0 : index
    %c0_13 = arith.constant 0 : index
    %25 = vector.load %arg9[%c0_11, %c0_12, %c0_13] : memref<4x16x4xbf16, #tpu.memory_space<vmem>>, vector<4x1x4xbf16>
    tpu.vector_store %arg9[%c0_11, %c0_12, %c0_13], %24 {strides = array<i32>} : memref<4x16x4xbf16, #tpu.memory_space<vmem>>, vector<4x1x4xbf16>,
    %cst_14 = arith.constant 0.000000e+00 : bf16
    %26 = vector.broadcast %cst_14 : bf16 to vector<4x1x4xbf16>
    %c0_15 = arith.constant 0 : index
    %c9 = arith.constant 9 : index
    %c0_16 = arith.constant 0 : index
    %27 = vector.load %arg9[%c0_15, %c9, %c0_16] : memref<4x16x4xbf16, #tpu.memory_space<vmem>>, vector<4x1x4xbf16>
    tpu.vector_store %arg9[%c0_15, %c9, %c0_16], %26 {strides = array<i32>} : memref<4x16x4xbf16, #tpu.memory_space<vmem>>, vector<4x1x4xbf16>,
    %cst_17 = arith.constant 0.000000e+00 : bf16
    %28 = vector.broadcast %cst_17 : bf16 to vector<1x8x4xbf16>
    %c0_18 = arith.constant 0 : index
    %c1 = arith.constant 1 : index
    %c0_19 = arith.constant 0 : index
    %29 = vector.load %arg9[%c0_18, %c1, %c0_19] : memref<4x16x4xbf16, #tpu.memory_space<vmem>>, vector<1x8x4xbf16>
    tpu.vector_store %arg9[%c0_18, %c1, %c0_19], %28 {strides = array<i32>} : memref<4x16x4xbf16, #tpu.memory_space<vmem>>, vector<1x8x4xbf16>,
    %cst_20 = arith.constant 0.000000e+00 : bf16
    %30 = vector.broadcast %cst_20 : bf16 to vector<1x8x4xbf16>
    %c3 = arith.constant 3 : index
    %c1_21 = arith.constant 1 : index
    %c0_22 = arith.constant 0 : index
    %31 = vector.load %arg9[%c3, %c1_21, %c0_22] : memref<4x16x4xbf16, #tpu.memory_space<vmem>>, vector<1x8x4xbf16>
    tpu.vector_store %arg9[%c3, %c1_21, %c0_22], %30 {strides = array<i32>} : memref<4x16x4xbf16, #tpu.memory_space<vmem>>, vector<1x8x4xbf16>,
    %c1_23 = arith.constant 1 : index
    %c1_24 = arith.constant 1 : index
    %c0_25 = arith.constant 0 : index
    %32 = vector.load %arg9[%c1_23, %c1_24, %c0_25] : memref<4x16x4xbf16, #tpu.memory_space<vmem>>, vector<2x8x4xbf16>
    tpu.vector_store %arg9[%c1_23, %c1_24, %c0_25], %7 {strides = array<i32>} : memref<4x16x4xbf16, #tpu.memory_space<vmem>>, vector<2x8x4xbf16>,
    %c0_i32 = arith.constant 0 : i32
    %33 = arith.cmpi sgt, %arg1, %c0_i32 : i32
    %34 = arith.extui %33 : i1 to i32
    %c0_i32_26 = arith.constant 0 : i32
    %35 = arith.cmpi ne, %34, %c0_i32_26 : i32
    scf.if %35 {
      %c0_101 = arith.constant 0 : index
      %c1_102 = arith.constant 1 : index
      %c0_103 = arith.constant 0 : index
      %109 = vector.load %arg9[%c0_101, %c1_102, %c0_103] : memref<4x16x4xbf16, #tpu.memory_space<vmem>>, vector<1x8x4xbf16>
      tpu.vector_store %arg9[%c0_101, %c1_102, %c0_103], %15 {strides = array<i32>} : memref<4x16x4xbf16, #tpu.memory_space<vmem>>, vector<1x8x4xbf16>,
    } else {
    }
    %c3_i32 = arith.constant 3 : i32
    %36 = arith.cmpi slt, %arg1, %c3_i32 : i32
    %37 = arith.extui %36 : i1 to i32
    %c0_i32_27 = arith.constant 0 : i32
    %38 = arith.cmpi ne, %37, %c0_i32_27 : i32
    scf.if %38 {
      %c3_101 = arith.constant 3 : index
      %c1_102 = arith.constant 1 : index
      %c0_103 = arith.constant 0 : index
      %109 = vector.load %arg9[%c3_101, %c1_102, %c0_103] : memref<4x16x4xbf16, #tpu.memory_space<vmem>>, vector<1x8x4xbf16>
      tpu.vector_store %arg9[%c3_101, %c1_102, %c0_103], %23 {strides = array<i32>} : memref<4x16x4xbf16, #tpu.memory_space<vmem>>, vector<1x8x4xbf16>,
    } else {
    }
    %c0_28 = arith.constant 0 : index
    %c0_29 = arith.constant 0 : index
    %c0_30 = arith.constant 0 : index
    %39 = vector.load %arg9[%c0_28, %c0_29, %c0_30] : memref<4x16x4xbf16, #tpu.memory_space<vmem>>, vector<2x8x4xbf16>
    %40 = vector.shape_cast %39 : vector<2x8x4xbf16> to vector<16x4xbf16>
    %c0_31 = arith.constant 0 : index
    %c0_32 = arith.constant 0 : index
    %c0_33 = arith.constant 0 : index
    %41 = vector.load %arg5[%c0_31, %c0_32, %c0_33] : memref<9x4x8xbf16, #tpu.memory_space<vmem>>, vector<1x4x8xbf16>
    %42 = vector.shape_cast %41 : vector<1x4x8xbf16> to vector<4x8xbf16>
    %cst_34 = arith.constant dense<0.000000e+00> : vector<16x8xf32>
    %43 = tpu.matmul %40, %42, %cst_34 {dimension_numbers = #tpu.dot_dimension_numbers<[1], [0], [0], [1], [0, 0, 1, 1], [], []>} : vector<16x4xbf16>, vector<4x8xbf16>, vector<16x8xf32> -> vector<16x8xf32>
    %c0_35 = arith.constant 0 : index
    %c1_36 = arith.constant 1 : index
    %c0_37 = arith.constant 0 : index
    %44 = vector.load %arg9[%c0_35, %c1_36, %c0_37] : memref<4x16x4xbf16, #tpu.memory_space<vmem>>, vector<2x8x4xbf16>
    %45 = vector.shape_cast %44 : vector<2x8x4xbf16> to vector<16x4xbf16>
    %c1_38 = arith.constant 1 : index
    %c0_39 = arith.constant 0 : index
    %c0_40 = arith.constant 0 : index
    %46 = vector.load %arg5[%c1_38, %c0_39, %c0_40] : memref<9x4x8xbf16, #tpu.memory_space<vmem>>, vector<1x4x8xbf16>
    %47 = vector.shape_cast %46 : vector<1x4x8xbf16> to vector<4x8xbf16>
    %cst_41 = arith.constant dense<0.000000e+00> : vector<16x8xf32>
    %48 = tpu.matmul %45, %47, %cst_41 {dimension_numbers = #tpu.dot_dimension_numbers<[1], [0], [0], [1], [0, 0, 1, 1], [], []>} : vector<16x4xbf16>, vector<4x8xbf16>, vector<16x8xf32> -> vector<16x8xf32>
    %49 = arith.addf %43, %48 : vector<16x8xf32>
    %c0_42 = arith.constant 0 : index
    %c2 = arith.constant 2 : index
    %c0_43 = arith.constant 0 : index
    %50 = vector.load %arg9[%c0_42, %c2, %c0_43] : memref<4x16x4xbf16, #tpu.memory_space<vmem>>, vector<2x8x4xbf16>
    %51 = vector.shape_cast %50 : vector<2x8x4xbf16> to vector<16x4xbf16>
    %c2_44 = arith.constant 2 : index
    %c0_45 = arith.constant 0 : index
    %c0_46 = arith.constant 0 : index
    %52 = vector.load %arg5[%c2_44, %c0_45, %c0_46] : memref<9x4x8xbf16, #tpu.memory_space<vmem>>, vector<1x4x8xbf16>
    %53 = vector.shape_cast %52 : vector<1x4x8xbf16> to vector<4x8xbf16>
    %cst_47 = arith.constant dense<0.000000e+00> : vector<16x8xf32>
    %54 = tpu.matmul %51, %53, %cst_47 {dimension_numbers = #tpu.dot_dimension_numbers<[1], [0], [0], [1], [0, 0, 1, 1], [], []>} : vector<16x4xbf16>, vector<4x8xbf16>, vector<16x8xf32> -> vector<16x8xf32>
    %55 = arith.addf %49, %54 : vector<16x8xf32>
    %c1_48 = arith.constant 1 : index
    %c0_49 = arith.constant 0 : index
    %c0_50 = arith.constant 0 : index
    %56 = vector.load %arg9[%c1_48, %c0_49, %c0_50] : memref<4x16x4xbf16, #tpu.memory_space<vmem>>, vector<2x8x4xbf16>
    %57 = vector.shape_cast %56 : vector<2x8x4xbf16> to vector<16x4xbf16>
    %c3_51 = arith.constant 3 : index
    %c0_52 = arith.constant 0 : index
    %c0_53 = arith.constant 0 : index
    %58 = vector.load %arg5[%c3_51, %c0_52, %c0_53] : memref<9x4x8xbf16, #tpu.memory_space<vmem>>, vector<1x4x8xbf16>
    %59 = vector.shape_cast %58 : vector<1x4x8xbf16> to vector<4x8xbf16>
    %cst_54 = arith.constant dense<0.000000e+00> : vector<16x8xf32>
    %60 = tpu.matmul %57, %59, %cst_54 {dimension_numbers = #tpu.dot_dimension_numbers<[1], [0], [0], [1], [0, 0, 1, 1], [], []>} : vector<16x4xbf16>, vector<4x8xbf16>, vector<16x8xf32> -> vector<16x8xf32>
    %61 = arith.addf %55, %60 : vector<16x8xf32>
    %c1_55 = arith.constant 1 : index
    %c1_56 = arith.constant 1 : index
    %c0_57 = arith.constant 0 : index
    %62 = vector.load %arg9[%c1_55, %c1_56, %c0_57] : memref<4x16x4xbf16, #tpu.memory_space<vmem>>, vector<2x8x4xbf16>
    %63 = vector.shape_cast %62 : vector<2x8x4xbf16> to vector<16x4xbf16>
    %c4 = arith.constant 4 : index
    %c0_58 = arith.constant 0 : index
    %c0_59 = arith.constant 0 : index
    %64 = vector.load %arg5[%c4, %c0_58, %c0_59] : memref<9x4x8xbf16, #tpu.memory_space<vmem>>, vector<1x4x8xbf16>
    %65 = vector.shape_cast %64 : vector<1x4x8xbf16> to vector<4x8xbf16>
    %cst_60 = arith.constant dense<0.000000e+00> : vector<16x8xf32>
    %66 = tpu.matmul %63, %65, %cst_60 {dimension_numbers = #tpu.dot_dimension_numbers<[1], [0], [0], [1], [0, 0, 1, 1], [], []>} : vector<16x4xbf16>, vector<4x8xbf16>, vector<16x8xf32> -> vector<16x8xf32>
    %67 = arith.addf %61, %66 : vector<16x8xf32>
    %c1_61 = arith.constant 1 : index
    %c2_62 = arith.constant 2 : index
    %c0_63 = arith.constant 0 : index
    %68 = vector.load %arg9[%c1_61, %c2_62, %c0_63] : memref<4x16x4xbf16, #tpu.memory_space<vmem>>, vector<2x8x4xbf16>
    %69 = vector.shape_cast %68 : vector<2x8x4xbf16> to vector<16x4xbf16>
    %c5 = arith.constant 5 : index
    %c0_64 = arith.constant 0 : index
    %c0_65 = arith.constant 0 : index
    %70 = vector.load %arg5[%c5, %c0_64, %c0_65] : memref<9x4x8xbf16, #tpu.memory_space<vmem>>, vector<1x4x8xbf16>
    %71 = vector.shape_cast %70 : vector<1x4x8xbf16> to vector<4x8xbf16>
    %cst_66 = arith.constant dense<0.000000e+00> : vector<16x8xf32>
    %72 = tpu.matmul %69, %71, %cst_66 {dimension_numbers = #tpu.dot_dimension_numbers<[1], [0], [0], [1], [0, 0, 1, 1], [], []>} : vector<16x4xbf16>, vector<4x8xbf16>, vector<16x8xf32> -> vector<16x8xf32>
    %73 = arith.addf %67, %72 : vector<16x8xf32>
    %c2_67 = arith.constant 2 : index
    %c0_68 = arith.constant 0 : index
    %c0_69 = arith.constant 0 : index
    %74 = vector.load %arg9[%c2_67, %c0_68, %c0_69] : memref<4x16x4xbf16, #tpu.memory_space<vmem>>, vector<2x8x4xbf16>
    %75 = vector.shape_cast %74 : vector<2x8x4xbf16> to vector<16x4xbf16>
    %c6 = arith.constant 6 : index
    %c0_70 = arith.constant 0 : index
    %c0_71 = arith.constant 0 : index
    %76 = vector.load %arg5[%c6, %c0_70, %c0_71] : memref<9x4x8xbf16, #tpu.memory_space<vmem>>, vector<1x4x8xbf16>
    %77 = vector.shape_cast %76 : vector<1x4x8xbf16> to vector<4x8xbf16>
    %cst_72 = arith.constant dense<0.000000e+00> : vector<16x8xf32>
    %78 = tpu.matmul %75, %77, %cst_72 {dimension_numbers = #tpu.dot_dimension_numbers<[1], [0], [0], [1], [0, 0, 1, 1], [], []>} : vector<16x4xbf16>, vector<4x8xbf16>, vector<16x8xf32> -> vector<16x8xf32>
    %79 = arith.addf %73, %78 : vector<16x8xf32>
    %c2_73 = arith.constant 2 : index
    %c1_74 = arith.constant 1 : index
    %c0_75 = arith.constant 0 : index
    %80 = vector.load %arg9[%c2_73, %c1_74, %c0_75] : memref<4x16x4xbf16, #tpu.memory_space<vmem>>, vector<2x8x4xbf16>
    %81 = vector.shape_cast %80 : vector<2x8x4xbf16> to vector<16x4xbf16>
    %c7 = arith.constant 7 : index
    %c0_76 = arith.constant 0 : index
    %c0_77 = arith.constant 0 : index
    %82 = vector.load %arg5[%c7, %c0_76, %c0_77] : memref<9x4x8xbf16, #tpu.memory_space<vmem>>, vector<1x4x8xbf16>
    %83 = vector.shape_cast %82 : vector<1x4x8xbf16> to vector<4x8xbf16>
    %cst_78 = arith.constant dense<0.000000e+00> : vector<16x8xf32>
    %84 = tpu.matmul %81, %83, %cst_78 {dimension_numbers = #tpu.dot_dimension_numbers<[1], [0], [0], [1], [0, 0, 1, 1], [], []>} : vector<16x4xbf16>, vector<4x8xbf16>, vector<16x8xf32> -> vector<16x8xf32>
    %85 = arith.addf %79, %84 : vector<16x8xf32>
    %c2_79 = arith.constant 2 : index
    %c2_80 = arith.constant 2 : index
    %c0_81 = arith.constant 0 : index
    %86 = vector.load %arg9[%c2_79, %c2_80, %c0_81] : memref<4x16x4xbf16, #tpu.memory_space<vmem>>, vector<2x8x4xbf16>
    %87 = vector.shape_cast %86 : vector<2x8x4xbf16> to vector<16x4xbf16>
    %c8 = arith.constant 8 : index
    %c0_82 = arith.constant 0 : index
    %c0_83 = arith.constant 0 : index
    %88 = vector.load %arg5[%c8, %c0_82, %c0_83] : memref<9x4x8xbf16, #tpu.memory_space<vmem>>, vector<1x4x8xbf16>
    %89 = vector.shape_cast %88 : vector<1x4x8xbf16> to vector<4x8xbf16>
    %cst_84 = arith.constant dense<0.000000e+00> : vector<16x8xf32>
    %90 = tpu.matmul %87, %89, %cst_84 {dimension_numbers = #tpu.dot_dimension_numbers<[1], [0], [0], [1], [0, 0, 1, 1], [], []>} : vector<16x4xbf16>, vector<4x8xbf16>, vector<16x8xf32> -> vector<16x8xf32>
    %91 = arith.addf %85, %90 : vector<16x8xf32>
    %c0_85 = arith.constant 0 : index
    %c0_86 = arith.constant 0 : index
    %92 = vector.load %arg6[%c0_85, %c0_86] : memref<1x8xf32, #tpu.memory_space<vmem>>, vector<1x8xf32>
    %93 = vector.broadcast %92 : vector<1x8xf32> to vector<16x8xf32>
    %94 = arith.addf %91, %93 : vector<16x8xf32>
    %95 = vector.shape_cast %94 : vector<16x8xf32> to vector<1x2x8x8xf32>
    %96 = arith.truncf %95 : vector<1x2x8x8xf32> to vector<1x2x8x8xbf16>
    %c0_87 = arith.constant 0 : index
    %c0_88 = arith.constant 0 : index
    %c0_89 = arith.constant 0 : index
    %c0_90 = arith.constant 0 : index
    %97 = vector.load %arg7[%c0_87, %c0_88, %c0_89, %c0_90] : memref<1x2x8x8xbf16, #tpu.memory_space<vmem>>, vector<1x2x8x8xbf16>
    tpu.vector_store %arg7[%c0_87, %c0_88, %c0_89, %c0_90], %96 {strides = array<i32>} : memref<1x2x8x8xbf16, #tpu.memory_space<vmem>>, vector<1x2x8x8xbf16>,
    %cst_91 = arith.constant dense<0.000000e+00> : vector<8xf32>
    %98 = vector.multi_reduction <add>, %94, %cst_91 [0] : vector<16x8xf32> to vector<8xf32>
    %99 = vector.shape_cast %98 : vector<8xf32> to vector<1x8xf32>
    %c0_92 = arith.constant 0 : index
    %c0_93 = arith.constant 0 : index
    %c0_94 = arith.constant 0 : index
    %c0_95 = arith.constant 0 : index
    %100 = vector.load %arg8[%c0_92, %c0_93, %c0_94, %c0_95] : memref<1x1x2x8xf32, #tpu.memory_space<vmem>>, vector<1x1x1x8xf32>
    %101 = vector.shape_cast %100 : vector<1x1x1x8xf32> to vector<1x8xf32>
    %102 = vector.shape_cast %99 : vector<1x8xf32> to vector<1x1x1x8xf32>
    tpu.vector_store %arg8[%c0_92, %c0_93, %c0_94, %c0_95], %102 {strides = array<i32>} : memref<1x1x2x8xf32, #tpu.memory_space<vmem>>, vector<1x1x1x8xf32>,
    %103 = arith.mulf %94, %94 : vector<16x8xf32>
    %cst_96 = arith.constant dense<0.000000e+00> : vector<8xf32>
    %104 = vector.multi_reduction <add>, %103, %cst_96 [0] : vector<16x8xf32> to vector<8xf32>
    %105 = vector.shape_cast %104 : vector<8xf32> to vector<1x8xf32>
    %c0_97 = arith.constant 0 : index
    %c0_98 = arith.constant 0 : index
    %c1_99 = arith.constant 1 : index
    %c0_100 = arith.constant 0 : index
    %106 = vector.load %arg8[%c0_97, %c0_98, %c1_99, %c0_100] : memref<1x1x2x8xf32, #tpu.memory_space<vmem>>, vector<1x1x1x8xf32>
    %107 = vector.shape_cast %106 : vector<1x1x1x8xf32> to vector<1x8xf32>
    %108 = vector.shape_cast %105 : vector<1x8xf32> to vector<1x1x1x8xf32>
    tpu.vector_store %arg8[%c0_97, %c0_98, %c1_99, %c0_100], %108 {strides = array<i32>} : memref<1x1x2x8xf32, #tpu.memory_space<vmem>>, vector<1x1x1x8xf32>,
    return
  }
  func.func @transform_0(%arg0: i32, %arg1: i32) -> (i32, i32, i32, i32) {
    %c0_i32 = arith.constant 0 : i32
    %c0_i32_0 = arith.constant 0 : i32
    %c0_i32_1 = arith.constant 0 : i32
    return %arg0, %arg1, %c0_i32, %c0_i32_0 : i32, i32, i32, i32
  }
  func.func @transform_1(%arg0: i32, %arg1: i32) -> (i32, i32, i32, i32) {
    %c2_i32 = arith.constant 2 : i32
    %0 = arith.muli %arg1, %c2_i32 : i32
    %c1_i32 = arith.constant 1 : i32
    %1 = arith.subi %0, %c1_i32 : i32
    %c0_i32 = arith.constant 0 : i32
    %2 = arith.maxsi %1, %c0_i32 : i32
    %c0_i32_0 = arith.constant 0 : i32
    %c0_i32_1 = arith.constant 0 : i32
    %c0_i32_2 = arith.constant 0 : i32
    return %arg0, %2, %c0_i32_0, %c0_i32_1 : i32, i32, i32, i32
  }
  func.func @transform_2(%arg0: i32, %arg1: i32) -> (i32, i32, i32, i32) {
    %c1_i32 = arith.constant 1 : i32
    %0 = arith.addi %arg1, %c1_i32 : i32
    %c2_i32 = arith.constant 2 : i32
    %1 = arith.muli %0, %c2_i32 : i32
    %c7_i32 = arith.constant 7 : i32
    %2 = arith.minsi %1, %c7_i32 : i32
    %c0_i32 = arith.constant 0 : i32
    %c0_i32_0 = arith.constant 0 : i32
    %c0_i32_1 = arith.constant 0 : i32
    return %arg0, %2, %c0_i32, %c0_i32_0 : i32, i32, i32, i32
  }
  func.func @transform_3(%arg0: i32, %arg1: i32) -> (i32, i32, i32) {
    %c0_i32 = arith.constant 0 : i32
    %c0_i32_0 = arith.constant 0 : i32
    %c0_i32_1 = arith.constant 0 : i32
    %c0_i32_2 = arith.constant 0 : i32
    return %c0_i32, %c0_i32_0, %c0_i32_1 : i32, i32, i32
  }
  func.func @transform_4(%arg0: i32, %arg1: i32) -> (i32, i32) {
    %c0_i32 = arith.constant 0 : i32
    %c0_i32_0 = arith.constant 0 : i32
    %c0_i32_1 = arith.constant 0 : i32
    return %c0_i32, %c0_i32_0 : i32, i32
  }
  func.func @transform_5(%arg0: i32, %arg1: i32) -> (i32, i32, i32, i32) {
    %c0_i32 = arith.constant 0 : i32
    %c0_i32_0 = arith.constant 0 : i32
    %c0_i32_1 = arith.constant 0 : i32
    return %arg0, %arg1, %c0_i32, %c0_i32_0 : i32, i32, i32, i32
  }
  func.func @transform_6(%arg0: i32, %arg1: i32) -> (i32, i32, i32, i32) {
    %c0_i32 = arith.constant 0 : i32
    %c0_i32_0 = arith.constant 0 : i32
    %c0_i32_1 = arith.constant 0 : i32
    return %arg0, %arg1, %c0_i32, %c0_i32_0 : i32, i32, i32, i32
  }
}

module attributes {stable_mosaic.version = 11 : i64} {
  func.func @_bn1_conv2_kernel(%arg0: i32, %arg1: i32, %arg2: memref<1x2x8x8xbf16, #tpu.memory_space<vmem>>, %arg3: memref<1x1x8x8xbf16, #tpu.memory_space<vmem>>, %arg4: memref<1x1x8x8xbf16, #tpu.memory_space<vmem>>, %arg5: memref<1x8xf32, #tpu.memory_space<vmem>>, %arg6: memref<1x8xf32, #tpu.memory_space<vmem>>, %arg7: memref<9x8x8xbf16, #tpu.memory_space<vmem>>, %arg8: memref<1x8xf32, #tpu.memory_space<vmem>>, %arg9: memref<1x2x8x8xbf16, #tpu.memory_space<vmem>>, %arg10: memref<1x1x2x8xf32, #tpu.memory_space<vmem>>, %arg11: memref<4x16x8xbf16, #tpu.memory_space<vmem>>) attributes {dimension_semantics = [#tpu.dimension_semantics<parallel>, #tpu.dimension_semantics<parallel>], iteration_bounds = array<i64: 2, 4>, scalar_prefetch = 0 : i64, scratch_operands = 1 : i64, tpu.core_type = #tpu.core_type<tc>, window_params = [{transform_indices = @transform_0, window_bounds = array<i64: 1, 2, 8, 8>}, {transform_indices = @transform_1, window_bounds = array<i64: 1, 1, 8, 8>}, {transform_indices = @transform_2, window_bounds = array<i64: 1, 1, 8, 8>}, {pipeline_mode = #tpu.pipeline_mode<synchronous>, transform_indices = @transform_3, window_bounds = array<i64: 1, 8>}, {pipeline_mode = #tpu.pipeline_mode<synchronous>, transform_indices = @transform_4, window_bounds = array<i64: 1, 8>}, {pipeline_mode = #tpu.pipeline_mode<synchronous>, transform_indices = @transform_5, window_bounds = array<i64: 9, 8, 8>}, {pipeline_mode = #tpu.pipeline_mode<synchronous>, transform_indices = @transform_6, window_bounds = array<i64: 1, 8>}, {transform_indices = @transform_7, window_bounds = array<i64: 1, 2, 8, 8>}, {transform_indices = @transform_8, window_bounds = array<i64: 1, 1, 2, 8>}]} {
    %c0 = arith.constant 0 : index
    %c0_0 = arith.constant 0 : index
    %0 = vector.load %arg5[%c0, %c0_0] : memref<1x8xf32, #tpu.memory_space<vmem>>, vector<1x8xf32>
    %c0_1 = arith.constant 0 : index
    %c0_2 = arith.constant 0 : index
    %1 = vector.load %arg6[%c0_1, %c0_2] : memref<1x8xf32, #tpu.memory_space<vmem>>, vector<1x8xf32>
    %c0_3 = arith.constant 0 : index
    %c0_4 = arith.constant 0 : index
    %c0_5 = arith.constant 0 : index
    %c0_6 = arith.constant 0 : index
    %2 = vector.load %arg2[%c0_3, %c0_4, %c0_5, %c0_6] : memref<1x2x8x8xbf16, #tpu.memory_space<vmem>>, vector<1x2x8x8xbf16>
    %3 = vector.shape_cast %2 : vector<1x2x8x8xbf16> to vector<2x8x8xbf16>
    %4 = arith.extf %3 : vector<2x8x8xbf16> to vector<2x8x8xf32>
    %5 = vector.shape_cast %0 : vector<1x8xf32> to vector<1x1x8xf32>
    %6 = vector.broadcast %5 : vector<1x1x8xf32> to vector<2x8x8xf32>
    %7 = arith.mulf %4, %6 : vector<2x8x8xf32>
    %8 = vector.shape_cast %1 : vector<1x8xf32> to vector<1x1x8xf32>
    %9 = vector.broadcast %8 : vector<1x1x8xf32> to vector<2x8x8xf32>
    %10 = arith.addf %7, %9 : vector<2x8x8xf32>
    %cst = arith.constant 0.000000e+00 : f32
    %11 = vector.broadcast %cst : f32 to vector<2x8x8xf32>
    %12 = arith.maximumf %10, %11 : vector<2x8x8xf32>
    %13 = arith.truncf %12 : vector<2x8x8xf32> to vector<2x8x8xbf16>
    %c0_7 = arith.constant 0 : index
    %c0_8 = arith.constant 0 : index
    %c0_9 = arith.constant 0 : index
    %c0_10 = arith.constant 0 : index
    %14 = vector.load %arg3[%c0_7, %c0_8, %c0_9, %c0_10] : memref<1x1x8x8xbf16, #tpu.memory_space<vmem>>, vector<1x1x8x8xbf16>
    %15 = vector.shape_cast %14 : vector<1x1x8x8xbf16> to vector<1x8x8xbf16>
    %16 = arith.extf %15 : vector<1x8x8xbf16> to vector<1x8x8xf32>
    %17 = vector.shape_cast %0 : vector<1x8xf32> to vector<1x1x8xf32>
    %18 = vector.broadcast %17 : vector<1x1x8xf32> to vector<1x8x8xf32>
    %19 = arith.mulf %16, %18 : vector<1x8x8xf32>
    %20 = vector.shape_cast %1 : vector<1x8xf32> to vector<1x1x8xf32>
    %21 = vector.broadcast %20 : vector<1x1x8xf32> to vector<1x8x8xf32>
    %22 = arith.addf %19, %21 : vector<1x8x8xf32>
    %cst_11 = arith.constant 0.000000e+00 : f32
    %23 = vector.broadcast %cst_11 : f32 to vector<1x8x8xf32>
    %24 = arith.maximumf %22, %23 : vector<1x8x8xf32>
    %25 = arith.truncf %24 : vector<1x8x8xf32> to vector<1x8x8xbf16>
    %c0_12 = arith.constant 0 : index
    %c0_13 = arith.constant 0 : index
    %c0_14 = arith.constant 0 : index
    %c0_15 = arith.constant 0 : index
    %26 = vector.load %arg4[%c0_12, %c0_13, %c0_14, %c0_15] : memref<1x1x8x8xbf16, #tpu.memory_space<vmem>>, vector<1x1x8x8xbf16>
    %27 = vector.shape_cast %26 : vector<1x1x8x8xbf16> to vector<1x8x8xbf16>
    %28 = arith.extf %27 : vector<1x8x8xbf16> to vector<1x8x8xf32>
    %29 = vector.shape_cast %0 : vector<1x8xf32> to vector<1x1x8xf32>
    %30 = vector.broadcast %29 : vector<1x1x8xf32> to vector<1x8x8xf32>
    %31 = arith.mulf %28, %30 : vector<1x8x8xf32>
    %32 = vector.shape_cast %1 : vector<1x8xf32> to vector<1x1x8xf32>
    %33 = vector.broadcast %32 : vector<1x1x8xf32> to vector<1x8x8xf32>
    %34 = arith.addf %31, %33 : vector<1x8x8xf32>
    %cst_16 = arith.constant 0.000000e+00 : f32
    %35 = vector.broadcast %cst_16 : f32 to vector<1x8x8xf32>
    %36 = arith.maximumf %34, %35 : vector<1x8x8xf32>
    %37 = arith.truncf %36 : vector<1x8x8xf32> to vector<1x8x8xbf16>
    %cst_17 = arith.constant 0.000000e+00 : bf16
    %38 = vector.broadcast %cst_17 : bf16 to vector<4x1x8xbf16>
    %c0_18 = arith.constant 0 : index
    %c0_19 = arith.constant 0 : index
    %c0_20 = arith.constant 0 : index
    %39 = vector.load %arg11[%c0_18, %c0_19, %c0_20] : memref<4x16x8xbf16, #tpu.memory_space<vmem>>, vector<4x1x8xbf16>
    tpu.vector_store %arg11[%c0_18, %c0_19, %c0_20], %38 {strides = array<i32>} : memref<4x16x8xbf16, #tpu.memory_space<vmem>>, vector<4x1x8xbf16>,
    %cst_21 = arith.constant 0.000000e+00 : bf16
    %40 = vector.broadcast %cst_21 : bf16 to vector<4x1x8xbf16>
    %c0_22 = arith.constant 0 : index
    %c9 = arith.constant 9 : index
    %c0_23 = arith.constant 0 : index
    %41 = vector.load %arg11[%c0_22, %c9, %c0_23] : memref<4x16x8xbf16, #tpu.memory_space<vmem>>, vector<4x1x8xbf16>
    tpu.vector_store %arg11[%c0_22, %c9, %c0_23], %40 {strides = array<i32>} : memref<4x16x8xbf16, #tpu.memory_space<vmem>>, vector<4x1x8xbf16>,
    %cst_24 = arith.constant 0.000000e+00 : bf16
    %42 = vector.broadcast %cst_24 : bf16 to vector<1x8x8xbf16>
    %c0_25 = arith.constant 0 : index
    %c1 = arith.constant 1 : index
    %c0_26 = arith.constant 0 : index
    %43 = vector.load %arg11[%c0_25, %c1, %c0_26] : memref<4x16x8xbf16, #tpu.memory_space<vmem>>, vector<1x8x8xbf16>
    tpu.vector_store %arg11[%c0_25, %c1, %c0_26], %42 {strides = array<i32>} : memref<4x16x8xbf16, #tpu.memory_space<vmem>>, vector<1x8x8xbf16>,
    %cst_27 = arith.constant 0.000000e+00 : bf16
    %44 = vector.broadcast %cst_27 : bf16 to vector<1x8x8xbf16>
    %c3 = arith.constant 3 : index
    %c1_28 = arith.constant 1 : index
    %c0_29 = arith.constant 0 : index
    %45 = vector.load %arg11[%c3, %c1_28, %c0_29] : memref<4x16x8xbf16, #tpu.memory_space<vmem>>, vector<1x8x8xbf16>
    tpu.vector_store %arg11[%c3, %c1_28, %c0_29], %44 {strides = array<i32>} : memref<4x16x8xbf16, #tpu.memory_space<vmem>>, vector<1x8x8xbf16>,
    %c1_30 = arith.constant 1 : index
    %c1_31 = arith.constant 1 : index
    %c0_32 = arith.constant 0 : index
    %46 = vector.load %arg11[%c1_30, %c1_31, %c0_32] : memref<4x16x8xbf16, #tpu.memory_space<vmem>>, vector<2x8x8xbf16>
    tpu.vector_store %arg11[%c1_30, %c1_31, %c0_32], %13 {strides = array<i32>} : memref<4x16x8xbf16, #tpu.memory_space<vmem>>, vector<2x8x8xbf16>,
    %c0_i32 = arith.constant 0 : i32
    %47 = arith.cmpi sgt, %arg1, %c0_i32 : i32
    %48 = arith.extui %47 : i1 to i32
    %c0_i32_33 = arith.constant 0 : i32
    %49 = arith.cmpi ne, %48, %c0_i32_33 : i32
    scf.if %49 {
      %c0_108 = arith.constant 0 : index
      %c1_109 = arith.constant 1 : index
      %c0_110 = arith.constant 0 : index
      %123 = vector.load %arg11[%c0_108, %c1_109, %c0_110] : memref<4x16x8xbf16, #tpu.memory_space<vmem>>, vector<1x8x8xbf16>
      tpu.vector_store %arg11[%c0_108, %c1_109, %c0_110], %25 {strides = array<i32>} : memref<4x16x8xbf16, #tpu.memory_space<vmem>>, vector<1x8x8xbf16>,
    } else {
    }
    %c3_i32 = arith.constant 3 : i32
    %50 = arith.cmpi slt, %arg1, %c3_i32 : i32
    %51 = arith.extui %50 : i1 to i32
    %c0_i32_34 = arith.constant 0 : i32
    %52 = arith.cmpi ne, %51, %c0_i32_34 : i32
    scf.if %52 {
      %c3_108 = arith.constant 3 : index
      %c1_109 = arith.constant 1 : index
      %c0_110 = arith.constant 0 : index
      %123 = vector.load %arg11[%c3_108, %c1_109, %c0_110] : memref<4x16x8xbf16, #tpu.memory_space<vmem>>, vector<1x8x8xbf16>
      tpu.vector_store %arg11[%c3_108, %c1_109, %c0_110], %37 {strides = array<i32>} : memref<4x16x8xbf16, #tpu.memory_space<vmem>>, vector<1x8x8xbf16>,
    } else {
    }
    %c0_35 = arith.constant 0 : index
    %c0_36 = arith.constant 0 : index
    %c0_37 = arith.constant 0 : index
    %53 = vector.load %arg11[%c0_35, %c0_36, %c0_37] : memref<4x16x8xbf16, #tpu.memory_space<vmem>>, vector<2x8x8xbf16>
    %54 = vector.shape_cast %53 : vector<2x8x8xbf16> to vector<16x8xbf16>
    %c0_38 = arith.constant 0 : index
    %c0_39 = arith.constant 0 : index
    %c0_40 = arith.constant 0 : index
    %55 = vector.load %arg7[%c0_38, %c0_39, %c0_40] : memref<9x8x8xbf16, #tpu.memory_space<vmem>>, vector<1x8x8xbf16>
    %56 = vector.shape_cast %55 : vector<1x8x8xbf16> to vector<8x8xbf16>
    %cst_41 = arith.constant dense<0.000000e+00> : vector<16x8xf32>
    %57 = tpu.matmul %54, %56, %cst_41 {dimension_numbers = #tpu.dot_dimension_numbers<[1], [0], [0], [1], [0, 0, 1, 1], [], []>} : vector<16x8xbf16>, vector<8x8xbf16>, vector<16x8xf32> -> vector<16x8xf32>
    %c0_42 = arith.constant 0 : index
    %c1_43 = arith.constant 1 : index
    %c0_44 = arith.constant 0 : index
    %58 = vector.load %arg11[%c0_42, %c1_43, %c0_44] : memref<4x16x8xbf16, #tpu.memory_space<vmem>>, vector<2x8x8xbf16>
    %59 = vector.shape_cast %58 : vector<2x8x8xbf16> to vector<16x8xbf16>
    %c1_45 = arith.constant 1 : index
    %c0_46 = arith.constant 0 : index
    %c0_47 = arith.constant 0 : index
    %60 = vector.load %arg7[%c1_45, %c0_46, %c0_47] : memref<9x8x8xbf16, #tpu.memory_space<vmem>>, vector<1x8x8xbf16>
    %61 = vector.shape_cast %60 : vector<1x8x8xbf16> to vector<8x8xbf16>
    %cst_48 = arith.constant dense<0.000000e+00> : vector<16x8xf32>
    %62 = tpu.matmul %59, %61, %cst_48 {dimension_numbers = #tpu.dot_dimension_numbers<[1], [0], [0], [1], [0, 0, 1, 1], [], []>} : vector<16x8xbf16>, vector<8x8xbf16>, vector<16x8xf32> -> vector<16x8xf32>
    %63 = arith.addf %57, %62 : vector<16x8xf32>
    %c0_49 = arith.constant 0 : index
    %c2 = arith.constant 2 : index
    %c0_50 = arith.constant 0 : index
    %64 = vector.load %arg11[%c0_49, %c2, %c0_50] : memref<4x16x8xbf16, #tpu.memory_space<vmem>>, vector<2x8x8xbf16>
    %65 = vector.shape_cast %64 : vector<2x8x8xbf16> to vector<16x8xbf16>
    %c2_51 = arith.constant 2 : index
    %c0_52 = arith.constant 0 : index
    %c0_53 = arith.constant 0 : index
    %66 = vector.load %arg7[%c2_51, %c0_52, %c0_53] : memref<9x8x8xbf16, #tpu.memory_space<vmem>>, vector<1x8x8xbf16>
    %67 = vector.shape_cast %66 : vector<1x8x8xbf16> to vector<8x8xbf16>
    %cst_54 = arith.constant dense<0.000000e+00> : vector<16x8xf32>
    %68 = tpu.matmul %65, %67, %cst_54 {dimension_numbers = #tpu.dot_dimension_numbers<[1], [0], [0], [1], [0, 0, 1, 1], [], []>} : vector<16x8xbf16>, vector<8x8xbf16>, vector<16x8xf32> -> vector<16x8xf32>
    %69 = arith.addf %63, %68 : vector<16x8xf32>
    %c1_55 = arith.constant 1 : index
    %c0_56 = arith.constant 0 : index
    %c0_57 = arith.constant 0 : index
    %70 = vector.load %arg11[%c1_55, %c0_56, %c0_57] : memref<4x16x8xbf16, #tpu.memory_space<vmem>>, vector<2x8x8xbf16>
    %71 = vector.shape_cast %70 : vector<2x8x8xbf16> to vector<16x8xbf16>
    %c3_58 = arith.constant 3 : index
    %c0_59 = arith.constant 0 : index
    %c0_60 = arith.constant 0 : index
    %72 = vector.load %arg7[%c3_58, %c0_59, %c0_60] : memref<9x8x8xbf16, #tpu.memory_space<vmem>>, vector<1x8x8xbf16>
    %73 = vector.shape_cast %72 : vector<1x8x8xbf16> to vector<8x8xbf16>
    %cst_61 = arith.constant dense<0.000000e+00> : vector<16x8xf32>
    %74 = tpu.matmul %71, %73, %cst_61 {dimension_numbers = #tpu.dot_dimension_numbers<[1], [0], [0], [1], [0, 0, 1, 1], [], []>} : vector<16x8xbf16>, vector<8x8xbf16>, vector<16x8xf32> -> vector<16x8xf32>
    %75 = arith.addf %69, %74 : vector<16x8xf32>
    %c1_62 = arith.constant 1 : index
    %c1_63 = arith.constant 1 : index
    %c0_64 = arith.constant 0 : index
    %76 = vector.load %arg11[%c1_62, %c1_63, %c0_64] : memref<4x16x8xbf16, #tpu.memory_space<vmem>>, vector<2x8x8xbf16>
    %77 = vector.shape_cast %76 : vector<2x8x8xbf16> to vector<16x8xbf16>
    %c4 = arith.constant 4 : index
    %c0_65 = arith.constant 0 : index
    %c0_66 = arith.constant 0 : index
    %78 = vector.load %arg7[%c4, %c0_65, %c0_66] : memref<9x8x8xbf16, #tpu.memory_space<vmem>>, vector<1x8x8xbf16>
    %79 = vector.shape_cast %78 : vector<1x8x8xbf16> to vector<8x8xbf16>
    %cst_67 = arith.constant dense<0.000000e+00> : vector<16x8xf32>
    %80 = tpu.matmul %77, %79, %cst_67 {dimension_numbers = #tpu.dot_dimension_numbers<[1], [0], [0], [1], [0, 0, 1, 1], [], []>} : vector<16x8xbf16>, vector<8x8xbf16>, vector<16x8xf32> -> vector<16x8xf32>
    %81 = arith.addf %75, %80 : vector<16x8xf32>
    %c1_68 = arith.constant 1 : index
    %c2_69 = arith.constant 2 : index
    %c0_70 = arith.constant 0 : index
    %82 = vector.load %arg11[%c1_68, %c2_69, %c0_70] : memref<4x16x8xbf16, #tpu.memory_space<vmem>>, vector<2x8x8xbf16>
    %83 = vector.shape_cast %82 : vector<2x8x8xbf16> to vector<16x8xbf16>
    %c5 = arith.constant 5 : index
    %c0_71 = arith.constant 0 : index
    %c0_72 = arith.constant 0 : index
    %84 = vector.load %arg7[%c5, %c0_71, %c0_72] : memref<9x8x8xbf16, #tpu.memory_space<vmem>>, vector<1x8x8xbf16>
    %85 = vector.shape_cast %84 : vector<1x8x8xbf16> to vector<8x8xbf16>
    %cst_73 = arith.constant dense<0.000000e+00> : vector<16x8xf32>
    %86 = tpu.matmul %83, %85, %cst_73 {dimension_numbers = #tpu.dot_dimension_numbers<[1], [0], [0], [1], [0, 0, 1, 1], [], []>} : vector<16x8xbf16>, vector<8x8xbf16>, vector<16x8xf32> -> vector<16x8xf32>
    %87 = arith.addf %81, %86 : vector<16x8xf32>
    %c2_74 = arith.constant 2 : index
    %c0_75 = arith.constant 0 : index
    %c0_76 = arith.constant 0 : index
    %88 = vector.load %arg11[%c2_74, %c0_75, %c0_76] : memref<4x16x8xbf16, #tpu.memory_space<vmem>>, vector<2x8x8xbf16>
    %89 = vector.shape_cast %88 : vector<2x8x8xbf16> to vector<16x8xbf16>
    %c6 = arith.constant 6 : index
    %c0_77 = arith.constant 0 : index
    %c0_78 = arith.constant 0 : index
    %90 = vector.load %arg7[%c6, %c0_77, %c0_78] : memref<9x8x8xbf16, #tpu.memory_space<vmem>>, vector<1x8x8xbf16>
    %91 = vector.shape_cast %90 : vector<1x8x8xbf16> to vector<8x8xbf16>
    %cst_79 = arith.constant dense<0.000000e+00> : vector<16x8xf32>
    %92 = tpu.matmul %89, %91, %cst_79 {dimension_numbers = #tpu.dot_dimension_numbers<[1], [0], [0], [1], [0, 0, 1, 1], [], []>} : vector<16x8xbf16>, vector<8x8xbf16>, vector<16x8xf32> -> vector<16x8xf32>
    %93 = arith.addf %87, %92 : vector<16x8xf32>
    %c2_80 = arith.constant 2 : index
    %c1_81 = arith.constant 1 : index
    %c0_82 = arith.constant 0 : index
    %94 = vector.load %arg11[%c2_80, %c1_81, %c0_82] : memref<4x16x8xbf16, #tpu.memory_space<vmem>>, vector<2x8x8xbf16>
    %95 = vector.shape_cast %94 : vector<2x8x8xbf16> to vector<16x8xbf16>
    %c7 = arith.constant 7 : index
    %c0_83 = arith.constant 0 : index
    %c0_84 = arith.constant 0 : index
    %96 = vector.load %arg7[%c7, %c0_83, %c0_84] : memref<9x8x8xbf16, #tpu.memory_space<vmem>>, vector<1x8x8xbf16>
    %97 = vector.shape_cast %96 : vector<1x8x8xbf16> to vector<8x8xbf16>
    %cst_85 = arith.constant dense<0.000000e+00> : vector<16x8xf32>
    %98 = tpu.matmul %95, %97, %cst_85 {dimension_numbers = #tpu.dot_dimension_numbers<[1], [0], [0], [1], [0, 0, 1, 1], [], []>} : vector<16x8xbf16>, vector<8x8xbf16>, vector<16x8xf32> -> vector<16x8xf32>
    %99 = arith.addf %93, %98 : vector<16x8xf32>
    %c2_86 = arith.constant 2 : index
    %c2_87 = arith.constant 2 : index
    %c0_88 = arith.constant 0 : index
    %100 = vector.load %arg11[%c2_86, %c2_87, %c0_88] : memref<4x16x8xbf16, #tpu.memory_space<vmem>>, vector<2x8x8xbf16>
    %101 = vector.shape_cast %100 : vector<2x8x8xbf16> to vector<16x8xbf16>
    %c8 = arith.constant 8 : index
    %c0_89 = arith.constant 0 : index
    %c0_90 = arith.constant 0 : index
    %102 = vector.load %arg7[%c8, %c0_89, %c0_90] : memref<9x8x8xbf16, #tpu.memory_space<vmem>>, vector<1x8x8xbf16>
    %103 = vector.shape_cast %102 : vector<1x8x8xbf16> to vector<8x8xbf16>
    %cst_91 = arith.constant dense<0.000000e+00> : vector<16x8xf32>
    %104 = tpu.matmul %101, %103, %cst_91 {dimension_numbers = #tpu.dot_dimension_numbers<[1], [0], [0], [1], [0, 0, 1, 1], [], []>} : vector<16x8xbf16>, vector<8x8xbf16>, vector<16x8xf32> -> vector<16x8xf32>
    %105 = arith.addf %99, %104 : vector<16x8xf32>
    %c0_92 = arith.constant 0 : index
    %c0_93 = arith.constant 0 : index
    %106 = vector.load %arg8[%c0_92, %c0_93] : memref<1x8xf32, #tpu.memory_space<vmem>>, vector<1x8xf32>
    %107 = vector.broadcast %106 : vector<1x8xf32> to vector<16x8xf32>
    %108 = arith.addf %105, %107 : vector<16x8xf32>
    %109 = vector.shape_cast %108 : vector<16x8xf32> to vector<1x2x8x8xf32>
    %110 = arith.truncf %109 : vector<1x2x8x8xf32> to vector<1x2x8x8xbf16>
    %c0_94 = arith.constant 0 : index
    %c0_95 = arith.constant 0 : index
    %c0_96 = arith.constant 0 : index
    %c0_97 = arith.constant 0 : index
    %111 = vector.load %arg9[%c0_94, %c0_95, %c0_96, %c0_97] : memref<1x2x8x8xbf16, #tpu.memory_space<vmem>>, vector<1x2x8x8xbf16>
    tpu.vector_store %arg9[%c0_94, %c0_95, %c0_96, %c0_97], %110 {strides = array<i32>} : memref<1x2x8x8xbf16, #tpu.memory_space<vmem>>, vector<1x2x8x8xbf16>,
    %cst_98 = arith.constant dense<0.000000e+00> : vector<8xf32>
    %112 = vector.multi_reduction <add>, %108, %cst_98 [0] : vector<16x8xf32> to vector<8xf32>
    %113 = vector.shape_cast %112 : vector<8xf32> to vector<1x8xf32>
    %c0_99 = arith.constant 0 : index
    %c0_100 = arith.constant 0 : index
    %c0_101 = arith.constant 0 : index
    %c0_102 = arith.constant 0 : index
    %114 = vector.load %arg10[%c0_99, %c0_100, %c0_101, %c0_102] : memref<1x1x2x8xf32, #tpu.memory_space<vmem>>, vector<1x1x1x8xf32>
    %115 = vector.shape_cast %114 : vector<1x1x1x8xf32> to vector<1x8xf32>
    %116 = vector.shape_cast %113 : vector<1x8xf32> to vector<1x1x1x8xf32>
    tpu.vector_store %arg10[%c0_99, %c0_100, %c0_101, %c0_102], %116 {strides = array<i32>} : memref<1x1x2x8xf32, #tpu.memory_space<vmem>>, vector<1x1x1x8xf32>,
    %117 = arith.mulf %108, %108 : vector<16x8xf32>
    %cst_103 = arith.constant dense<0.000000e+00> : vector<8xf32>
    %118 = vector.multi_reduction <add>, %117, %cst_103 [0] : vector<16x8xf32> to vector<8xf32>
    %119 = vector.shape_cast %118 : vector<8xf32> to vector<1x8xf32>
    %c0_104 = arith.constant 0 : index
    %c0_105 = arith.constant 0 : index
    %c1_106 = arith.constant 1 : index
    %c0_107 = arith.constant 0 : index
    %120 = vector.load %arg10[%c0_104, %c0_105, %c1_106, %c0_107] : memref<1x1x2x8xf32, #tpu.memory_space<vmem>>, vector<1x1x1x8xf32>
    %121 = vector.shape_cast %120 : vector<1x1x1x8xf32> to vector<1x8xf32>
    %122 = vector.shape_cast %119 : vector<1x8xf32> to vector<1x1x1x8xf32>
    tpu.vector_store %arg10[%c0_104, %c0_105, %c1_106, %c0_107], %122 {strides = array<i32>} : memref<1x1x2x8xf32, #tpu.memory_space<vmem>>, vector<1x1x1x8xf32>,
    return
  }
  func.func @transform_0(%arg0: i32, %arg1: i32) -> (i32, i32, i32, i32) {
    %c0_i32 = arith.constant 0 : i32
    %c0_i32_0 = arith.constant 0 : i32
    %c0_i32_1 = arith.constant 0 : i32
    return %arg0, %arg1, %c0_i32, %c0_i32_0 : i32, i32, i32, i32
  }
  func.func @transform_1(%arg0: i32, %arg1: i32) -> (i32, i32, i32, i32) {
    %c2_i32 = arith.constant 2 : i32
    %0 = arith.muli %arg1, %c2_i32 : i32
    %c1_i32 = arith.constant 1 : i32
    %1 = arith.subi %0, %c1_i32 : i32
    %c0_i32 = arith.constant 0 : i32
    %2 = arith.maxsi %1, %c0_i32 : i32
    %c0_i32_0 = arith.constant 0 : i32
    %c0_i32_1 = arith.constant 0 : i32
    %c0_i32_2 = arith.constant 0 : i32
    return %arg0, %2, %c0_i32_0, %c0_i32_1 : i32, i32, i32, i32
  }
  func.func @transform_2(%arg0: i32, %arg1: i32) -> (i32, i32, i32, i32) {
    %c1_i32 = arith.constant 1 : i32
    %0 = arith.addi %arg1, %c1_i32 : i32
    %c2_i32 = arith.constant 2 : i32
    %1 = arith.muli %0, %c2_i32 : i32
    %c7_i32 = arith.constant 7 : i32
    %2 = arith.minsi %1, %c7_i32 : i32
    %c0_i32 = arith.constant 0 : i32
    %c0_i32_0 = arith.constant 0 : i32
    %c0_i32_1 = arith.constant 0 : i32
    return %arg0, %2, %c0_i32, %c0_i32_0 : i32, i32, i32, i32
  }
  func.func @transform_3(%arg0: i32, %arg1: i32) -> (i32, i32) {
    %c0_i32 = arith.constant 0 : i32
    %c0_i32_0 = arith.constant 0 : i32
    %c0_i32_1 = arith.constant 0 : i32
    return %c0_i32, %c0_i32_0 : i32, i32
  }
  func.func @transform_4(%arg0: i32, %arg1: i32) -> (i32, i32) {
    %c0_i32 = arith.constant 0 : i32
    %c0_i32_0 = arith.constant 0 : i32
    %c0_i32_1 = arith.constant 0 : i32
    return %c0_i32, %c0_i32_0 : i32, i32
  }
  func.func @transform_5(%arg0: i32, %arg1: i32) -> (i32, i32, i32) {
    %c0_i32 = arith.constant 0 : i32
    %c0_i32_0 = arith.constant 0 : i32
    %c0_i32_1 = arith.constant 0 : i32
    %c0_i32_2 = arith.constant 0 : i32
    return %c0_i32, %c0_i32_0, %c0_i32_1 : i32, i32, i32
  }
  func.func @transform_6(%arg0: i32, %arg1: i32) -> (i32, i32) {
    %c0_i32 = arith.constant 0 : i32
    %c0_i32_0 = arith.constant 0 : i32
    %c0_i32_1 = arith.constant 0 : i32
    return %c0_i32, %c0_i32_0 : i32, i32
  }
  func.func @transform_7(%arg0: i32, %arg1: i32) -> (i32, i32, i32, i32) {
    %c0_i32 = arith.constant 0 : i32
    %c0_i32_0 = arith.constant 0 : i32
    %c0_i32_1 = arith.constant 0 : i32
    return %arg0, %arg1, %c0_i32, %c0_i32_0 : i32, i32, i32, i32
  }
  func.func @transform_8(%arg0: i32, %arg1: i32) -> (i32, i32, i32, i32) {
    %c0_i32 = arith.constant 0 : i32
    %c0_i32_0 = arith.constant 0 : i32
    %c0_i32_1 = arith.constant 0 : i32
    return %arg0, %arg1, %c0_i32, %c0_i32_0 : i32, i32, i32, i32
  }
}

</mosaic_0001>

<llo_original>
// kernel: down_forward.2
$region0: #{down_forward.2}
  #allocation0 [shape = 'u32[]', space=smem, size = 0x4, offset = 0x4, fixed_abs, tag = 'smem constant byte address 0x4 - core index']
  #allocation1 [shape = 'u32[144,128]{1,0:T(1,128)}', space=vmem, size = 0x12000, scoped, tag = 'internal scratch']
  #allocation2 [shape = 'bf16[4,16,4]{2,1,0:T(16,128)(2,1)}', space=vmem, size = 0x4000, scoped, tag = 'scratch operand']
  %s0 = inlined_call_operand.vmem [shape: bf16[2,8,16,8], index: 0, kind: input, shape index: {}, may-alias: {0,1,2}]
  %s1 = inlined_call_operand.vmem [shape: bf16[2,8,16,8], index: 1, kind: input, shape index: {}, may-alias: {0,1,2}]
  %s2 = inlined_call_operand.vmem [shape: bf16[2,8,16,8], index: 2, kind: input, shape index: {}, may-alias: {0,1,2}]
  %s3 = inlined_call_operand.vmem [shape: bf16[9,4,8], index: 3, kind: input, shape index: {}]
  %s4 = inlined_call_operand.vmem [shape: f32[1,8], index: 4, kind: input, shape index: {}]
  %s5 = inlined_call_operand.vmem [shape: bf16[2,8,8,8], index: 5, kind: output, shape index: {0}]
  %s6 = inlined_call_operand.vmem [shape: f32[2,4,2,8], index: 6, kind: output, shape index: {1}]
  %7 = xla_tuple %s5, %s6
  %s8 = sld [smem:[#allocation0]]
  $region69: #{down_forward.2} parent=0
    _
  %s10 = ssub.s32 1, %s8
  %s11 = scalar_select 0, %s10, %s8
  loop: start=0, step=1, limit=10
  $region2: #{down_forward.2} parent=0 // loop_pre_header
    _
  $region3: #{down_forward.2} parent=0 // loop_header
    %s13 = sphi 0, %s17
    %p14 = scmp.ge.s32.totalorder %s13, 10
    %s20 = sphi 0, %s32
    %s21 = sphi 0, %s28
    %s22 = sphi 0, %s20
    %s23 = sphi 0, %s21
    %s24 = sphi 0, %s22
    %s25 = sphi 0, %s23
    %s37 = sphi 0, %s39
    %s40 = sphi 0, %s37
    %s41 = sphi 0, %s40
    %s57 = sphi 0, %s41
    %s73 = sphi 0, %s75
    %s76 = sphi 0, %s73
    %s77 = sphi 0, %s76
    %s93 = sphi 0, %s77
    %s109 = sphi 0, %s111
    %s112 = sphi 0, %s109
    %s113 = sphi 0, %s112
    %s129 = sphi 0, %s113
    %s133 = sphi 0, %s133
    %s135 = sphi 0, %s133
    %s136 = sphi 0, %s135
    %s150 = sphi 0, %s136
    %s154 = sphi 0, %s154
    %s156 = sphi 0, %s154
    %s157 = sphi 0, %s156
    %s171 = sphi 0, %s157
    %s179 = sphi 0, %s181
    %s182 = sphi 0, %s179
    %s183 = sphi 0, %s182
    %s199 = sphi 0, %s183
    %s207 = sphi 0, %s209
    %s210 = sphi 0, %s207
    %s211 = sphi 0, %s210
    %s227 = sphi 0, %s211
  $region4: #{down_forward.2} parent=0 // loop_header_branch
    %16 = sbr.rel (%p14) target = $region8
  $region5: #{down_forward.2} parent=0 // loop_body
    %s18 = ssub.s32 %s13, 1
    %s19 = ssub.s32 %s13, 2
    %s26 = sadd.s32 1, %s21
    %p27 = scmp.ge.s32.totalorder %s26, 4
    %s28 = scalar_select %p27, 0, %s26
    %s29 = sadd.s32 1, %s20
    %s30 = scalar_select %p27, %s29, %s20
    %p31 = scmp.ge.s32.totalorder %s30, 2
    %s32 = scalar_select %p31, 0, %s30
    %s33 = ssub.s32 %s20, %s32
    %s34 = ssub.s32 %s21, %s28
    %s35 = sor.u32 %s33, %s34
    %p36 = scmp.eq.s32.totalorder %s35, 0
    %s38 = sadd.s32 %s37, 1
    %s39 = scalar_select %p36, %s37, %s38
    %p42 = pneg %p36
    %p43 = scmp.eq.s32.totalorder %s13, 7
    %p44 = por %p42, %p43
    %p45 = scmp.ne.s32.totalorder %s37, %s40
    %p46 = scmp.eq.s32.totalorder %s13, 0
    %p47 = por %p45, %p46
    %p48 = scmp.ne.s32.totalorder %s37, %s40
    %p49 = scmp.eq.s32.totalorder %s18, 7
    %p50 = por %p48, %p49
    %p51 = scmp.ne.s32.totalorder %s40, %s41
    %p52 = scmp.eq.s32.totalorder %s18, 0
    %p53 = por %p51, %p52
    %p54 = scmp.ne.s32.totalorder %s40, %s41
    %p55 = scmp.eq.s32.totalorder %s19, 7
    %p56 = por %p54, %p55
    %p58 = scmp.ne.s32.totalorder %s41, %s57
    %p59 = scmp.eq.s32.totalorder %s19, 0
    %p60 = por %p58, %p59
    %s61 = smul.u32 %s21, 2
    %s62 = ssub.s32 %s61, 1
    %p63 = scmp.gt.s32.totalorder %s62, 0
    %s64 = scalar_select %p63, %s62, 0
    %s65 = smul.u32 %s28, 2
    %s66 = ssub.s32 %s65, 1
    %p67 = scmp.gt.s32.totalorder %s66, 0
    %s68 = scalar_select %p67, %s66, 0
    %s69 = ssub.s32 %s20, %s32
    %s70 = ssub.s32 %s64, %s68
    %s71 = sor.u32 %s69, %s70
    %p72 = scmp.eq.s32.totalorder %s71, 0
    %s74 = sadd.s32 %s73, 1
    %s75 = scalar_select %p72, %s73, %s74
    %p78 = pneg %p72
    %p79 = scmp.eq.s32.totalorder %s13, 7
    %p80 = por %p78, %p79
    %p81 = scmp.ne.s32.totalorder %s73, %s76
    %p82 = scmp.eq.s32.totalorder %s13, 0
    %p83 = por %p81, %p82
    %p84 = scmp.ne.s32.totalorder %s73, %s76
    %p85 = scmp.eq.s32.totalorder %s18, 7
    %p86 = por %p84, %p85
    %p87 = scmp.ne.s32.totalorder %s76, %s77
    %p88 = scmp.eq.s32.totalorder %s18, 0
    %p89 = por %p87, %p88
    %p90 = scmp.ne.s32.totalorder %s76, %s77
    %p91 = scmp.eq.s32.totalorder %s19, 7
    %p92 = por %p90, %p91
    %p94 = scmp.ne.s32.totalorder %s77, %s93
    %p95 = scmp.eq.s32.totalorder %s19, 0
    %p96 = por %p94, %p95
    %s97 = sadd.s32 %s21, 1
    %s98 = smul.u32 %s97, 2
    %p99 = scmp.lt.s32.totalorder %s98, 7
    %s100 = scalar_select %p99, %s98, 7
    %s101 = sadd.s32 %s28, 1
    %s102 = smul.u32 %s101, 2
    %p103 = scmp.lt.s32.totalorder %s102, 7
    %s104 = scalar_select %p103, %s102, 7
    %s105 = ssub.s32 %s20, %s32
    %s106 = ssub.s32 %s100, %s104
    %s107 = sor.u32 %s105, %s106
    %p108 = scmp.eq.s32.totalorder %s107, 0
    %s110 = sadd.s32 %s109, 1
    %s111 = scalar_select %p108, %s109, %s110
    %p114 = pneg %p108
    %p115 = scmp.eq.s32.totalorder %s13, 7
    %p116 = por %p114, %p115
    %p117 = scmp.ne.s32.totalorder %s109, %s112
    %p118 = scmp.eq.s32.totalorder %s13, 0
    %p119 = por %p117, %p118
    %p120 = scmp.ne.s32.totalorder %s109, %s112
    %p121 = scmp.eq.s32.totalorder %s18, 7
    %p122 = por %p120, %p121
    %p123 = scmp.ne.s32.totalorder %s112, %s113
    %p124 = scmp.eq.s32.totalorder %s18, 0
    %p125 = por %p123, %p124
    %p126 = scmp.ne.s32.totalorder %s112, %s113
    %p127 = scmp.eq.s32.totalorder %s19, 7
    %p128 = por %p126, %p127
    %p130 = scmp.ne.s32.totalorder %s113, %s129
    %p131 = scmp.eq.s32.totalorder %s19, 0
    %p132 = por %p130, %p131
    %s134 = sadd.s32 %s133, 1
    %p137 = scmp.eq.s32.totalorder %s13, 7
    %p138 = scmp.ne.s32.totalorder %s133, %s135
    %p139 = scmp.eq.s32.totalorder %s13, 0
    %p140 = por %p138, %p139
    %p141 = scmp.ne.s32.totalorder %s133, %s135
    %p142 = scmp.eq.s32.totalorder %s18, 7
    %p143 = por %p141, %p142
    %p144 = scmp.ne.s32.totalorder %s135, %s136
    %p145 = scmp.eq.s32.totalorder %s18, 0
    %p146 = por %p144, %p145
    %p147 = scmp.ne.s32.totalorder %s135, %s136
    %p148 = scmp.eq.s32.totalorder %s19, 7
    %p149 = por %p147, %p148
    %p151 = scmp.ne.s32.totalorder %s136, %s150
    %p152 = scmp.eq.s32.totalorder %s19, 0
    %p153 = por %p151, %p152
    %s155 = sadd.s32 %s154, 1
    %p158 = scmp.eq.s32.totalorder %s13, 7
    %p159 = scmp.ne.s32.totalorder %s154, %s156
    %p160 = scmp.eq.s32.totalorder %s13, 0
    %p161 = por %p159, %p160
    %p162 = scmp.ne.s32.totalorder %s154, %s156
    %p163 = scmp.eq.s32.totalorder %s18, 7
    %p164 = por %p162, %p163
    %p165 = scmp.ne.s32.totalorder %s156, %s157
    %p166 = scmp.eq.s32.totalorder %s18, 0
    %p167 = por %p165, %p166
    %p168 = scmp.ne.s32.totalorder %s156, %s157
    %p169 = scmp.eq.s32.totalorder %s19, 7
    %p170 = por %p168, %p169
    %p172 = scmp.ne.s32.totalorder %s157, %s171
    %p173 = scmp.eq.s32.totalorder %s19, 0
    %p174 = por %p172, %p173
    %s175 = ssub.s32 %s20, %s32
    %s176 = ssub.s32 %s21, %s28
    %s177 = sor.u32 %s175, %s176
    %p178 = scmp.eq.s32.totalorder %s177, 0
    %s180 = sadd.s32 %s179, 1
    %s181 = scalar_select %p178, %s179, %s180
    %p184 = pneg %p178
    %p185 = scmp.eq.s32.totalorder %s13, 7
    %p186 = por %p184, %p185
    %p187 = scmp.ne.s32.totalorder %s179, %s182
    %p188 = scmp.eq.s32.totalorder %s13, 0
    %p189 = por %p187, %p188
    %p190 = scmp.ne.s32.totalorder %s179, %s182
    %p191 = scmp.eq.s32.totalorder %s18, 7
    %p192 = por %p190, %p191
    %p193 = scmp.ne.s32.totalorder %s182, %s183
    %p194 = scmp.eq.s32.totalorder %s18, 0
    %p195 = por %p193, %p194
    %p196 = scmp.ne.s32.totalorder %s182, %s183
    %p197 = scmp.eq.s32.totalorder %s19, 7
    %p198 = por %p196, %p197
    %p200 = scmp.ne.s32.totalorder %s183, %s199
    %p201 = scmp.eq.s32.totalorder %s19, 0
    %p202 = por %p200, %p201
    %s203 = ssub.s32 %s20, %s32
    %s204 = ssub.s32 %s21, %s28
    %s205 = sor.u32 %s203, %s204
    %p206 = scmp.eq.s32.totalorder %s205, 0
    %s208 = sadd.s32 %s207, 1
    %s209 = scalar_select %p206, %s207, %s208
    %p212 = pneg %p206
    %p213 = scmp.eq.s32.totalorder %s13, 7
    %p214 = por %p212, %p213
    %p215 = scmp.ne.s32.totalorder %s207, %s210
    %p216 = scmp.eq.s32.totalorder %s13, 0
    %p217 = por %p215, %p216
    %p218 = scmp.ne.s32.totalorder %s207, %s210
    %p219 = scmp.eq.s32.totalorder %s18, 7
    %p220 = por %p218, %p219
    %p221 = scmp.ne.s32.totalorder %s210, %s211
    %p222 = scmp.eq.s32.totalorder %s18, 0
    %p223 = por %p221, %p222
    %p224 = scmp.ne.s32.totalorder %s210, %s211
    %p225 = scmp.eq.s32.totalorder %s19, 7
    %p226 = por %p224, %p225
    %p228 = scmp.ne.s32.totalorder %s211, %s227
    %p229 = scmp.eq.s32.totalorder %s19, 0
    %p230 = por %p228, %p229
    %p231 = scmp.le.s32.totalorder 1, %s13
    %p232 = scmp.lt.s32.totalorder %s13, 9
    %p233 = pnand %p231, %p232
    %p234 = pneg %p233
    // Predicated region
    $region9: #{down_forward.2} parent=5 // pred_check
      _
    $region10: #{down_forward.2} parent=5 // pred_check_branch
      %236 = sbr.rel (%p233) target = $region12
    $region11: #{down_forward.2} parent=5 // pred_region
      %s237 = ssub.s32 %s13, 1
      // Predicated region
      $region13: #{down_forward.2} parent=11 // pred_check
        %p238 = pneg %p146
      $region14: #{down_forward.2} parent=11 // pred_check_branch
        %240 = sbr.rel (%p238) target = $region16
      $region15: #{down_forward.2} parent=11 // pred_region
        _
      $region16: #{down_forward.2} parent=11 // pred_fallthru
        _
      // Predicated region
      $region17: #{down_forward.2} parent=11 // pred_check
        %p241 = pneg %p167
      $region18: #{down_forward.2} parent=11 // pred_check_branch
        %243 = sbr.rel (%p241) target = $region20
      $region19: #{down_forward.2} parent=11 // pred_region
        _
      $region20: #{down_forward.2} parent=11 // pred_fallthru
        _
    $region12: #{down_forward.2} parent=5 // pred_fallthru
      _
    %p244 = scmp.lt.s32.totalorder %s13, 8
    // Predicated region
    $region21: #{down_forward.2} parent=5 // pred_check
      %p245 = pneg %p244
    $region22: #{down_forward.2} parent=5 // pred_check_branch
      %247 = sbr.rel (%p245) target = $region24
    $region23: #{down_forward.2} parent=5 // pred_region
      // Predicated region
      $region25: #{down_forward.2} parent=23 // pred_check
        %p248 = pneg %p47
      $region26: #{down_forward.2} parent=23 // pred_check_branch
        %250 = sbr.rel (%p248) target = $region28
      $region27: #{down_forward.2} parent=23 // pred_region
        %s251 = smul.u32 2, %s21
        %p252 = scmp.lt.s32.totalorder %s20, 1
        %s253 = scalar_select %p252, %s20, 1
        %p254 = scmp.lt.s32.totalorder %s251, 7
        %s255 = scalar_select %p254, %s251, 7
        %s256 = smul.addr %s255, 2
        %s257 = smul.addr %s253, 16
        %s258 = sadd.s32 %s256, %s257
        %s259 = smul.addr %s258, 4
        %s260 = scalar_lea.vmem %s0, %s259
        %s261 = smul.u32 2, %s21
      $region28: #{down_forward.2} parent=23 // pred_fallthru
        _
      // Predicated region
      $region29: #{down_forward.2} parent=23 // pred_check
        %p262 = pneg %p83
      $region30: #{down_forward.2} parent=23 // pred_check_branch
        %264 = sbr.rel (%p262) target = $region32
      $region31: #{down_forward.2} parent=23 // pred_region
        %s265 = smul.u32 %s21, 2
        %s266 = ssub.s32 %s265, 1
        %p267 = scmp.gt.s32.totalorder %s266, 0
        %s268 = scalar_select %p267, %s266, 0
        %p269 = scmp.lt.s32.totalorder %s20, 1
        %s270 = scalar_select %p269, %s20, 1
        %p271 = scmp.lt.s32.totalorder %s268, 7
        %s272 = scalar_select %p271, %s268, 7
        %s273 = smul.addr %s272, 2
        %s274 = smul.addr %s270, 16
        %s275 = sadd.s32 %s273, %s274
        %s276 = smul.addr %s275, 4
        %s277 = scalar_lea.vmem %s1, %s276
        %s278 = smul.u32 %s21, 2
        %s279 = ssub.s32 %s278, 1
        %p280 = scmp.gt.s32.totalorder %s279, 0
        %s281 = scalar_select %p280, %s279, 0
      $region32: #{down_forward.2} parent=23 // pred_fallthru
        _
      // Predicated region
      $region33: #{down_forward.2} parent=23 // pred_check
        %p282 = pneg %p119
      $region34: #{down_forward.2} parent=23 // pred_check_branch
        %284 = sbr.rel (%p282) target = $region36
      $region35: #{down_forward.2} parent=23 // pred_region
        %s285 = sadd.s32 %s21, 1
        %s286 = smul.u32 %s285, 2
        %p287 = scmp.lt.s32.totalorder %s286, 7
        %s288 = scalar_select %p287, %s286, 7
        %p289 = scmp.lt.s32.totalorder %s20, 1
        %s290 = scalar_select %p289, %s20, 1
        %p291 = scmp.lt.s32.totalorder %s288, 7
        %s292 = scalar_select %p291, %s288, 7
        %s293 = smul.addr %s292, 2
        %s294 = smul.addr %s290, 16
        %s295 = sadd.s32 %s293, %s294
        %s296 = smul.addr %s295, 4
        %s297 = scalar_lea.vmem %s2, %s296
        %s298 = sadd.s32 %s21, 1
        %s299 = smul.u32 %s298, 2
        %p300 = scmp.lt.s32.totalorder %s299, 7
        %s301 = scalar_select %p300, %s299, 7
      $region36: #{down_forward.2} parent=23 // pred_fallthru
        _
    $region24: #{down_forward.2} parent=5 // pred_fallthru
      _
    %p302 = scmp.le.s32.totalorder 1, %s13
    %p303 = scmp.lt.s32.totalorder %s13, 9
    %p304 = pnand %p302, %p303
    %p305 = pneg %p304
    // Predicated region
    $region37: #{down_forward.2} parent=5 // pred_check
      _
    $region38: #{down_forward.2} parent=5 // pred_check_branch
      %307 = sbr.rel (%p304) target = $region40
    $region39: #{down_forward.2} parent=5 // pred_region
      %s308 = ssub.s32 %s13, 1
      %s309 = smul.u32 2, %s23
      %p310 = scmp.lt.s32.totalorder %s22, 1
      %s311 = scalar_select %p310, %s22, 1
      %p312 = scmp.lt.s32.totalorder %s309, 7
      %s313 = scalar_select %p312, %s309, 7
      %s314 = smul.addr %s313, 2
      %s315 = smul.addr %s311, 16
      %s316 = sadd.s32 %s314, %s315
      %s317 = smul.addr %s316, 4
      %s318 = scalar_lea.vmem %s0, %s317
      %p319 = pneg %p53
      %p320 = pneg %p50
      %s321 = smul.u32 %s23, 2
      %s322 = ssub.s32 %s321, 1
      %p323 = scmp.gt.s32.totalorder %s322, 0
      %s324 = scalar_select %p323, %s322, 0
      %p325 = scmp.lt.s32.totalorder %s22, 1
      %s326 = scalar_select %p325, %s22, 1
      %p327 = scmp.lt.s32.totalorder %s324, 7
      %s328 = scalar_select %p327, %s324, 7
      %s329 = smul.addr %s328, 2
      %s330 = smul.addr %s326, 16
      %s331 = sadd.s32 %s329, %s330
      %s332 = smul.addr %s331, 4
      %s333 = scalar_lea.vmem %s1, %s332
      %p334 = pneg %p89
      %p335 = pneg %p86
      %s336 = sadd.s32 %s23, 1
      %s337 = smul.u32 %s336, 2
      %p338 = scmp.lt.s32.totalorder %s337, 7
      %s339 = scalar_select %p338, %s337, 7
      %p340 = scmp.lt.s32.totalorder %s22, 1
      %s341 = scalar_select %p340, %s22, 1
      %p342 = scmp.lt.s32.totalorder %s339, 7
      %s343 = scalar_select %p342, %s339, 7
      %s344 = smul.addr %s343, 2
      %s345 = smul.addr %s341, 16
      %s346 = sadd.s32 %s344, %s345
      %s347 = smul.addr %s346, 4
      %s348 = scalar_lea.vmem %s2, %s347
      %p349 = pneg %p125
      %p350 = pneg %p122
      %p351 = pneg %p146
      %p352 = pneg %p143
      %p353 = pneg %p167
      %p354 = pneg %p164
      %p355 = pneg %p195
      %p356 = pneg %p192
      %s357 = smul.u32 2, %s23
      %p358 = scmp.lt.s32.totalorder %s22, 1
      %s359 = scalar_select %p358, %s22, 1
      %p360 = scmp.lt.s32.totalorder %s357, 7
      %s361 = scalar_select %p360, %s357, 7
      %s362 = smul.addr %s359, 8
      %s363 = sadd.s32 %s361, %s362
      %s364 = smul.addr %s363, 4
      %s365 = scalar_lea.vmem %s5, %s364
      %p366 = pneg %p223
      %p367 = pneg %p220
      %p368 = scmp.lt.s32.totalorder %s22, 1
      %s369 = scalar_select %p368, %s22, 1
      %p370 = scmp.lt.s32.totalorder %s23, 3
      %s371 = scalar_select %p370, %s23, 3
      %s372 = smul.addr %s369, 4
      %s373 = sadd.s32 %s371, %s372
      %s374 = smul.addr %s373, 2
      %s375 = scalar_lea.vmem %s6, %s374
      %s376 = smul.u32 2, %s23
      %p377 = scmp.lt.s32.totalorder %s22, 1
      %s378 = scalar_select %p377, %s22, 1
      %p379 = scmp.lt.s32.totalorder %s376, 7
      %s380 = scalar_select %p379, %s376, 7
      %s381 = smul.addr %s380, 2
      %s382 = smul.addr %s378, 16
      %s383 = sadd.s32 %s381, %s382
      %s384 = smul.addr %s383, 4
      %s385 = scalar_lea.vmem %s0, %s384
      %s386 = smul.u32 2, %s23
      %s387 = smul.u32 %s23, 2
      %s388 = ssub.s32 %s387, 1
      %p389 = scmp.gt.s32.totalorder %s388, 0
      %s390 = scalar_select %p389, %s388, 0
      %p391 = scmp.lt.s32.totalorder %s22, 1
      %s392 = scalar_select %p391, %s22, 1
      %p393 = scmp.lt.s32.totalorder %s390, 7
      %s394 = scalar_select %p393, %s390, 7
      %s395 = smul.addr %s394, 2
      %s396 = smul.addr %s392, 16
      %s397 = sadd.s32 %s395, %s396
      %s398 = smul.addr %s397, 4
      %s399 = scalar_lea.vmem %s1, %s398
      %s400 = smul.u32 %s23, 2
      %s401 = ssub.s32 %s400, 1
      %p402 = scmp.gt.s32.totalorder %s401, 0
      %s403 = scalar_select %p402, %s401, 0
      %s404 = sadd.s32 %s23, 1
      %s405 = smul.u32 %s404, 2
      %p406 = scmp.lt.s32.totalorder %s405, 7
      %s407 = scalar_select %p406, %s405, 7
      %p408 = scmp.lt.s32.totalorder %s22, 1
      %s409 = scalar_select %p408, %s22, 1
      %p410 = scmp.lt.s32.totalorder %s407, 7
      %s411 = scalar_select %p410, %s407, 7
      %s412 = smul.addr %s411, 2
      %s413 = smul.addr %s409, 16
      %s414 = sadd.s32 %s412, %s413
      %s415 = smul.addr %s414, 4
      %s416 = scalar_lea.vmem %s2, %s415
      %s417 = sadd.s32 %s23, 1
      %s418 = smul.u32 %s417, 2
      %p419 = scmp.lt.s32.totalorder %s418, 7
      %s420 = scalar_select %p419, %s418, 7
      %s421 = smul.u32 2, %s23
      %p422 = scmp.lt.s32.totalorder %s22, 1
      %s423 = scalar_select %p422, %s22, 1
      %p424 = scmp.lt.s32.totalorder %s421, 7
      %s425 = scalar_select %p424, %s421, 7
      %s426 = smul.addr %s423, 8
      %s427 = sadd.s32 %s425, %s426
      %s428 = smul.addr %s427, 4
      %s429 = scalar_lea.vmem %s5, %s428
      %s430 = smul.u32 2, %s23
      %p431 = scmp.lt.s32.totalorder %s22, 1
      %s432 = scalar_select %p431, %s22, 1
      %p433 = scmp.lt.s32.totalorder %s23, 3
      %s434 = scalar_select %p433, %s23, 3
      %s435 = smul.addr %s432, 4
      %s436 = sadd.s32 %s434, %s435
      %s437 = smul.addr %s436, 2
      %s438 = scalar_lea.vmem %s6, %s437
      %v440 = vld [vmem:[%s385] sm:$0xf]
      %v441 = vld [vmem:[%s385 + $0x4] sm:$0xf]
      %v442 = vld [vmem:[%s385 + $0x8] sm:$0xf]
      %v443 = vld [vmem:[%s385 + $0xc] sm:$0xf]
      %v444 = vmax.bf16 %v440, %v441
      %v445 = vmax.bf16 %v442, %v443
      %448 = vrot.lane.b32.xlu0 %v444, 124
      %v449 = vpop.permute.xlu0 %448
      %450 = vrot.lane.b32.xlu0 %v445, 124
      %v451 = vpop.permute.xlu0 %450
      %v454 = vmax.bf16 %v444, %v449
      %v455 = vmax.bf16 %v445, %v451
      %v456 = vld [vmem:[%s399] sm:$0xf]
      %v457 = vld [vmem:[%s399 + $0x4] sm:$0xf]
      %v458 = vmax.bf16 %v456, %v457
      %460 = vrot.lane.b32.xlu0 %v458, 124
      %v461 = vpop.permute.xlu0 %460
      %v463 = vmax.bf16 %v458, %v461
      %v464 = vld [vmem:[%s416] sm:$0xf]
      %v465 = vld [vmem:[%s416 + $0x4] sm:$0xf]
      %v466 = vmax.bf16 %v464, %v465
      %468 = vrot.lane.b32.xlu0 %v466, 124
      %v469 = vpop.permute.xlu0 %468
      %v471 = vmax.bf16 %v466, %v469
      %vm472 = vcmask 24576
      %vm473 = vsmask.f32 256
      %vm474 = vmand %vm472, %vm473
      %v475 = vld [vmem:[#allocation2] sm:$0x1]
      %v476 = vsel %vm474, 0, %v475
      %477 = vst [vmem:[#allocation2] sm:$0x1] %v476
      %v478 = vld [vmem:[#allocation2 + $0x8] sm:$0x1]
      %v479 = vsel %vm474, 0, %v478
      %480 = vst [vmem:[#allocation2 + $0x8] sm:$0x1] %v479
      %v481 = vld [vmem:[#allocation2 + $0x10] sm:$0x1]
      %v482 = vsel %vm474, 0, %v481
      %483 = vst [vmem:[#allocation2 + $0x10] sm:$0x1] %v482
      %v484 = vld [vmem:[#allocation2 + $0x18] sm:$0x1]
      %v485 = vsel %vm474, 0, %v484
      %486 = vst [vmem:[#allocation2 + $0x18] sm:$0x1] %v485
      %vm487 = vcmask 28676
      %vm488 = vsmask.f32 7954
      %vm489 = vmand %vm487, %vm488
      %v490 = vld [vmem:[#allocation2] sm:$0x10]
      %v491 = vsel %vm489, 0, %v490
      %492 = vst [vmem:[#allocation2] sm:$0x10] %v491
      %v493 = vld [vmem:[#allocation2 + $0x8] sm:$0x10]
      %v494 = vsel %vm489, 0, %v493
      %495 = vst [vmem:[#allocation2 + $0x8] sm:$0x10] %v494
      %v496 = vld [vmem:[#allocation2 + $0x10] sm:$0x10]
      %v497 = vsel %vm489, 0, %v496
      %498 = vst [vmem:[#allocation2 + $0x10] sm:$0x10] %v497
      %v499 = vld [vmem:[#allocation2 + $0x18] sm:$0x10]
      %v500 = vsel %vm489, 0, %v499
      %501 = vst [vmem:[#allocation2 + $0x18] sm:$0x10] %v500
      %vm502 = vcmask 28672
      %vm503 = vsmask.f32 4354
      %vm504 = vmand %vm502, %vm503
      %v505 = vld [vmem:[#allocation2] sm:$0x1f]
      %v506 = vsel %vm504, 0, %v505
      %507 = vst [vmem:[#allocation2] sm:$0x1f] %v506
      %s508 = scalar_lea.vmem [#allocation2], 24
      %v509 = vld [vmem:[%s508] sm:$0x1f]
      %v510 = vsel %vm504, 0, %v509
      %511 = vst [vmem:[%s508] sm:$0x1f] %v510
      %v514 = vunpack.c.l.b16 %v454
      %v515 = vunpack.c.l.b16 %v455
      %v516 = vpack.c.b16 %v514, %v514
      %v517 = vpack.c.b16 %v515, %v515
      %v519 = vshrl.u32 %v516, 16
      %v521 = vrot.slane %v519, 7
      %v522 = vshll.u32 %v516, 16
      %v524 = vor.u32 %v521, %v522
      %v526 = vshrl.u32 %v517, 16
      %v528 = vrot.slane %v526, 7
      %v529 = vshll.u32 %v517, 16
      %v531 = vor.u32 %v528, %v529
      %s534 = scalar_lea.vmem [#allocation2], 8
      %v535 = vld [vmem:[%s534] sm:$0x1f]
      %v536 = vsel %vm504, %v524, %v535
      %537 = vst [vmem:[%s534] sm:$0x1f] %v536
      %v538 = vld [vmem:[%s534 + $0x8] sm:$0x1f]
      %v539 = vsel %vm504, %v531, %v538
      %540 = vst [vmem:[%s534 + $0x8] sm:$0x1f] %v539
      %p541 = scmp.gt.s32.totalorder %s23, 0
      // Predicated region
      $region41: #{down_forward.2} parent=39 // pred_check
        %p542 = pneg %p541
      $region42: #{down_forward.2} parent=39 // pred_check_branch
        %544 = sbr.rel (%p542) target = $region44
      $region43: #{down_forward.2} parent=39 // pred_region
        %v546 = vunpack.c.l.b16 %v463
        %v547 = vpack.c.b16 %v546, %v546
        %v549 = vshrl.u32 %v547, 16
        %v551 = vrot.slane %v549, 7
        %v552 = vshll.u32 %v547, 16
        %v554 = vor.u32 %v551, %v552
        %v556 = vld [vmem:[#allocation2] sm:$0x1f]
        %v557 = vsel %vm504, %v554, %v556
        %558 = vst [vmem:[#allocation2] sm:$0x1f] %v557
      $region44: #{down_forward.2} parent=39 // pred_fallthru
        _
      %p559 = scmp.lt.s32.totalorder %s23, 3
      // Predicated region
      $region45: #{down_forward.2} parent=39 // pred_check
        %p560 = pneg %p559
      $region46: #{down_forward.2} parent=39 // pred_check_branch
        %562 = sbr.rel (%p560) target = $region48
      $region47: #{down_forward.2} parent=39 // pred_region
        %v564 = vunpack.c.l.b16 %v471
        %v565 = vpack.c.b16 %v564, %v564
        %v567 = vshrl.u32 %v565, 16
        %v569 = vrot.slane %v567, 7
        %v570 = vshll.u32 %v565, 16
        %v572 = vor.u32 %v569, %v570
        %v574 = vld [vmem:[%s508] sm:$0x1f]
        %v575 = vsel %vm504, %v572, %v574
        %576 = vst [vmem:[%s508] sm:$0x1f] %v575
      $region48: #{down_forward.2} parent=39 // pred_fallthru
        _
      %v577 = vld [vmem:[#allocation2] sm:$0xf]
      %v578 = vld [vmem:[#allocation2 + $0x8] sm:$0xf]
      %v579 = vld [vmem:[%s3] sm:$0x3]
      %v580 = vld [vmem:[#allocation2] sm:$0x1f]
      %v581 = vld [vmem:[#allocation2 + $0x8] sm:$0x1f]
      %v584 = vunpack.c.l.b16 %v580
      %v585 = vunpack.c.h.b16 %v580
      %v586 = vunpack.c.l.b16 %v581
      %v587 = vunpack.c.h.b16 %v581
      %v588 = vpack.c.b16 %v584, %v584
      %v589 = vpack.c.b16 %v585, %v585
      %v590 = vpack.c.b16 %v586, %v586
      %v591 = vpack.c.b16 %v587, %v587
      %vm592 = vsmask.f32 3328
      %vm593 = vsmask.f32 7440
      %vm594 = vmor %vm592, %vm593
      %v596 = vshrl.u32 %v588, 16
      %v598 = vrot.slane %v596, 4
      %v599 = vshll.u32 %v588, 16
      %v601 = vrot.slane %v599, 5
      %v602 = vor.u32 %v598, %v601
      %v603 = vrot.slane %v602, 4
      %v605 = vshll.u32 %v589, 16
      %v607 = vrot.slane %v605, 5
      %v608 = vsel %vm594, %v603, %v607
      %v610 = vshrl.u32 %v590, 16
      %v612 = vrot.slane %v610, 4
      %v613 = vshll.u32 %v590, 16
      %v615 = vrot.slane %v613, 5
      %v616 = vor.u32 %v612, %v615
      %v617 = vrot.slane %v616, 4
      %v619 = vshll.u32 %v591, 16
      %v621 = vrot.slane %v619, 5
      %v622 = vsel %vm594, %v617, %v621
      %s623 = scalar_lea.vmem %s3, 2
      %v624 = vld [vmem:[%s623] sm:$0x3]
      %v625 = vunpack.c.l.b16 %v608
      %v626 = vunpack.c.l.b16 %v622
      %v627 = vpack.c.b16 %v626, %v625
      %vm628 = vcmask 31744
      %v630 = vsel %vm628, %v627, 0
      %vm632 = vcmask 1041408
      %v634 = vsel %vm632, %v624, 0
      %636 = vmatprep.subr.bf16.mxu0 0
      %637 = vmatpush1.bf16.msra.mxu0 %v634
      %638 = vmatprep.subr.bf16.mxu0 0
      %639 = vmatpush1.bf16.msra.mxu0 0
      %640 = vmatprep.subr.bf16.mxu0 0
      %641 = vmatpush1.bf16.msra.mxu0 0
      %642 = vmatprep.subr.bf16.mxu0 0
      %643 = vmatpush1.bf16.msra.mxu0 0
      %644 = vmatprep.subr.bf16.mxu0 0
      %645 = vmatpush1.bf16.msra.mxu0 0
      %646 = vmatprep.subr.bf16.mxu0 0
      %647 = vmatpush1.bf16.msra.mxu0 0
      %648 = vmatprep.subr.bf16.mxu0 0
      %649 = vmatpush1.bf16.msra.mxu0 0
      %650 = vmatprep.subr.bf16.mxu0 0
      %651 = vmatpush1.bf16.msra.mxu0 0
      %652 = vmatprep.subr.bf16.mxu0 0
      %653 = vmatpush1.bf16.msra.mxu0 0
      %654 = vmatprep.subr.bf16.mxu0 0
      %655 = vmatpush1.bf16.msra.mxu0 0
      %656 = vmatprep.subr.bf16.mxu0 0
      %657 = vmatpush1.bf16.msra.mxu0 0
      %658 = vmatprep.subr.bf16.mxu0 0
      %659 = vmatpush1.bf16.msra.mxu0 0
      %660 = vmatprep.subr.bf16.mxu0 0
      %661 = vmatpush1.bf16.msra.mxu0 0
      %662 = vmatprep.subr.bf16.mxu0 0
      %663 = vmatpush1.bf16.msra.mxu0 0
      %664 = vmatprep.subr.bf16.mxu0 0
      %665 = vmatpush1.bf16.msra.mxu0 0
      %666 = vmatprep.subr.bf16.mxu0 0
      %667 = vmatpush1.bf16.msra.mxu0 0
      %668 = vmatprep.mubr.bf16.mxu0 0
      %669 = vmatmul.mubr.bf16.gmra.mrb[0].mxu0 %v630
      %v670 = vpop.f32.mrb[0].mxu0
      %v671 = vadd.f32 0.0, %v670
      %v672 = vpop.f32.mrb[0].mxu0
      %v673 = vpop.f32.mrb[0].mxu0
      %v674 = vadd.f32 0.0, %v673
      %v675 = vpop.f32.mrb[0].mxu0
      %676 = vdwg.mxu0
      %v679 = vunpack.c.l.b16 %v577
      %v680 = vunpack.c.l.b16 %v578
      %v681 = vpack.c.b16 %v680, %v679
      %v683 = vsel %vm628, %v681, 0
      %v686 = vsel %vm632, %v579, 0
      %688 = vmatprep.subr.bf16.mxu0 0
      %689 = vmatpush1.bf16.msra.mxu0 %v686
      %690 = vmatprep.subr.bf16.mxu0 0
      %691 = vmatpush1.bf16.msra.mxu0 0
      %692 = vmatprep.subr.bf16.mxu0 0
      %693 = vmatpush1.bf16.msra.mxu0 0
      %694 = vmatprep.subr.bf16.mxu0 0
      %695 = vmatpush1.bf16.msra.mxu0 0
      %696 = vmatprep.subr.bf16.mxu0 0
      %697 = vmatpush1.bf16.msra.mxu0 0
      %698 = vmatprep.subr.bf16.mxu0 0
      %699 = vmatpush1.bf16.msra.mxu0 0
      %700 = vmatprep.subr.bf16.mxu0 0
      %701 = vmatpush1.bf16.msra.mxu0 0
      %702 = vmatprep.subr.bf16.mxu0 0
      %703 = vmatpush1.bf16.msra.mxu0 0
      %704 = vmatprep.subr.bf16.mxu0 0
      %705 = vmatpush1.bf16.msra.mxu0 0
      %706 = vmatprep.subr.bf16.mxu0 0
      %707 = vmatpush1.bf16.msra.mxu0 0
      %708 = vmatprep.subr.bf16.mxu0 0
      %709 = vmatpush1.bf16.msra.mxu0 0
      %710 = vmatprep.subr.bf16.mxu0 0
      %711 = vmatpush1.bf16.msra.mxu0 0
      %712 = vmatprep.subr.bf16.mxu0 0
      %713 = vmatpush1.bf16.msra.mxu0 0
      %714 = vmatprep.subr.bf16.mxu0 0
      %715 = vmatpush1.bf16.msra.mxu0 0
      %716 = vmatprep.subr.bf16.mxu0 0
      %717 = vmatpush1.bf16.msra.mxu0 0
      %718 = vmatprep.subr.bf16.mxu0 0
      %719 = vmatpush1.bf16.msra.mxu0 0
      %720 = vmatprep.mubr.bf16.mxu0 0
      %721 = vmatmul.mubr.bf16.gmra.mrb[0].mxu0 %v683
      %v722 = vpop.f32.mrb[0].mxu0
      %v723 = vadd.f32 %v671, %v722
      %v724 = vpop.f32.mrb[0].mxu0
      %v725 = vpop.f32.mrb[0].mxu0
      %v726 = vadd.f32 %v674, %v725
      %v727 = vpop.f32.mrb[0].mxu0
      %728 = vdwg.mxu0
      %v729 = vld [vmem:[#allocation2] sm:$0x1e]
      %v730 = vld [vmem:[#allocation2 + $0x8] sm:$0x1e]
      %v733 = vunpack.c.l.b16 %v729
      %v734 = vunpack.c.h.b16 %v729
      %v735 = vunpack.c.l.b16 %v730
      %v736 = vunpack.c.h.b16 %v730
      %v737 = vpack.c.b16 %v733, %v733
      %v738 = vpack.c.b16 %v734, %v734
      %v739 = vpack.c.b16 %v735, %v735
      %v740 = vpack.c.b16 %v736, %v736
      %vm741 = vcmask 1042432
      %vm742 = vcmask 1046532
      %vm743 = vmor %vm741, %vm742
      %v744 = vrot.slane %v737, 5
      %v745 = vrot.slane %v744, 4
      %v746 = vrot.slane %v738, 5
      %v747 = vsel %vm743, %v745, %v746
      %v748 = vrot.slane %v739, 5
      %v749 = vrot.slane %v748, 4
      %v750 = vrot.slane %v740, 5
      %v751 = vsel %vm743, %v749, %v750
      %s752 = scalar_lea.vmem %s3, 4
      %v753 = vld [vmem:[%s752] sm:$0x3]
      %v754 = vunpack.c.l.b16 %v747
      %v755 = vunpack.c.l.b16 %v751
      %v756 = vpack.c.b16 %v755, %v754
      %v758 = vsel %vm628, %v756, 0
      %v761 = vsel %vm632, %v753, 0
      %763 = vmatprep.subr.bf16.mxu0 0
      %764 = vmatpush1.bf16.msra.mxu0 %v761
      %765 = vmatprep.subr.bf16.mxu0 0
      %766 = vmatpush1.bf16.msra.mxu0 0
      %767 = vmatprep.subr.bf16.mxu0 0
      %768 = vmatpush1.bf16.msra.mxu0 0
      %769 = vmatprep.subr.bf16.mxu0 0
      %770 = vmatpush1.bf16.msra.mxu0 0
      %771 = vmatprep.subr.bf16.mxu0 0
      %772 = vmatpush1.bf16.msra.mxu0 0
      %773 = vmatprep.subr.bf16.mxu0 0
      %774 = vmatpush1.bf16.msra.mxu0 0
      %775 = vmatprep.subr.bf16.mxu0 0
      %776 = vmatpush1.bf16.msra.mxu0 0
      %777 = vmatprep.subr.bf16.mxu0 0
      %778 = vmatpush1.bf16.msra.mxu0 0
      %779 = vmatprep.subr.bf16.mxu0 0
      %780 = vmatpush1.bf16.msra.mxu0 0
      %781 = vmatprep.subr.bf16.mxu0 0
      %782 = vmatpush1.bf16.msra.mxu0 0
      %783 = vmatprep.subr.bf16.mxu0 0
      %784 = vmatpush1.bf16.msra.mxu0 0
      %785 = vmatprep.subr.bf16.mxu0 0
      %786 = vmatpush1.bf16.msra.mxu0 0
      %787 = vmatprep.subr.bf16.mxu0 0
      %788 = vmatpush1.bf16.msra.mxu0 0
      %789 = vmatprep.subr.bf16.mxu0 0
      %790 = vmatpush1.bf16.msra.mxu0 0
      %791 = vmatprep.subr.bf16.mxu0 0
      %792 = vmatpush1.bf16.msra.mxu0 0
      %793 = vmatprep.subr.bf16.mxu0 0
      %794 = vmatpush1.bf16.msra.mxu0 0
      %795 = vmatprep.mubr.bf16.mxu0 0
      %796 = vmatmul.mubr.bf16.gmra.mrb[0].mxu0 %v758
      %v797 = vpop.f32.mrb[0].mxu0
      %v798 = vadd.f32 0.0, %v797
      %v799 = vpop.f32.mrb[0].mxu0
      %v800 = vpop.f32.mrb[0].mxu0
      %v801 = vadd.f32 0.0, %v800
      %v802 = vpop.f32.mrb[0].mxu0
      %803 = vdwg.mxu0
      %v804 = vadd.f32 %v723, %v798
      %v805 = vadd.f32 %v726, %v801
      %v806 = vld [vmem:[%s534] sm:$0xf]
      %v807 = vld [vmem:[%s534 + $0x8] sm:$0xf]
      %s808 = scalar_lea.vmem %s3, 6
      %v809 = vld [vmem:[%s808] sm:$0x3]
      %v812 = vunpack.c.l.b16 %v806
      %v813 = vunpack.c.l.b16 %v807
      %v814 = vpack.c.b16 %v813, %v812
      %v816 = vsel %vm628, %v814, 0
      %v819 = vsel %vm632, %v809, 0
      %821 = vmatprep.subr.bf16.mxu0 0
      %822 = vmatpush1.bf16.msra.mxu0 %v819
      %823 = vmatprep.subr.bf16.mxu0 0
      %824 = vmatpush1.bf16.msra.mxu0 0
      %825 = vmatprep.subr.bf16.mxu0 0
      %826 = vmatpush1.bf16.msra.mxu0 0
      %827 = vmatprep.subr.bf16.mxu0 0
      %828 = vmatpush1.bf16.msra.mxu0 0
      %829 = vmatprep.subr.bf16.mxu0 0
      %830 = vmatpush1.bf16.msra.mxu0 0
      %831 = vmatprep.subr.bf16.mxu0 0
      %832 = vmatpush1.bf16.msra.mxu0 0
      %833 = vmatprep.subr.bf16.mxu0 0
      %834 = vmatpush1.bf16.msra.mxu0 0
      %835 = vmatprep.subr.bf16.mxu0 0
      %836 = vmatpush1.bf16.msra.mxu0 0
      %837 = vmatprep.subr.bf16.mxu0 0
      %838 = vmatpush1.bf16.msra.mxu0 0
      %839 = vmatprep.subr.bf16.mxu0 0
      %840 = vmatpush1.bf16.msra.mxu0 0
      %841 = vmatprep.subr.bf16.mxu0 0
      %842 = vmatpush1.bf16.msra.mxu0 0
      %843 = vmatprep.subr.bf16.mxu0 0
      %844 = vmatpush1.bf16.msra.mxu0 0
      %845 = vmatprep.subr.bf16.mxu0 0
      %846 = vmatpush1.bf16.msra.mxu0 0
      %847 = vmatprep.subr.bf16.mxu0 0
      %848 = vmatpush1.bf16.msra.mxu0 0
      %849 = vmatprep.subr.bf16.mxu0 0
      %850 = vmatpush1.bf16.msra.mxu0 0
      %851 = vmatprep.subr.bf16.mxu0 0
      %852 = vmatpush1.bf16.msra.mxu0 0
      %853 = vmatprep.mubr.bf16.mxu0 0
      %854 = vmatmul.mubr.bf16.gmra.mrb[0].mxu0 %v816
      %v855 = vpop.f32.mrb[0].mxu0
      %v856 = vadd.f32 0.0, %v855
      %v857 = vpop.f32.mrb[0].mxu0
      %v858 = vpop.f32.mrb[0].mxu0
      %v859 = vadd.f32 0.0, %v858
      %v860 = vpop.f32.mrb[0].mxu0
      %861 = vdwg.mxu0
      %v862 = vadd.f32 %v804, %v856
      %v863 = vadd.f32 %v805, %v859
      %v864 = vld [vmem:[%s534] sm:$0x1f]
      %v865 = vld [vmem:[%s534 + $0x8] sm:$0x1f]
      %v868 = vunpack.c.l.b16 %v864
      %v869 = vunpack.c.h.b16 %v864
      %v870 = vunpack.c.l.b16 %v865
      %v871 = vunpack.c.h.b16 %v865
      %v872 = vpack.c.b16 %v868, %v868
      %v873 = vpack.c.b16 %v869, %v869
      %v874 = vpack.c.b16 %v870, %v870
      %v875 = vpack.c.b16 %v871, %v871
      %v877 = vshrl.u32 %v872, 16
      %v879 = vrot.slane %v877, 4
      %v880 = vshll.u32 %v872, 16
      %v882 = vrot.slane %v880, 5
      %v883 = vor.u32 %v879, %v882
      %v884 = vrot.slane %v883, 4
      %v886 = vshll.u32 %v873, 16
      %v888 = vrot.slane %v886, 5
      %v889 = vsel %vm594, %v884, %v888
      %v891 = vshrl.u32 %v874, 16
      %v893 = vrot.slane %v891, 4
      %v894 = vshll.u32 %v874, 16
      %v896 = vrot.slane %v894, 5
      %v897 = vor.u32 %v893, %v896
      %v898 = vrot.slane %v897, 4
      %v900 = vshll.u32 %v875, 16
      %v902 = vrot.slane %v900, 5
      %v903 = vsel %vm594, %v898, %v902
      %s904 = scalar_lea.vmem %s3, 8
      %v905 = vld [vmem:[%s904] sm:$0x3]
      %v906 = vunpack.c.l.b16 %v889
      %v907 = vunpack.c.l.b16 %v903
      %v908 = vpack.c.b16 %v907, %v906
      %v910 = vsel %vm628, %v908, 0
      %v913 = vsel %vm632, %v905, 0
      %915 = vmatprep.subr.bf16.mxu0 0
      %916 = vmatpush1.bf16.msra.mxu0 %v913
      %917 = vmatprep.subr.bf16.mxu0 0
      %918 = vmatpush1.bf16.msra.mxu0 0
      %919 = vmatprep.subr.bf16.mxu0 0
      %920 = vmatpush1.bf16.msra.mxu0 0
      %921 = vmatprep.subr.bf16.mxu0 0
      %922 = vmatpush1.bf16.msra.mxu0 0
      %923 = vmatprep.subr.bf16.mxu0 0
      %924 = vmatpush1.bf16.msra.mxu0 0
      %925 = vmatprep.subr.bf16.mxu0 0
      %926 = vmatpush1.bf16.msra.mxu0 0
      %927 = vmatprep.subr.bf16.mxu0 0
      %928 = vmatpush1.bf16.msra.mxu0 0
      %929 = vmatprep.subr.bf16.mxu0 0
      %930 = vmatpush1.bf16.msra.mxu0 0
      %931 = vmatprep.subr.bf16.mxu0 0
      %932 = vmatpush1.bf16.msra.mxu0 0
      %933 = vmatprep.subr.bf16.mxu0 0
      %934 = vmatpush1.bf16.msra.mxu0 0
      %935 = vmatprep.subr.bf16.mxu0 0
      %936 = vmatpush1.bf16.msra.mxu0 0
      %937 = vmatprep.subr.bf16.mxu0 0
      %938 = vmatpush1.bf16.msra.mxu0 0
      %939 = vmatprep.subr.bf16.mxu0 0
      %940 = vmatpush1.bf16.msra.mxu0 0
      %941 = vmatprep.subr.bf16.mxu0 0
      %942 = vmatpush1.bf16.msra.mxu0 0
      %943 = vmatprep.subr.bf16.mxu0 0
      %944 = vmatpush1.bf16.msra.mxu0 0
      %945 = vmatprep.subr.bf16.mxu0 0
      %946 = vmatpush1.bf16.msra.mxu0 0
      %947 = vmatprep.mubr.bf16.mxu0 0
      %948 = vmatmul.mubr.bf16.gmra.mrb[0].mxu0 %v910
      %v949 = vpop.f32.mrb[0].mxu0
      %v950 = vadd.f32 0.0, %v949
      %v951 = vpop.f32.mrb[0].mxu0
      %v952 = vpop.f32.mrb[0].mxu0
      %v953 = vadd.f32 0.0, %v952
      %v954 = vpop.f32.mrb[0].mxu0
      %955 = vdwg.mxu0
      %v956 = vadd.f32 %v862, %v950
      %v957 = vadd.f32 %v863, %v953
      %v958 = vld [vmem:[%s534] sm:$0x1e]
      %v959 = vld [vmem:[%s534 + $0x8] sm:$0x1e]
      %v962 = vunpack.c.l.b16 %v958
      %v963 = vunpack.c.h.b16 %v958
      %v964 = vunpack.c.l.b16 %v959
      %v965 = vunpack.c.h.b16 %v959
      %v966 = vpack.c.b16 %v962, %v962
      %v967 = vpack.c.b16 %v963, %v963
      %v968 = vpack.c.b16 %v964, %v964
      %v969 = vpack.c.b16 %v965, %v965
      %v970 = vrot.slane %v966, 5
      %v971 = vrot.slane %v970, 4
      %v972 = vrot.slane %v967, 5
      %v973 = vsel %vm743, %v971, %v972
      %v974 = vrot.slane %v968, 5
      %v975 = vrot.slane %v974, 4
      %v976 = vrot.slane %v969, 5
      %v977 = vsel %vm743, %v975, %v976
      %s978 = scalar_lea.vmem %s3, 10
      %v979 = vld [vmem:[%s978] sm:$0x3]
      %v980 = vunpack.c.l.b16 %v973
      %v981 = vunpack.c.l.b16 %v977
      %v982 = vpack.c.b16 %v981, %v980
      %v984 = vsel %vm628, %v982, 0
      %v987 = vsel %vm632, %v979, 0
      %989 = vmatprep.subr.bf16.mxu0 0
      %990 = vmatpush1.bf16.msra.mxu0 %v987
      %991 = vmatprep.subr.bf16.mxu0 0
      %992 = vmatpush1.bf16.msra.mxu0 0
      %993 = vmatprep.subr.bf16.mxu0 0
      %994 = vmatpush1.bf16.msra.mxu0 0
      %995 = vmatprep.subr.bf16.mxu0 0
      %996 = vmatpush1.bf16.msra.mxu0 0
      %997 = vmatprep.subr.bf16.mxu0 0
      %998 = vmatpush1.bf16.msra.mxu0 0
      %999 = vmatprep.subr.bf16.mxu0 0
      %1000 = vmatpush1.bf16.msra.mxu0 0
      %1001 = vmatprep.subr.bf16.mxu0 0
      %1002 = vmatpush1.bf16.msra.mxu0 0
      %1003 = vmatprep.subr.bf16.mxu0 0
      %1004 = vmatpush1.bf16.msra.mxu0 0
      %1005 = vmatprep.subr.bf16.mxu0 0
      %1006 = vmatpush1.bf16.msra.mxu0 0
      %1007 = vmatprep.subr.bf16.mxu0 0
      %1008 = vmatpush1.bf16.msra.mxu0 0
      %1009 = vmatprep.subr.bf16.mxu0 0
      %1010 = vmatpush1.bf16.msra.mxu0 0
      %1011 = vmatprep.subr.bf16.mxu0 0
      %1012 = vmatpush1.bf16.msra.mxu0 0
      %1013 = vmatprep.subr.bf16.mxu0 0
      %1014 = vmatpush1.bf16.msra.mxu0 0
      %1015 = vmatprep.subr.bf16.mxu0 0
      %1016 = vmatpush1.bf16.msra.mxu0 0
      %1017 = vmatprep.subr.bf16.mxu0 0
      %1018 = vmatpush1.bf16.msra.mxu0 0
      %1019 = vmatprep.subr.bf16.mxu0 0
      %1020 = vmatpush1.bf16.msra.mxu0 0
      %1021 = vmatprep.mubr.bf16.mxu0 0
      %1022 = vmatmul.mubr.bf16.gmra.mrb[0].mxu0 %v984
      %v1023 = vpop.f32.mrb[0].mxu0
      %v1024 = vadd.f32 0.0, %v1023
      %v1025 = vpop.f32.mrb[0].mxu0
      %v1026 = vpop.f32.mrb[0].mxu0
      %v1027 = vadd.f32 0.0, %v1026
      %v1028 = vpop.f32.mrb[0].mxu0
      %1029 = vdwg.mxu0
      %v1030 = vadd.f32 %v956, %v1024
      %v1031 = vadd.f32 %v957, %v1027
      %s1032 = scalar_lea.vmem [#allocation2], 16
      %v1033 = vld [vmem:[%s1032] sm:$0xf]
      %v1034 = vld [vmem:[%s1032 + $0x8] sm:$0xf]
      %s1035 = scalar_lea.vmem %s3, 12
      %v1036 = vld [vmem:[%s1035] sm:$0x3]
      %v1039 = vunpack.c.l.b16 %v1033
      %v1040 = vunpack.c.l.b16 %v1034
      %v1041 = vpack.c.b16 %v1040, %v1039
      %v1043 = vsel %vm628, %v1041, 0
      %v1046 = vsel %vm632, %v1036, 0
      %1048 = vmatprep.subr.bf16.mxu0 0
      %1049 = vmatpush1.bf16.msra.mxu0 %v1046
      %1050 = vmatprep.subr.bf16.mxu0 0
      %1051 = vmatpush1.bf16.msra.mxu0 0
      %1052 = vmatprep.subr.bf16.mxu0 0
      %1053 = vmatpush1.bf16.msra.mxu0 0
      %1054 = vmatprep.subr.bf16.mxu0 0
      %1055 = vmatpush1.bf16.msra.mxu0 0
      %1056 = vmatprep.subr.bf16.mxu0 0
      %1057 = vmatpush1.bf16.msra.mxu0 0
      %1058 = vmatprep.subr.bf16.mxu0 0
      %1059 = vmatpush1.bf16.msra.mxu0 0
      %1060 = vmatprep.subr.bf16.mxu0 0
      %1061 = vmatpush1.bf16.msra.mxu0 0
      %1062 = vmatprep.subr.bf16.mxu0 0
      %1063 = vmatpush1.bf16.msra.mxu0 0
      %1064 = vmatprep.subr.bf16.mxu0 0
      %1065 = vmatpush1.bf16.msra.mxu0 0
      %1066 = vmatprep.subr.bf16.mxu0 0
      %1067 = vmatpush1.bf16.msra.mxu0 0
      %1068 = vmatprep.subr.bf16.mxu0 0
      %1069 = vmatpush1.bf16.msra.mxu0 0
      %1070 = vmatprep.subr.bf16.mxu0 0
      %1071 = vmatpush1.bf16.msra.mxu0 0
      %1072 = vmatprep.subr.bf16.mxu0 0
      %1073 = vmatpush1.bf16.msra.mxu0 0
      %1074 = vmatprep.subr.bf16.mxu0 0
      %1075 = vmatpush1.bf16.msra.mxu0 0
      %1076 = vmatprep.subr.bf16.mxu0 0
      %1077 = vmatpush1.bf16.msra.mxu0 0
      %1078 = vmatprep.subr.bf16.mxu0 0
      %1079 = vmatpush1.bf16.msra.mxu0 0
      %1080 = vmatprep.mubr.bf16.mxu0 0
      %1081 = vmatmul.mubr.bf16.gmra.mrb[0].mxu0 %v1043
      %v1082 = vpop.f32.mrb[0].mxu0
      %v1083 = vadd.f32 0.0, %v1082
      %v1084 = vpop.f32.mrb[0].mxu0
      %v1085 = vpop.f32.mrb[0].mxu0
      %v1086 = vadd.f32 0.0, %v1085
      %v1087 = vpop.f32.mrb[0].mxu0
      %1088 = vdwg.mxu0
      %v1089 = vadd.f32 %v1030, %v1083
      %v1090 = vadd.f32 %v1031, %v1086
      %v1091 = vld [vmem:[%s1032] sm:$0x1f]
      %v1092 = vld [vmem:[%s1032 + $0x8] sm:$0x1f]
      %v1095 = vunpack.c.l.b16 %v1091
      %v1096 = vunpack.c.h.b16 %v1091
      %v1097 = vunpack.c.l.b16 %v1092
      %v1098 = vunpack.c.h.b16 %v1092
      %v1099 = vpack.c.b16 %v1095, %v1095
      %v1100 = vpack.c.b16 %v1096, %v1096
      %v1101 = vpack.c.b16 %v1097, %v1097
      %v1102 = vpack.c.b16 %v1098, %v1098
      %v1104 = vshrl.u32 %v1099, 16
      %v1106 = vrot.slane %v1104, 4
      %v1107 = vshll.u32 %v1099, 16
      %v1109 = vrot.slane %v1107, 5
      %v1110 = vor.u32 %v1106, %v1109
      %v1111 = vrot.slane %v1110, 4
      %v1113 = vshll.u32 %v1100, 16
      %v1115 = vrot.slane %v1113, 5
      %v1116 = vsel %vm594, %v1111, %v1115
      %v1118 = vshrl.u32 %v1101, 16
      %v1120 = vrot.slane %v1118, 4
      %v1121 = vshll.u32 %v1101, 16
      %v1123 = vrot.slane %v1121, 5
      %v1124 = vor.u32 %v1120, %v1123
      %v1125 = vrot.slane %v1124, 4
      %v1127 = vshll.u32 %v1102, 16
      %v1129 = vrot.slane %v1127, 5
      %v1130 = vsel %vm594, %v1125, %v1129
      %s1131 = scalar_lea.vmem %s3, 14
      %v1132 = vld [vmem:[%s1131] sm:$0x3]
      %v1133 = vunpack.c.l.b16 %v1116
      %v1134 = vunpack.c.l.b16 %v1130
      %v1135 = vpack.c.b16 %v1134, %v1133
      %v1137 = vsel %vm628, %v1135, 0
      %v1140 = vsel %vm632, %v1132, 0
      %1142 = vmatprep.subr.bf16.mxu0 0
      %1143 = vmatpush1.bf16.msra.mxu0 %v1140
      %1144 = vmatprep.subr.bf16.mxu0 0
      %1145 = vmatpush1.bf16.msra.mxu0 0
      %1146 = vmatprep.subr.bf16.mxu0 0
      %1147 = vmatpush1.bf16.msra.mxu0 0
      %1148 = vmatprep.subr.bf16.mxu0 0
      %1149 = vmatpush1.bf16.msra.mxu0 0
      %1150 = vmatprep.subr.bf16.mxu0 0
      %1151 = vmatpush1.bf16.msra.mxu0 0
      %1152 = vmatprep.subr.bf16.mxu0 0
      %1153 = vmatpush1.bf16.msra.mxu0 0
      %1154 = vmatprep.subr.bf16.mxu0 0
      %1155 = vmatpush1.bf16.msra.mxu0 0
      %1156 = vmatprep.subr.bf16.mxu0 0
      %1157 = vmatpush1.bf16.msra.mxu0 0
      %1158 = vmatprep.subr.bf16.mxu0 0
      %1159 = vmatpush1.bf16.msra.mxu0 0
      %1160 = vmatprep.subr.bf16.mxu0 0
      %1161 = vmatpush1.bf16.msra.mxu0 0
      %1162 = vmatprep.subr.bf16.mxu0 0
      %1163 = vmatpush1.bf16.msra.mxu0 0
      %1164 = vmatprep.subr.bf16.mxu0 0
      %1165 = vmatpush1.bf16.msra.mxu0 0
      %1166 = vmatprep.subr.bf16.mxu0 0
      %1167 = vmatpush1.bf16.msra.mxu0 0
      %1168 = vmatprep.subr.bf16.mxu0 0
      %1169 = vmatpush1.bf16.msra.mxu0 0
      %1170 = vmatprep.subr.bf16.mxu0 0
      %1171 = vmatpush1.bf16.msra.mxu0 0
      %1172 = vmatprep.subr.bf16.mxu0 0
      %1173 = vmatpush1.bf16.msra.mxu0 0
      %1174 = vmatprep.mubr.bf16.mxu0 0
      %1175 = vmatmul.mubr.bf16.gmra.mrb[0].mxu0 %v1137
      %v1176 = vpop.f32.mrb[0].mxu0
      %v1177 = vadd.f32 0.0, %v1176
      %v1178 = vpop.f32.mrb[0].mxu0
      %v1179 = vpop.f32.mrb[0].mxu0
      %v1180 = vadd.f32 0.0, %v1179
      %v1181 = vpop.f32.mrb[0].mxu0
      %1182 = vdwg.mxu0
      %v1183 = vadd.f32 %v1089, %v1177
      %v1184 = vadd.f32 %v1090, %v1180
      %v1185 = vld [vmem:[%s1032] sm:$0x1e]
      %v1186 = vld [vmem:[%s1032 + $0x8] sm:$0x1e]
      %v1189 = vunpack.c.l.b16 %v1185
      %v1190 = vunpack.c.h.b16 %v1185
      %v1191 = vunpack.c.l.b16 %v1186
      %v1192 = vunpack.c.h.b16 %v1186
      %v1193 = vpack.c.b16 %v1189, %v1189
      %v1194 = vpack.c.b16 %v1190, %v1190
      %v1195 = vpack.c.b16 %v1191, %v1191
      %v1196 = vpack.c.b16 %v1192, %v1192
      %v1197 = vrot.slane %v1193, 5
      %v1198 = vrot.slane %v1197, 4
      %v1199 = vrot.slane %v1194, 5
      %v1200 = vsel %vm743, %v1198, %v1199
      %v1201 = vrot.slane %v1195, 5
      %v1202 = vrot.slane %v1201, 4
      %v1203 = vrot.slane %v1196, 5
      %v1204 = vsel %vm743, %v1202, %v1203
      %s1205 = scalar_lea.vmem %s3, 16
      %v1206 = vld [vmem:[%s1205] sm:$0x3]
      %v1207 = vunpack.c.l.b16 %v1200
      %v1208 = vunpack.c.l.b16 %v1204
      %v1209 = vpack.c.b16 %v1208, %v1207
      %v1211 = vsel %vm628, %v1209, 0
      %v1214 = vsel %vm632, %v1206, 0
      %1216 = vmatprep.subr.bf16.mxu0 0
      %1217 = vmatpush1.bf16.msra.mxu0 %v1214
      %1218 = vmatprep.subr.bf16.mxu0 0
      %1219 = vmatpush1.bf16.msra.mxu0 0
      %1220 = vmatprep.subr.bf16.mxu0 0
      %1221 = vmatpush1.bf16.msra.mxu0 0
      %1222 = vmatprep.subr.bf16.mxu0 0
      %1223 = vmatpush1.bf16.msra.mxu0 0
      %1224 = vmatprep.subr.bf16.mxu0 0
      %1225 = vmatpush1.bf16.msra.mxu0 0
      %1226 = vmatprep.subr.bf16.mxu0 0
      %1227 = vmatpush1.bf16.msra.mxu0 0
      %1228 = vmatprep.subr.bf16.mxu0 0
      %1229 = vmatpush1.bf16.msra.mxu0 0
      %1230 = vmatprep.subr.bf16.mxu0 0
      %1231 = vmatpush1.bf16.msra.mxu0 0
      %1232 = vmatprep.subr.bf16.mxu0 0
      %1233 = vmatpush1.bf16.msra.mxu0 0
      %1234 = vmatprep.subr.bf16.mxu0 0
      %1235 = vmatpush1.bf16.msra.mxu0 0
      %1236 = vmatprep.subr.bf16.mxu0 0
      %1237 = vmatpush1.bf16.msra.mxu0 0
      %1238 = vmatprep.subr.bf16.mxu0 0
      %1239 = vmatpush1.bf16.msra.mxu0 0
      %1240 = vmatprep.subr.bf16.mxu0 0
      %1241 = vmatpush1.bf16.msra.mxu0 0
      %1242 = vmatprep.subr.bf16.mxu0 0
      %1243 = vmatpush1.bf16.msra.mxu0 0
      %1244 = vmatprep.subr.bf16.mxu0 0
      %1245 = vmatpush1.bf16.msra.mxu0 0
      %1246 = vmatprep.subr.bf16.mxu0 0
      %1247 = vmatpush1.bf16.msra.mxu0 0
      %1248 = vmatprep.mubr.bf16.mxu0 0
      %1249 = vmatmul.mubr.bf16.gmra.mrb[0].mxu0 %v1211
      %v1250 = vpop.f32.mrb[0].mxu0
      %v1251 = vadd.f32 0.0, %v1250
      %v1252 = vpop.f32.mrb[0].mxu0
      %v1253 = vpop.f32.mrb[0].mxu0
      %v1254 = vadd.f32 0.0, %v1253
      %v1255 = vpop.f32.mrb[0].mxu0
      %1256 = vdwg.mxu0
      %v1257 = vadd.f32 %v1183, %v1251
      %v1258 = vadd.f32 %v1184, %v1254
      %v1259 = vld [vmem:[%s4] sm:$0x1]
      %v1261 = vlaneseq
      %v1262 = vshrl.u32 %v1261, 7
      %v1263 = vsub.s32 0, %v1262
      %v1264 = vrot.slane %v1259, %v1263
      %v1266 = vadd.f32 %v1257, %v1264
      %v1267 = vadd.f32 %v1258, %v1264
      %v1268 = vpack.c.bf16 %v1266, %v1266
      %v1269 = vpack.c.bf16 %v1267, %v1267
      %vm1270 = vcmask 60416
      %1271 = vst.msk [vmem:[%s429] sm:$0xf] %vm1270, %v1268
      %1272 = vst.msk [vmem:[%s429 + $0x4] sm:$0xf] %vm1270, %v1269
      %vm1273 = vcmask 64512
      %v1274 = vsel %vm1273, %v1266, 0.0
      %v1275 = vsel %vm1273, %v1267, 0.0
      %v1276 = vadd.f32 %v1274, %v1275
      %v1277 = vrot.slane %v1276, 4
      %v1278 = vadd.f32 %v1276, %v1277
      %v1279 = vrot.slane %v1278, 2
      %v1280 = vadd.f32 %v1278, %v1279
      %v1281 = vrot.slane %v1280, 1
      %v1282 = vadd.f32 %v1280, %v1281
      %vm1283 = vcmask 57344
      %1284 = vst.msk [vmem:[%s438] sm:$0x1] %vm1283, %v1282
      %v1285 = vmul.f32 %v1266, %v1266
      %v1286 = vmul.f32 %v1267, %v1267
      %v1287 = vsel %vm1273, %v1285, 0.0
      %v1288 = vsel %vm1273, %v1286, 0.0
      %v1289 = vadd.f32 %v1287, %v1288
      %v1290 = vrot.slane %v1289, 4
      %v1291 = vadd.f32 %v1289, %v1290
      %v1292 = vrot.slane %v1291, 2
      %v1293 = vadd.f32 %v1291, %v1292
      %v1294 = vrot.slane %v1293, 1
      %v1295 = vadd.f32 %v1293, %v1294
      %1296 = vst.msk [vmem:[%s438 + $0x1] sm:$0x1] %vm1283, %v1295
      %s1297 = smul.u32 2, %s23
      %p1298 = scmp.lt.s32.totalorder %s22, 1
      %s1299 = scalar_select %p1298, %s22, 1
      %p1300 = scmp.lt.s32.totalorder %s1297, 7
      %s1301 = scalar_select %p1300, %s1297, 7
      %s1302 = smul.addr %s1299, 8
      %s1303 = sadd.s32 %s1301, %s1302
      %s1304 = smul.addr %s1303, 4
      %s1305 = scalar_lea.vmem %s5, %s1304
      %p1306 = scmp.lt.s32.totalorder %s22, 1
      %s1307 = scalar_select %p1306, %s22, 1
      %p1308 = scmp.lt.s32.totalorder %s23, 3
      %s1309 = scalar_select %p1308, %s23, 3
      %s1310 = smul.addr %s1307, 4
      %s1311 = sadd.s32 %s1309, %s1310
      %s1312 = smul.addr %s1311, 2
      %s1313 = scalar_lea.vmem %s6, %s1312
      // Predicated region
      $region49: #{down_forward.2} parent=39 // pred_check
        %p1314 = pneg %p192
      $region50: #{down_forward.2} parent=39 // pred_check_branch
        %1316 = sbr.rel (%p1314) target = $region52
      $region51: #{down_forward.2} parent=39 // pred_region
        %s1317 = smul.u32 2, %s23
      $region52: #{down_forward.2} parent=39 // pred_fallthru
        _
      // Predicated region
      $region53: #{down_forward.2} parent=39 // pred_check
        %p1318 = pneg %p220
      $region54: #{down_forward.2} parent=39 // pred_check_branch
        %1320 = sbr.rel (%p1318) target = $region56
      $region55: #{down_forward.2} parent=39 // pred_region
        _
      $region56: #{down_forward.2} parent=39 // pred_fallthru
        _
    $region40: #{down_forward.2} parent=5 // pred_fallthru
      _
    %p1321 = scmp.le.s32.totalorder 2, %s13
    // Predicated region
    $region57: #{down_forward.2} parent=5 // pred_check
      %p1322 = pneg %p1321
    $region58: #{down_forward.2} parent=5 // pred_check_branch
      %1324 = sbr.rel (%p1322) target = $region60
    $region59: #{down_forward.2} parent=5 // pred_region
      %s1325 = ssub.s32 %s13, 2
      // Predicated region
      $region61: #{down_forward.2} parent=59 // pred_check
        %p1326 = pneg %p198
      $region62: #{down_forward.2} parent=59 // pred_check_branch
        %1328 = sbr.rel (%p1326) target = $region64
      $region63: #{down_forward.2} parent=59 // pred_region
        %s1329 = smul.u32 2, %s25
        %p1330 = scmp.lt.s32.totalorder %s24, 1
        %s1331 = scalar_select %p1330, %s24, 1
        %p1332 = scmp.lt.s32.totalorder %s1329, 7
        %s1333 = scalar_select %p1332, %s1329, 7
        %s1334 = smul.addr %s1331, 8
        %s1335 = sadd.s32 %s1333, %s1334
        %s1336 = smul.addr %s1335, 4
        %s1337 = scalar_lea.vmem %s5, %s1336
      $region64: #{down_forward.2} parent=59 // pred_fallthru
        _
      // Predicated region
      $region65: #{down_forward.2} parent=59 // pred_check
        %p1338 = pneg %p226
      $region66: #{down_forward.2} parent=59 // pred_check_branch
        %1340 = sbr.rel (%p1338) target = $region68
      $region67: #{down_forward.2} parent=59 // pred_region
        %p1341 = scmp.lt.s32.totalorder %s24, 1
        %s1342 = scalar_select %p1341, %s24, 1
        %p1343 = scmp.lt.s32.totalorder %s25, 3
        %s1344 = scalar_select %p1343, %s25, 3
        %s1345 = smul.addr %s1342, 4
        %s1346 = sadd.s32 %s1344, %s1345
        %s1347 = smul.addr %s1346, 2
        %s1348 = scalar_lea.vmem %s6, %s1347
      $region68: #{down_forward.2} parent=59 // pred_fallthru
        _
    $region60: #{down_forward.2} parent=5 // pred_fallthru
      _
  $region6: #{down_forward.2} parent=0 // loop_footer
    %s17 = sadd.s32 1, %s13
  $region7: #{down_forward.2} parent=0 // loop_footer_branch
    %12 = sbr.rel target = $region3
  $region8: #{down_forward.2} parent=0 // loop_exit
    _

// kernel: down_forward.3
$region0: #{down_forward.3}
  #allocation0 [shape = 'u32[]', space=smem, size = 0x4, offset = 0x4, fixed_abs, tag = 'smem constant byte address 0x4 - core index']
  #allocation1 [shape = 'u32[144,128]{1,0:T(1,128)}', space=vmem, size = 0x12000, scoped, tag = 'internal scratch']
  #allocation2 [shape = 'bf16[4,16,8]{2,1,0:T(16,128)(2,1)}', space=vmem, size = 0x4000, scoped, tag = 'scratch operand']
  %s0 = inlined_call_operand.vmem [shape: bf16[2,8,8,8], index: 0, kind: input, shape index: {}, may-alias: {0,1,2}]
  %s1 = inlined_call_operand.vmem [shape: bf16[2,8,8,8], index: 1, kind: input, shape index: {}, may-alias: {0,1,2}]
  %s2 = inlined_call_operand.vmem [shape: bf16[2,8,8,8], index: 2, kind: input, shape index: {}, may-alias: {0,1,2}]
  %s3 = inlined_call_operand.vmem [shape: f32[1,8], index: 3, kind: input, shape index: {}]
  %s4 = inlined_call_operand.vmem [shape: f32[1,8], index: 4, kind: input, shape index: {}]
  %s5 = inlined_call_operand.vmem [shape: bf16[9,8,8], index: 5, kind: input, shape index: {}]
  %s6 = inlined_call_operand.vmem [shape: f32[1,8], index: 6, kind: input, shape index: {}]
  %s7 = inlined_call_operand.vmem [shape: bf16[2,8,8,8], index: 7, kind: output, shape index: {0}]
  %s8 = inlined_call_operand.vmem [shape: f32[2,4,2,8], index: 8, kind: output, shape index: {1}]
  %9 = xla_tuple %s7, %s8
  %s10 = sld [smem:[#allocation0]]
  $region77: #{down_forward.3} parent=0
    _
  %s12 = ssub.s32 1, %s10
  %s13 = scalar_select 0, %s12, %s10
  loop: start=0, step=1, limit=10
  $region2: #{down_forward.3} parent=0 // loop_pre_header
    _
  $region3: #{down_forward.3} parent=0 // loop_header
    %s15 = sphi 0, %s19
    %p16 = scmp.ge.s32.totalorder %s15, 10
    %s22 = sphi 0, %s34
    %s23 = sphi 0, %s30
    %s24 = sphi 0, %s22
    %s25 = sphi 0, %s23
    %s26 = sphi 0, %s24
    %s27 = sphi 0, %s25
    %s39 = sphi 0, %s41
    %s42 = sphi 0, %s39
    %s43 = sphi 0, %s42
    %s59 = sphi 0, %s43
    %s75 = sphi 0, %s77
    %s78 = sphi 0, %s75
    %s79 = sphi 0, %s78
    %s95 = sphi 0, %s79
    %s111 = sphi 0, %s113
    %s114 = sphi 0, %s111
    %s115 = sphi 0, %s114
    %s131 = sphi 0, %s115
    %s135 = sphi 0, %s135
    %s137 = sphi 0, %s135
    %s138 = sphi 0, %s137
    %s152 = sphi 0, %s138
    %s156 = sphi 0, %s156
    %s158 = sphi 0, %s156
    %s159 = sphi 0, %s158
    %s173 = sphi 0, %s159
    %s177 = sphi 0, %s177
    %s179 = sphi 0, %s177
    %s180 = sphi 0, %s179
    %s194 = sphi 0, %s180
    %s198 = sphi 0, %s198
    %s200 = sphi 0, %s198
    %s201 = sphi 0, %s200
    %s215 = sphi 0, %s201
    %s223 = sphi 0, %s225
    %s226 = sphi 0, %s223
    %s227 = sphi 0, %s226
    %s243 = sphi 0, %s227
    %s251 = sphi 0, %s253
    %s254 = sphi 0, %s251
    %s255 = sphi 0, %s254
    %s271 = sphi 0, %s255
  $region4: #{down_forward.3} parent=0 // loop_header_branch
    %18 = sbr.rel (%p16) target = $region8
  $region5: #{down_forward.3} parent=0 // loop_body
    %s20 = ssub.s32 %s15, 1
    %s21 = ssub.s32 %s15, 2
    %s28 = sadd.s32 1, %s23
    %p29 = scmp.ge.s32.totalorder %s28, 4
    %s30 = scalar_select %p29, 0, %s28
    %s31 = sadd.s32 1, %s22
    %s32 = scalar_select %p29, %s31, %s22
    %p33 = scmp.ge.s32.totalorder %s32, 2
    %s34 = scalar_select %p33, 0, %s32
    %s35 = ssub.s32 %s22, %s34
    %s36 = ssub.s32 %s23, %s30
    %s37 = sor.u32 %s35, %s36
    %p38 = scmp.eq.s32.totalorder %s37, 0
    %s40 = sadd.s32 %s39, 1
    %s41 = scalar_select %p38, %s39, %s40
    %p44 = pneg %p38
    %p45 = scmp.eq.s32.totalorder %s15, 7
    %p46 = por %p44, %p45
    %p47 = scmp.ne.s32.totalorder %s39, %s42
    %p48 = scmp.eq.s32.totalorder %s15, 0
    %p49 = por %p47, %p48
    %p50 = scmp.ne.s32.totalorder %s39, %s42
    %p51 = scmp.eq.s32.totalorder %s20, 7
    %p52 = por %p50, %p51
    %p53 = scmp.ne.s32.totalorder %s42, %s43
    %p54 = scmp.eq.s32.totalorder %s20, 0
    %p55 = por %p53, %p54
    %p56 = scmp.ne.s32.totalorder %s42, %s43
    %p57 = scmp.eq.s32.totalorder %s21, 7
    %p58 = por %p56, %p57
    %p60 = scmp.ne.s32.totalorder %s43, %s59
    %p61 = scmp.eq.s32.totalorder %s21, 0
    %p62 = por %p60, %p61
    %s63 = smul.u32 %s23, 2
    %s64 = ssub.s32 %s63, 1
    %p65 = scmp.gt.s32.totalorder %s64, 0
    %s66 = scalar_select %p65, %s64, 0
    %s67 = smul.u32 %s30, 2
    %s68 = ssub.s32 %s67, 1
    %p69 = scmp.gt.s32.totalorder %s68, 0
    %s70 = scalar_select %p69, %s68, 0
    %s71 = ssub.s32 %s22, %s34
    %s72 = ssub.s32 %s66, %s70
    %s73 = sor.u32 %s71, %s72
    %p74 = scmp.eq.s32.totalorder %s73, 0
    %s76 = sadd.s32 %s75, 1
    %s77 = scalar_select %p74, %s75, %s76
    %p80 = pneg %p74
    %p81 = scmp.eq.s32.totalorder %s15, 7
    %p82 = por %p80, %p81
    %p83 = scmp.ne.s32.totalorder %s75, %s78
    %p84 = scmp.eq.s32.totalorder %s15, 0
    %p85 = por %p83, %p84
    %p86 = scmp.ne.s32.totalorder %s75, %s78
    %p87 = scmp.eq.s32.totalorder %s20, 7
    %p88 = por %p86, %p87
    %p89 = scmp.ne.s32.totalorder %s78, %s79
    %p90 = scmp.eq.s32.totalorder %s20, 0
    %p91 = por %p89, %p90
    %p92 = scmp.ne.s32.totalorder %s78, %s79
    %p93 = scmp.eq.s32.totalorder %s21, 7
    %p94 = por %p92, %p93
    %p96 = scmp.ne.s32.totalorder %s79, %s95
    %p97 = scmp.eq.s32.totalorder %s21, 0
    %p98 = por %p96, %p97
    %s99 = sadd.s32 %s23, 1
    %s100 = smul.u32 %s99, 2
    %p101 = scmp.lt.s32.totalorder %s100, 7
    %s102 = scalar_select %p101, %s100, 7
    %s103 = sadd.s32 %s30, 1
    %s104 = smul.u32 %s103, 2
    %p105 = scmp.lt.s32.totalorder %s104, 7
    %s106 = scalar_select %p105, %s104, 7
    %s107 = ssub.s32 %s22, %s34
    %s108 = ssub.s32 %s102, %s106
    %s109 = sor.u32 %s107, %s108
    %p110 = scmp.eq.s32.totalorder %s109, 0
    %s112 = sadd.s32 %s111, 1
    %s113 = scalar_select %p110, %s111, %s112
    %p116 = pneg %p110
    %p117 = scmp.eq.s32.totalorder %s15, 7
    %p118 = por %p116, %p117
    %p119 = scmp.ne.s32.totalorder %s111, %s114
    %p120 = scmp.eq.s32.totalorder %s15, 0
    %p121 = por %p119, %p120
    %p122 = scmp.ne.s32.totalorder %s111, %s114
    %p123 = scmp.eq.s32.totalorder %s20, 7
    %p124 = por %p122, %p123
    %p125 = scmp.ne.s32.totalorder %s114, %s115
    %p126 = scmp.eq.s32.totalorder %s20, 0
    %p127 = por %p125, %p126
    %p128 = scmp.ne.s32.totalorder %s114, %s115
    %p129 = scmp.eq.s32.totalorder %s21, 7
    %p130 = por %p128, %p129
    %p132 = scmp.ne.s32.totalorder %s115, %s131
    %p133 = scmp.eq.s32.totalorder %s21, 0
    %p134 = por %p132, %p133
    %s136 = sadd.s32 %s135, 1
    %p139 = scmp.eq.s32.totalorder %s15, 7
    %p140 = scmp.ne.s32.totalorder %s135, %s137
    %p141 = scmp.eq.s32.totalorder %s15, 0
    %p142 = por %p140, %p141
    %p143 = scmp.ne.s32.totalorder %s135, %s137
    %p144 = scmp.eq.s32.totalorder %s20, 7
    %p145 = por %p143, %p144
    %p146 = scmp.ne.s32.totalorder %s137, %s138
    %p147 = scmp.eq.s32.totalorder %s20, 0
    %p148 = por %p146, %p147
    %p149 = scmp.ne.s32.totalorder %s137, %s138
    %p150 = scmp.eq.s32.totalorder %s21, 7
    %p151 = por %p149, %p150
    %p153 = scmp.ne.s32.totalorder %s138, %s152
    %p154 = scmp.eq.s32.totalorder %s21, 0
    %p155 = por %p153, %p154
    %s157 = sadd.s32 %s156, 1
    %p160 = scmp.eq.s32.totalorder %s15, 7
    %p161 = scmp.ne.s32.totalorder %s156, %s158
    %p162 = scmp.eq.s32.totalorder %s15, 0
    %p163 = por %p161, %p162
    %p164 = scmp.ne.s32.totalorder %s156, %s158
    %p165 = scmp.eq.s32.totalorder %s20, 7
    %p166 = por %p164, %p165
    %p167 = scmp.ne.s32.totalorder %s158, %s159
    %p168 = scmp.eq.s32.totalorder %s20, 0
    %p169 = por %p167, %p168
    %p170 = scmp.ne.s32.totalorder %s158, %s159
    %p171 = scmp.eq.s32.totalorder %s21, 7
    %p172 = por %p170, %p171
    %p174 = scmp.ne.s32.totalorder %s159, %s173
    %p175 = scmp.eq.s32.totalorder %s21, 0
    %p176 = por %p174, %p175
    %s178 = sadd.s32 %s177, 1
    %p181 = scmp.eq.s32.totalorder %s15, 7
    %p182 = scmp.ne.s32.totalorder %s177, %s179
    %p183 = scmp.eq.s32.totalorder %s15, 0
    %p184 = por %p182, %p183
    %p185 = scmp.ne.s32.totalorder %s177, %s179
    %p186 = scmp.eq.s32.totalorder %s20, 7
    %p187 = por %p185, %p186
    %p188 = scmp.ne.s32.totalorder %s179, %s180
    %p189 = scmp.eq.s32.totalorder %s20, 0
    %p190 = por %p188, %p189
    %p191 = scmp.ne.s32.totalorder %s179, %s180
    %p192 = scmp.eq.s32.totalorder %s21, 7
    %p193 = por %p191, %p192
    %p195 = scmp.ne.s32.totalorder %s180, %s194
    %p196 = scmp.eq.s32.totalorder %s21, 0
    %p197 = por %p195, %p196
    %s199 = sadd.s32 %s198, 1
    %p202 = scmp.eq.s32.totalorder %s15, 7
    %p203 = scmp.ne.s32.totalorder %s198, %s200
    %p204 = scmp.eq.s32.totalorder %s15, 0
    %p205 = por %p203, %p204
    %p206 = scmp.ne.s32.totalorder %s198, %s200
    %p207 = scmp.eq.s32.totalorder %s20, 7
    %p208 = por %p206, %p207
    %p209 = scmp.ne.s32.totalorder %s200, %s201
    %p210 = scmp.eq.s32.totalorder %s20, 0
    %p211 = por %p209, %p210
    %p212 = scmp.ne.s32.totalorder %s200, %s201
    %p213 = scmp.eq.s32.totalorder %s21, 7
    %p214 = por %p212, %p213
    %p216 = scmp.ne.s32.totalorder %s201, %s215
    %p217 = scmp.eq.s32.totalorder %s21, 0
    %p218 = por %p216, %p217
    %s219 = ssub.s32 %s22, %s34
    %s220 = ssub.s32 %s23, %s30
    %s221 = sor.u32 %s219, %s220
    %p222 = scmp.eq.s32.totalorder %s221, 0
    %s224 = sadd.s32 %s223, 1
    %s225 = scalar_select %p222, %s223, %s224
    %p228 = pneg %p222
    %p229 = scmp.eq.s32.totalorder %s15, 7
    %p230 = por %p228, %p229
    %p231 = scmp.ne.s32.totalorder %s223, %s226
    %p232 = scmp.eq.s32.totalorder %s15, 0
    %p233 = por %p231, %p232
    %p234 = scmp.ne.s32.totalorder %s223, %s226
    %p235 = scmp.eq.s32.totalorder %s20, 7
    %p236 = por %p234, %p235
    %p237 = scmp.ne.s32.totalorder %s226, %s227
    %p238 = scmp.eq.s32.totalorder %s20, 0
    %p239 = por %p237, %p238
    %p240 = scmp.ne.s32.totalorder %s226, %s227
    %p241 = scmp.eq.s32.totalorder %s21, 7
    %p242 = por %p240, %p241
    %p244 = scmp.ne.s32.totalorder %s227, %s243
    %p245 = scmp.eq.s32.totalorder %s21, 0
    %p246 = por %p244, %p245
    %s247 = ssub.s32 %s22, %s34
    %s248 = ssub.s32 %s23, %s30
    %s249 = sor.u32 %s247, %s248
    %p250 = scmp.eq.s32.totalorder %s249, 0
    %s252 = sadd.s32 %s251, 1
    %s253 = scalar_select %p250, %s251, %s252
    %p256 = pneg %p250
    %p257 = scmp.eq.s32.totalorder %s15, 7
    %p258 = por %p256, %p257
    %p259 = scmp.ne.s32.totalorder %s251, %s254
    %p260 = scmp.eq.s32.totalorder %s15, 0
    %p261 = por %p259, %p260
    %p262 = scmp.ne.s32.totalorder %s251, %s254
    %p263 = scmp.eq.s32.totalorder %s20, 7
    %p264 = por %p262, %p263
    %p265 = scmp.ne.s32.totalorder %s254, %s255
    %p266 = scmp.eq.s32.totalorder %s20, 0
    %p267 = por %p265, %p266
    %p268 = scmp.ne.s32.totalorder %s254, %s255
    %p269 = scmp.eq.s32.totalorder %s21, 7
    %p270 = por %p268, %p269
    %p272 = scmp.ne.s32.totalorder %s255, %s271
    %p273 = scmp.eq.s32.totalorder %s21, 0
    %p274 = por %p272, %p273
    %p275 = scmp.le.s32.totalorder 1, %s15
    %p276 = scmp.lt.s32.totalorder %s15, 9
    %p277 = pnand %p275, %p276
    %p278 = pneg %p277
    // Predicated region
    $region9: #{down_forward.3} parent=5 // pred_check
      _
    $region10: #{down_forward.3} parent=5 // pred_check_branch
      %280 = sbr.rel (%p277) target = $region12
    $region11: #{down_forward.3} parent=5 // pred_region
      %s281 = ssub.s32 %s15, 1
      // Predicated region
      $region13: #{down_forward.3} parent=11 // pred_check
        %p282 = pneg %p148
      $region14: #{down_forward.3} parent=11 // pred_check_branch
        %284 = sbr.rel (%p282) target = $region16
      $region15: #{down_forward.3} parent=11 // pred_region
        _
      $region16: #{down_forward.3} parent=11 // pred_fallthru
        _
      // Predicated region
      $region17: #{down_forward.3} parent=11 // pred_check
        %p285 = pneg %p169
      $region18: #{down_forward.3} parent=11 // pred_check_branch
        %287 = sbr.rel (%p285) target = $region20
      $region19: #{down_forward.3} parent=11 // pred_region
        _
      $region20: #{down_forward.3} parent=11 // pred_fallthru
        _
      // Predicated region
      $region21: #{down_forward.3} parent=11 // pred_check
        %p288 = pneg %p190
      $region22: #{down_forward.3} parent=11 // pred_check_branch
        %290 = sbr.rel (%p288) target = $region24
      $region23: #{down_forward.3} parent=11 // pred_region
        _
      $region24: #{down_forward.3} parent=11 // pred_fallthru
        _
      // Predicated region
      $region25: #{down_forward.3} parent=11 // pred_check
        %p291 = pneg %p211
      $region26: #{down_forward.3} parent=11 // pred_check_branch
        %293 = sbr.rel (%p291) target = $region28
      $region27: #{down_forward.3} parent=11 // pred_region
        _
      $region28: #{down_forward.3} parent=11 // pred_fallthru
        _
    $region12: #{down_forward.3} parent=5 // pred_fallthru
      _
    %p294 = scmp.lt.s32.totalorder %s15, 8
    // Predicated region
    $region29: #{down_forward.3} parent=5 // pred_check
      %p295 = pneg %p294
    $region30: #{down_forward.3} parent=5 // pred_check_branch
      %297 = sbr.rel (%p295) target = $region32
    $region31: #{down_forward.3} parent=5 // pred_region
      // Predicated region
      $region33: #{down_forward.3} parent=31 // pred_check
        %p298 = pneg %p49
      $region34: #{down_forward.3} parent=31 // pred_check_branch
        %300 = sbr.rel (%p298) target = $region36
      $region35: #{down_forward.3} parent=31 // pred_region
        %s301 = smul.u32 2, %s23
        %p302 = scmp.lt.s32.totalorder %s22, 1
        %s303 = scalar_select %p302, %s22, 1
        %p304 = scmp.lt.s32.totalorder %s301, 7
        %s305 = scalar_select %p304, %s301, 7
        %s306 = smul.addr %s303, 8
        %s307 = sadd.s32 %s305, %s306
        %s308 = smul.addr %s307, 4
        %s309 = scalar_lea.vmem %s0, %s308
        %s310 = smul.u32 2, %s23
      $region36: #{down_forward.3} parent=31 // pred_fallthru
        _
      // Predicated region
      $region37: #{down_forward.3} parent=31 // pred_check
        %p311 = pneg %p85
      $region38: #{down_forward.3} parent=31 // pred_check_branch
        %313 = sbr.rel (%p311) target = $region40
      $region39: #{down_forward.3} parent=31 // pred_region
        %s314 = smul.u32 %s23, 2
        %s315 = ssub.s32 %s314, 1
        %p316 = scmp.gt.s32.totalorder %s315, 0
        %s317 = scalar_select %p316, %s315, 0
        %p318 = scmp.lt.s32.totalorder %s22, 1
        %s319 = scalar_select %p318, %s22, 1
        %p320 = scmp.lt.s32.totalorder %s317, 7
        %s321 = scalar_select %p320, %s317, 7
        %s322 = smul.addr %s319, 8
        %s323 = sadd.s32 %s321, %s322
        %s324 = smul.addr %s323, 4
        %s325 = scalar_lea.vmem %s1, %s324
        %s326 = smul.u32 %s23, 2
        %s327 = ssub.s32 %s326, 1
        %p328 = scmp.gt.s32.totalorder %s327, 0
        %s329 = scalar_select %p328, %s327, 0
      $region40: #{down_forward.3} parent=31 // pred_fallthru
        _
      // Predicated region
      $region41: #{down_forward.3} parent=31 // pred_check
        %p330 = pneg %p121
      $region42: #{down_forward.3} parent=31 // pred_check_branch
        %332 = sbr.rel (%p330) target = $region44
      $region43: #{down_forward.3} parent=31 // pred_region
        %s333 = sadd.s32 %s23, 1
        %s334 = smul.u32 %s333, 2
        %p335 = scmp.lt.s32.totalorder %s334, 7
        %s336 = scalar_select %p335, %s334, 7
        %p337 = scmp.lt.s32.totalorder %s22, 1
        %s338 = scalar_select %p337, %s22, 1
        %p339 = scmp.lt.s32.totalorder %s336, 7
        %s340 = scalar_select %p339, %s336, 7
        %s341 = smul.addr %s338, 8
        %s342 = sadd.s32 %s340, %s341
        %s343 = smul.addr %s342, 4
        %s344 = scalar_lea.vmem %s2, %s343
        %s345 = sadd.s32 %s23, 1
        %s346 = smul.u32 %s345, 2
        %p347 = scmp.lt.s32.totalorder %s346, 7
        %s348 = scalar_select %p347, %s346, 7
      $region44: #{down_forward.3} parent=31 // pred_fallthru
        _
    $region32: #{down_forward.3} parent=5 // pred_fallthru
      _
    %p349 = scmp.le.s32.totalorder 1, %s15
    %p350 = scmp.lt.s32.totalorder %s15, 9
    %p351 = pnand %p349, %p350
    %p352 = pneg %p351
    // Predicated region
    $region45: #{down_forward.3} parent=5 // pred_check
      _
    $region46: #{down_forward.3} parent=5 // pred_check_branch
      %354 = sbr.rel (%p351) target = $region48
    $region47: #{down_forward.3} parent=5 // pred_region
      %s355 = ssub.s32 %s15, 1
      %s356 = smul.u32 2, %s25
      %p357 = scmp.lt.s32.totalorder %s24, 1
      %s358 = scalar_select %p357, %s24, 1
      %p359 = scmp.lt.s32.totalorder %s356, 7
      %s360 = scalar_select %p359, %s356, 7
      %s361 = smul.addr %s358, 8
      %s362 = sadd.s32 %s360, %s361
      %s363 = smul.addr %s362, 4
      %s364 = scalar_lea.vmem %s0, %s363
      %p365 = pneg %p55
      %p366 = pneg %p52
      %s367 = smul.u32 %s25, 2
      %s368 = ssub.s32 %s367, 1
      %p369 = scmp.gt.s32.totalorder %s368, 0
      %s370 = scalar_select %p369, %s368, 0
      %p371 = scmp.lt.s32.totalorder %s24, 1
      %s372 = scalar_select %p371, %s24, 1
      %p373 = scmp.lt.s32.totalorder %s370, 7
      %s374 = scalar_select %p373, %s370, 7
      %s375 = smul.addr %s372, 8
      %s376 = sadd.s32 %s374, %s375
      %s377 = smul.addr %s376, 4
      %s378 = scalar_lea.vmem %s1, %s377
      %p379 = pneg %p91
      %p380 = pneg %p88
      %s381 = sadd.s32 %s25, 1
      %s382 = smul.u32 %s381, 2
      %p383 = scmp.lt.s32.totalorder %s382, 7
      %s384 = scalar_select %p383, %s382, 7
      %p385 = scmp.lt.s32.totalorder %s24, 1
      %s386 = scalar_select %p385, %s24, 1
      %p387 = scmp.lt.s32.totalorder %s384, 7
      %s388 = scalar_select %p387, %s384, 7
      %s389 = smul.addr %s386, 8
      %s390 = sadd.s32 %s388, %s389
      %s391 = smul.addr %s390, 4
      %s392 = scalar_lea.vmem %s2, %s391
      %p393 = pneg %p127
      %p394 = pneg %p124
      %p395 = pneg %p148
      %p396 = pneg %p145
      %p397 = pneg %p169
      %p398 = pneg %p166
      %p399 = pneg %p190
      %p400 = pneg %p187
      %p401 = pneg %p211
      %p402 = pneg %p208
      %p403 = pneg %p239
      %p404 = pneg %p236
      %s405 = smul.u32 2, %s25
      %p406 = scmp.lt.s32.totalorder %s24, 1
      %s407 = scalar_select %p406, %s24, 1
      %p408 = scmp.lt.s32.totalorder %s405, 7
      %s409 = scalar_select %p408, %s405, 7
      %s410 = smul.addr %s407, 8
      %s411 = sadd.s32 %s409, %s410
      %s412 = smul.addr %s411, 4
      %s413 = scalar_lea.vmem %s7, %s412
      %p414 = pneg %p267
      %p415 = pneg %p264
      %p416 = scmp.lt.s32.totalorder %s24, 1
      %s417 = scalar_select %p416, %s24, 1
      %p418 = scmp.lt.s32.totalorder %s25, 3
      %s419 = scalar_select %p418, %s25, 3
      %s420 = smul.addr %s417, 4
      %s421 = sadd.s32 %s419, %s420
      %s422 = smul.addr %s421, 2
      %s423 = scalar_lea.vmem %s8, %s422
      %s424 = smul.u32 2, %s25
      %p425 = scmp.lt.s32.totalorder %s24, 1
      %s426 = scalar_select %p425, %s24, 1
      %p427 = scmp.lt.s32.totalorder %s424, 7
      %s428 = scalar_select %p427, %s424, 7
      %s429 = smul.addr %s426, 8
      %s430 = sadd.s32 %s428, %s429
      %s431 = smul.addr %s430, 4
      %s432 = scalar_lea.vmem %s0, %s431
      %s433 = smul.u32 2, %s25
      %s434 = smul.u32 %s25, 2
      %s435 = ssub.s32 %s434, 1
      %p436 = scmp.gt.s32.totalorder %s435, 0
      %s437 = scalar_select %p436, %s435, 0
      %p438 = scmp.lt.s32.totalorder %s24, 1
      %s439 = scalar_select %p438, %s24, 1
      %p440 = scmp.lt.s32.totalorder %s437, 7
      %s441 = scalar_select %p440, %s437, 7
      %s442 = smul.addr %s439, 8
      %s443 = sadd.s32 %s441, %s442
      %s444 = smul.addr %s443, 4
      %s445 = scalar_lea.vmem %s1, %s444
      %s446 = smul.u32 %s25, 2
      %s447 = ssub.s32 %s446, 1
      %p448 = scmp.gt.s32.totalorder %s447, 0
      %s449 = scalar_select %p448, %s447, 0
      %s450 = sadd.s32 %s25, 1
      %s451 = smul.u32 %s450, 2
      %p452 = scmp.lt.s32.totalorder %s451, 7
      %s453 = scalar_select %p452, %s451, 7
      %p454 = scmp.lt.s32.totalorder %s24, 1
      %s455 = scalar_select %p454, %s24, 1
      %p456 = scmp.lt.s32.totalorder %s453, 7
      %s457 = scalar_select %p456, %s453, 7
      %s458 = smul.addr %s455, 8
      %s459 = sadd.s32 %s457, %s458
      %s460 = smul.addr %s459, 4
      %s461 = scalar_lea.vmem %s2, %s460
      %s462 = sadd.s32 %s25, 1
      %s463 = smul.u32 %s462, 2
      %p464 = scmp.lt.s32.totalorder %s463, 7
      %s465 = scalar_select %p464, %s463, 7
      %s466 = smul.u32 2, %s25
      %p467 = scmp.lt.s32.totalorder %s24, 1
      %s468 = scalar_select %p467, %s24, 1
      %p469 = scmp.lt.s32.totalorder %s466, 7
      %s470 = scalar_select %p469, %s466, 7
      %s471 = smul.addr %s468, 8
      %s472 = sadd.s32 %s470, %s471
      %s473 = smul.addr %s472, 4
      %s474 = scalar_lea.vmem %s7, %s473
      %s475 = smul.u32 2, %s25
      %p476 = scmp.lt.s32.totalorder %s24, 1
      %s477 = scalar_select %p476, %s24, 1
      %p478 = scmp.lt.s32.totalorder %s25, 3
      %s479 = scalar_select %p478, %s25, 3
      %s480 = smul.addr %s477, 4
      %s481 = sadd.s32 %s479, %s480
      %s482 = smul.addr %s481, 2
      %s483 = scalar_lea.vmem %s8, %s482
      %v485 = vld [vmem:[%s3] sm:$0x1]
      %v486 = vld [vmem:[%s4] sm:$0x1]
      %v487 = vld [vmem:[%s432] sm:$0xf]
      %v488 = vld [vmem:[%s432 + $0x4] sm:$0xf]
      %v489 = vunpack.c.l.bf16 %v487
      %v490 = vunpack.c.l.bf16 %v488
      %v492 = vlaneseq
      %v493 = vshrl.u32 %v492, 7
      %v494 = vsub.s32 0, %v493
      %v495 = vrot.slane %v485, %v494
      %v497 = vmul.f32 %v489, %v495
      %v498 = vmul.f32 %v490, %v495
      %v500 = vlaneseq
      %v501 = vshrl.u32 %v500, 7
      %v502 = vsub.s32 0, %v501
      %v503 = vrot.slane %v486, %v502
      %v505 = vadd.f32 %v497, %v503
      %v506 = vadd.f32 %v498, %v503
      %v507 = vmax.f32 %v505, 0.0
      %v508 = vmax.f32 %v506, 0.0
      %v509 = vpack.c.bf16 %v507, %v507
      %v510 = vpack.c.bf16 %v508, %v508
      %v511 = vld [vmem:[%s445] sm:$0xf]
      %v512 = vunpack.c.l.bf16 %v511
      %v513 = vmul.f32 %v512, %v495
      %v514 = vadd.f32 %v513, %v503
      %v515 = vmax.f32 %v514, 0.0
      %v516 = vpack.c.bf16 %v515, %v515
      %v517 = vld [vmem:[%s461] sm:$0xf]
      %v518 = vunpack.c.l.bf16 %v517
      %v519 = vmul.f32 %v518, %v495
      %v520 = vadd.f32 %v519, %v503
      %v521 = vmax.f32 %v520, 0.0
      %v522 = vpack.c.bf16 %v521, %v521
      %vm523 = vcmask 57344
      %vm524 = vsmask.f32 256
      %vm525 = vmand %vm523, %vm524
      %v526 = vld [vmem:[#allocation2] sm:$0x1]
      %v527 = vsel %vm525, 0, %v526
      %528 = vst [vmem:[#allocation2] sm:$0x1] %v527
      %v529 = vld [vmem:[#allocation2 + $0x8] sm:$0x1]
      %v530 = vsel %vm525, 0, %v529
      %531 = vst [vmem:[#allocation2 + $0x8] sm:$0x1] %v530
      %v532 = vld [vmem:[#allocation2 + $0x10] sm:$0x1]
      %v533 = vsel %vm525, 0, %v532
      %534 = vst [vmem:[#allocation2 + $0x10] sm:$0x1] %v533
      %v535 = vld [vmem:[#allocation2 + $0x18] sm:$0x1]
      %v536 = vsel %vm525, 0, %v535
      %537 = vst [vmem:[#allocation2 + $0x18] sm:$0x1] %v536
      %vm538 = vcmask 61444
      %vm539 = vsmask.f32 7954
      %vm540 = vmand %vm538, %vm539
      %v541 = vld [vmem:[#allocation2] sm:$0x10]
      %v542 = vsel %vm540, 0, %v541
      %543 = vst [vmem:[#allocation2] sm:$0x10] %v542
      %v544 = vld [vmem:[#allocation2 + $0x8] sm:$0x10]
      %v545 = vsel %vm540, 0, %v544
      %546 = vst [vmem:[#allocation2 + $0x8] sm:$0x10] %v545
      %v547 = vld [vmem:[#allocation2 + $0x10] sm:$0x10]
      %v548 = vsel %vm540, 0, %v547
      %549 = vst [vmem:[#allocation2 + $0x10] sm:$0x10] %v548
      %v550 = vld [vmem:[#allocation2 + $0x18] sm:$0x10]
      %v551 = vsel %vm540, 0, %v550
      %552 = vst [vmem:[#allocation2 + $0x18] sm:$0x10] %v551
      %vm553 = vcmask 61440
      %vm554 = vsmask.f32 4354
      %vm555 = vmand %vm553, %vm554
      %v556 = vld [vmem:[#allocation2] sm:$0x1f]
      %v557 = vsel %vm555, 0, %v556
      %558 = vst [vmem:[#allocation2] sm:$0x1f] %v557
      %s559 = scalar_lea.vmem [#allocation2], 24
      %v560 = vld [vmem:[%s559] sm:$0x1f]
      %v561 = vsel %vm555, 0, %v560
      %562 = vst [vmem:[%s559] sm:$0x1f] %v561
      %v564 = vshrl.u32 %v509, 16
      %v566 = vrot.slane %v564, 7
      %v567 = vshll.u32 %v509, 16
      %v569 = vor.u32 %v566, %v567
      %v571 = vshrl.u32 %v510, 16
      %v573 = vrot.slane %v571, 7
      %v574 = vshll.u32 %v510, 16
      %v576 = vor.u32 %v573, %v574
      %s579 = scalar_lea.vmem [#allocation2], 8
      %v580 = vld [vmem:[%s579] sm:$0x1f]
      %v581 = vsel %vm555, %v569, %v580
      %582 = vst [vmem:[%s579] sm:$0x1f] %v581
      %v583 = vld [vmem:[%s579 + $0x8] sm:$0x1f]
      %v584 = vsel %vm555, %v576, %v583
      %585 = vst [vmem:[%s579 + $0x8] sm:$0x1f] %v584
      %p586 = scmp.gt.s32.totalorder %s25, 0
      // Predicated region
      $region49: #{down_forward.3} parent=47 // pred_check
        %p587 = pneg %p586
      $region50: #{down_forward.3} parent=47 // pred_check_branch
        %589 = sbr.rel (%p587) target = $region52
      $region51: #{down_forward.3} parent=47 // pred_region
        %v591 = vshrl.u32 %v516, 16
        %v593 = vrot.slane %v591, 7
        %v594 = vshll.u32 %v516, 16
        %v596 = vor.u32 %v593, %v594
        %v598 = vld [vmem:[#allocation2] sm:$0x1f]
        %v599 = vsel %vm555, %v596, %v598
        %600 = vst [vmem:[#allocation2] sm:$0x1f] %v599
      $region52: #{down_forward.3} parent=47 // pred_fallthru
        _
      %p601 = scmp.lt.s32.totalorder %s25, 3
      // Predicated region
      $region53: #{down_forward.3} parent=47 // pred_check
        %p602 = pneg %p601
      $region54: #{down_forward.3} parent=47 // pred_check_branch
        %604 = sbr.rel (%p602) target = $region56
      $region55: #{down_forward.3} parent=47 // pred_region
        %v606 = vshrl.u32 %v522, 16
        %v608 = vrot.slane %v606, 7
        %v609 = vshll.u32 %v522, 16
        %v611 = vor.u32 %v608, %v609
        %v613 = vld [vmem:[%s559] sm:$0x1f]
        %v614 = vsel %vm555, %v611, %v613
        %615 = vst [vmem:[%s559] sm:$0x1f] %v614
      $region56: #{down_forward.3} parent=47 // pred_fallthru
        _
      %v616 = vld [vmem:[#allocation2] sm:$0xf]
      %v617 = vld [vmem:[#allocation2 + $0x8] sm:$0xf]
      %v618 = vld [vmem:[%s5] sm:$0xf]
      %v619 = vld [vmem:[#allocation2] sm:$0x1f]
      %v620 = vld [vmem:[#allocation2 + $0x8] sm:$0x1f]
      %v623 = vunpack.c.l.b16 %v619
      %v624 = vunpack.c.h.b16 %v619
      %v625 = vunpack.c.l.b16 %v620
      %v626 = vunpack.c.h.b16 %v620
      %v627 = vpack.c.b16 %v623, %v623
      %v628 = vpack.c.b16 %v624, %v624
      %v629 = vpack.c.b16 %v625, %v625
      %v630 = vpack.c.b16 %v626, %v626
      %vm631 = vsmask.f32 3328
      %vm632 = vsmask.f32 7440
      %vm633 = vmor %vm631, %vm632
      %v635 = vshrl.u32 %v627, 16
      %v637 = vrot.slane %v635, 4
      %v638 = vshll.u32 %v627, 16
      %v640 = vrot.slane %v638, 5
      %v641 = vor.u32 %v637, %v640
      %v642 = vrot.slane %v641, 4
      %v644 = vshll.u32 %v628, 16
      %v646 = vrot.slane %v644, 5
      %v647 = vsel %vm633, %v642, %v646
      %v649 = vshrl.u32 %v629, 16
      %v651 = vrot.slane %v649, 4
      %v652 = vshll.u32 %v629, 16
      %v654 = vrot.slane %v652, 5
      %v655 = vor.u32 %v651, %v654
      %v656 = vrot.slane %v655, 4
      %v658 = vshll.u32 %v630, 16
      %v660 = vrot.slane %v658, 5
      %v661 = vsel %vm633, %v656, %v660
      %s662 = scalar_lea.vmem %s5, 4
      %v663 = vld [vmem:[%s662] sm:$0xf]
      %v664 = vunpack.c.l.b16 %v647
      %v665 = vunpack.c.l.b16 %v661
      %v666 = vpack.c.b16 %v665, %v664
      %vm667 = vcmask 64512
      %v669 = vsel %vm667, %v666, 0
      %vm671 = vcmask 1043456
      %v673 = vsel %vm671, %v663, 0
      %675 = vmatprep.subr.bf16.mxu0 0
      %676 = vmatpush1.bf16.msra.mxu0 %v673
      %677 = vmatprep.subr.bf16.mxu0 0
      %678 = vmatpush1.bf16.msra.mxu0 0
      %679 = vmatprep.subr.bf16.mxu0 0
      %680 = vmatpush1.bf16.msra.mxu0 0
      %681 = vmatprep.subr.bf16.mxu0 0
      %682 = vmatpush1.bf16.msra.mxu0 0
      %683 = vmatprep.subr.bf16.mxu0 0
      %684 = vmatpush1.bf16.msra.mxu0 0
      %685 = vmatprep.subr.bf16.mxu0 0
      %686 = vmatpush1.bf16.msra.mxu0 0
      %687 = vmatprep.subr.bf16.mxu0 0
      %688 = vmatpush1.bf16.msra.mxu0 0
      %689 = vmatprep.subr.bf16.mxu0 0
      %690 = vmatpush1.bf16.msra.mxu0 0
      %691 = vmatprep.subr.bf16.mxu0 0
      %692 = vmatpush1.bf16.msra.mxu0 0
      %693 = vmatprep.subr.bf16.mxu0 0
      %694 = vmatpush1.bf16.msra.mxu0 0
      %695 = vmatprep.subr.bf16.mxu0 0
      %696 = vmatpush1.bf16.msra.mxu0 0
      %697 = vmatprep.subr.bf16.mxu0 0
      %698 = vmatpush1.bf16.msra.mxu0 0
      %699 = vmatprep.subr.bf16.mxu0 0
      %700 = vmatpush1.bf16.msra.mxu0 0
      %701 = vmatprep.subr.bf16.mxu0 0
      %702 = vmatpush1.bf16.msra.mxu0 0
      %703 = vmatprep.subr.bf16.mxu0 0
      %704 = vmatpush1.bf16.msra.mxu0 0
      %705 = vmatprep.subr.bf16.mxu0 0
      %706 = vmatpush1.bf16.msra.mxu0 0
      %707 = vmatprep.mubr.bf16.mxu0 0
      %708 = vmatmul.mubr.bf16.gmra.mrb[0].mxu0 %v669
      %v709 = vpop.f32.mrb[0].mxu0
      %v710 = vadd.f32 0.0, %v709
      %v711 = vpop.f32.mrb[0].mxu0
      %v712 = vpop.f32.mrb[0].mxu0
      %v713 = vadd.f32 0.0, %v712
      %v714 = vpop.f32.mrb[0].mxu0
      %715 = vdwg.mxu0
      %v718 = vunpack.c.l.b16 %v616
      %v719 = vunpack.c.l.b16 %v617
      %v720 = vpack.c.b16 %v719, %v718
      %v722 = vsel %vm667, %v720, 0
      %v725 = vsel %vm671, %v618, 0
      %727 = vmatprep.subr.bf16.mxu0 0
      %728 = vmatpush1.bf16.msra.mxu0 %v725
      %729 = vmatprep.subr.bf16.mxu0 0
      %730 = vmatpush1.bf16.msra.mxu0 0
      %731 = vmatprep.subr.bf16.mxu0 0
      %732 = vmatpush1.bf16.msra.mxu0 0
      %733 = vmatprep.subr.bf16.mxu0 0
      %734 = vmatpush1.bf16.msra.mxu0 0
      %735 = vmatprep.subr.bf16.mxu0 0
      %736 = vmatpush1.bf16.msra.mxu0 0
      %737 = vmatprep.subr.bf16.mxu0 0
      %738 = vmatpush1.bf16.msra.mxu0 0
      %739 = vmatprep.subr.bf16.mxu0 0
      %740 = vmatpush1.bf16.msra.mxu0 0
      %741 = vmatprep.subr.bf16.mxu0 0
      %742 = vmatpush1.bf16.msra.mxu0 0
      %743 = vmatprep.subr.bf16.mxu0 0
      %744 = vmatpush1.bf16.msra.mxu0 0
      %745 = vmatprep.subr.bf16.mxu0 0
      %746 = vmatpush1.bf16.msra.mxu0 0
      %747 = vmatprep.subr.bf16.mxu0 0
      %748 = vmatpush1.bf16.msra.mxu0 0
      %749 = vmatprep.subr.bf16.mxu0 0
      %750 = vmatpush1.bf16.msra.mxu0 0
      %751 = vmatprep.subr.bf16.mxu0 0
      %752 = vmatpush1.bf16.msra.mxu0 0
      %753 = vmatprep.subr.bf16.mxu0 0
      %754 = vmatpush1.bf16.msra.mxu0 0
      %755 = vmatprep.subr.bf16.mxu0 0
      %756 = vmatpush1.bf16.msra.mxu0 0
      %757 = vmatprep.subr.bf16.mxu0 0
      %758 = vmatpush1.bf16.msra.mxu0 0
      %759 = vmatprep.mubr.bf16.mxu0 0
      %760 = vmatmul.mubr.bf16.gmra.mrb[0].mxu0 %v722
      %v761 = vpop.f32.mrb[0].mxu0
      %v762 = vadd.f32 %v710, %v761
      %v763 = vpop.f32.mrb[0].mxu0
      %v764 = vpop.f32.mrb[0].mxu0
      %v765 = vadd.f32 %v713, %v764
      %v766 = vpop.f32.mrb[0].mxu0
      %767 = vdwg.mxu0
      %v768 = vld [vmem:[#allocation2] sm:$0x1e]
      %v769 = vld [vmem:[#allocation2 + $0x8] sm:$0x1e]
      %v772 = vunpack.c.l.b16 %v768
      %v773 = vunpack.c.h.b16 %v768
      %v774 = vunpack.c.l.b16 %v769
      %v775 = vunpack.c.h.b16 %v769
      %v776 = vpack.c.b16 %v772, %v772
      %v777 = vpack.c.b16 %v773, %v773
      %v778 = vpack.c.b16 %v774, %v774
      %v779 = vpack.c.b16 %v775, %v775
      %vm780 = vcmask 1042432
      %vm781 = vcmask 1046532
      %vm782 = vmor %vm780, %vm781
      %v783 = vrot.slane %v776, 5
      %v784 = vrot.slane %v783, 4
      %v785 = vrot.slane %v777, 5
      %v786 = vsel %vm782, %v784, %v785
      %v787 = vrot.slane %v778, 5
      %v788 = vrot.slane %v787, 4
      %v789 = vrot.slane %v779, 5
      %v790 = vsel %vm782, %v788, %v789
      %s791 = scalar_lea.vmem %s5, 8
      %v792 = vld [vmem:[%s791] sm:$0xf]
      %v793 = vunpack.c.l.b16 %v786
      %v794 = vunpack.c.l.b16 %v790
      %v795 = vpack.c.b16 %v794, %v793
      %v797 = vsel %vm667, %v795, 0
      %v800 = vsel %vm671, %v792, 0
      %802 = vmatprep.subr.bf16.mxu0 0
      %803 = vmatpush1.bf16.msra.mxu0 %v800
      %804 = vmatprep.subr.bf16.mxu0 0
      %805 = vmatpush1.bf16.msra.mxu0 0
      %806 = vmatprep.subr.bf16.mxu0 0
      %807 = vmatpush1.bf16.msra.mxu0 0
      %808 = vmatprep.subr.bf16.mxu0 0
      %809 = vmatpush1.bf16.msra.mxu0 0
      %810 = vmatprep.subr.bf16.mxu0 0
      %811 = vmatpush1.bf16.msra.mxu0 0
      %812 = vmatprep.subr.bf16.mxu0 0
      %813 = vmatpush1.bf16.msra.mxu0 0
      %814 = vmatprep.subr.bf16.mxu0 0
      %815 = vmatpush1.bf16.msra.mxu0 0
      %816 = vmatprep.subr.bf16.mxu0 0
      %817 = vmatpush1.bf16.msra.mxu0 0
      %818 = vmatprep.subr.bf16.mxu0 0
      %819 = vmatpush1.bf16.msra.mxu0 0
      %820 = vmatprep.subr.bf16.mxu0 0
      %821 = vmatpush1.bf16.msra.mxu0 0
      %822 = vmatprep.subr.bf16.mxu0 0
      %823 = vmatpush1.bf16.msra.mxu0 0
      %824 = vmatprep.subr.bf16.mxu0 0
      %825 = vmatpush1.bf16.msra.mxu0 0
      %826 = vmatprep.subr.bf16.mxu0 0
      %827 = vmatpush1.bf16.msra.mxu0 0
      %828 = vmatprep.subr.bf16.mxu0 0
      %829 = vmatpush1.bf16.msra.mxu0 0
      %830 = vmatprep.subr.bf16.mxu0 0
      %831 = vmatpush1.bf16.msra.mxu0 0
      %832 = vmatprep.subr.bf16.mxu0 0
      %833 = vmatpush1.bf16.msra.mxu0 0
      %834 = vmatprep.mubr.bf16.mxu0 0
      %835 = vmatmul.mubr.bf16.gmra.mrb[0].mxu0 %v797
      %v836 = vpop.f32.mrb[0].mxu0
      %v837 = vadd.f32 0.0, %v836
      %v838 = vpop.f32.mrb[0].mxu0
      %v839 = vpop.f32.mrb[0].mxu0
      %v840 = vadd.f32 0.0, %v839
      %v841 = vpop.f32.mrb[0].mxu0
      %842 = vdwg.mxu0
      %v843 = vadd.f32 %v762, %v837
      %v844 = vadd.f32 %v765, %v840
      %v845 = vld [vmem:[%s579] sm:$0xf]
      %v846 = vld [vmem:[%s579 + $0x8] sm:$0xf]
      %s847 = scalar_lea.vmem %s5, 12
      %v848 = vld [vmem:[%s847] sm:$0xf]
      %v851 = vunpack.c.l.b16 %v845
      %v852 = vunpack.c.l.b16 %v846
      %v853 = vpack.c.b16 %v852, %v851
      %v855 = vsel %vm667, %v853, 0
      %v858 = vsel %vm671, %v848, 0
      %860 = vmatprep.subr.bf16.mxu0 0
      %861 = vmatpush1.bf16.msra.mxu0 %v858
      %862 = vmatprep.subr.bf16.mxu0 0
      %863 = vmatpush1.bf16.msra.mxu0 0
      %864 = vmatprep.subr.bf16.mxu0 0
      %865 = vmatpush1.bf16.msra.mxu0 0
      %866 = vmatprep.subr.bf16.mxu0 0
      %867 = vmatpush1.bf16.msra.mxu0 0
      %868 = vmatprep.subr.bf16.mxu0 0
      %869 = vmatpush1.bf16.msra.mxu0 0
      %870 = vmatprep.subr.bf16.mxu0 0
      %871 = vmatpush1.bf16.msra.mxu0 0
      %872 = vmatprep.subr.bf16.mxu0 0
      %873 = vmatpush1.bf16.msra.mxu0 0
      %874 = vmatprep.subr.bf16.mxu0 0
      %875 = vmatpush1.bf16.msra.mxu0 0
      %876 = vmatprep.subr.bf16.mxu0 0
      %877 = vmatpush1.bf16.msra.mxu0 0
      %878 = vmatprep.subr.bf16.mxu0 0
      %879 = vmatpush1.bf16.msra.mxu0 0
      %880 = vmatprep.subr.bf16.mxu0 0
      %881 = vmatpush1.bf16.msra.mxu0 0
      %882 = vmatprep.subr.bf16.mxu0 0
      %883 = vmatpush1.bf16.msra.mxu0 0
      %884 = vmatprep.subr.bf16.mxu0 0
      %885 = vmatpush1.bf16.msra.mxu0 0
      %886 = vmatprep.subr.bf16.mxu0 0
      %887 = vmatpush1.bf16.msra.mxu0 0
      %888 = vmatprep.subr.bf16.mxu0 0
      %889 = vmatpush1.bf16.msra.mxu0 0
      %890 = vmatprep.subr.bf16.mxu0 0
      %891 = vmatpush1.bf16.msra.mxu0 0
      %892 = vmatprep.mubr.bf16.mxu0 0
      %893 = vmatmul.mubr.bf16.gmra.mrb[0].mxu0 %v855
      %v894 = vpop.f32.mrb[0].mxu0
      %v895 = vadd.f32 0.0, %v894
      %v896 = vpop.f32.mrb[0].mxu0
      %v897 = vpop.f32.mrb[0].mxu0
      %v898 = vadd.f32 0.0, %v897
      %v899 = vpop.f32.mrb[0].mxu0
      %900 = vdwg.mxu0
      %v901 = vadd.f32 %v843, %v895
      %v902 = vadd.f32 %v844, %v898
      %v903 = vld [vmem:[%s579] sm:$0x1f]
      %v904 = vld [vmem:[%s579 + $0x8] sm:$0x1f]
      %v907 = vunpack.c.l.b16 %v903
      %v908 = vunpack.c.h.b16 %v903
      %v909 = vunpack.c.l.b16 %v904
      %v910 = vunpack.c.h.b16 %v904
      %v911 = vpack.c.b16 %v907, %v907
      %v912 = vpack.c.b16 %v908, %v908
      %v913 = vpack.c.b16 %v909, %v909
      %v914 = vpack.c.b16 %v910, %v910
      %v916 = vshrl.u32 %v911, 16
      %v918 = vrot.slane %v916, 4
      %v919 = vshll.u32 %v911, 16
      %v921 = vrot.slane %v919, 5
      %v922 = vor.u32 %v918, %v921
      %v923 = vrot.slane %v922, 4
      %v925 = vshll.u32 %v912, 16
      %v927 = vrot.slane %v925, 5
      %v928 = vsel %vm633, %v923, %v927
      %v930 = vshrl.u32 %v913, 16
      %v932 = vrot.slane %v930, 4
      %v933 = vshll.u32 %v913, 16
      %v935 = vrot.slane %v933, 5
      %v936 = vor.u32 %v932, %v935
      %v937 = vrot.slane %v936, 4
      %v939 = vshll.u32 %v914, 16
      %v941 = vrot.slane %v939, 5
      %v942 = vsel %vm633, %v937, %v941
      %s943 = scalar_lea.vmem %s5, 16
      %v944 = vld [vmem:[%s943] sm:$0xf]
      %v945 = vunpack.c.l.b16 %v928
      %v946 = vunpack.c.l.b16 %v942
      %v947 = vpack.c.b16 %v946, %v945
      %v949 = vsel %vm667, %v947, 0
      %v952 = vsel %vm671, %v944, 0
      %954 = vmatprep.subr.bf16.mxu0 0
      %955 = vmatpush1.bf16.msra.mxu0 %v952
      %956 = vmatprep.subr.bf16.mxu0 0
      %957 = vmatpush1.bf16.msra.mxu0 0
      %958 = vmatprep.subr.bf16.mxu0 0
      %959 = vmatpush1.bf16.msra.mxu0 0
      %960 = vmatprep.subr.bf16.mxu0 0
      %961 = vmatpush1.bf16.msra.mxu0 0
      %962 = vmatprep.subr.bf16.mxu0 0
      %963 = vmatpush1.bf16.msra.mxu0 0
      %964 = vmatprep.subr.bf16.mxu0 0
      %965 = vmatpush1.bf16.msra.mxu0 0
      %966 = vmatprep.subr.bf16.mxu0 0
      %967 = vmatpush1.bf16.msra.mxu0 0
      %968 = vmatprep.subr.bf16.mxu0 0
      %969 = vmatpush1.bf16.msra.mxu0 0
      %970 = vmatprep.subr.bf16.mxu0 0
      %971 = vmatpush1.bf16.msra.mxu0 0
      %972 = vmatprep.subr.bf16.mxu0 0
      %973 = vmatpush1.bf16.msra.mxu0 0
      %974 = vmatprep.subr.bf16.mxu0 0
      %975 = vmatpush1.bf16.msra.mxu0 0
      %976 = vmatprep.subr.bf16.mxu0 0
      %977 = vmatpush1.bf16.msra.mxu0 0
      %978 = vmatprep.subr.bf16.mxu0 0
      %979 = vmatpush1.bf16.msra.mxu0 0
      %980 = vmatprep.subr.bf16.mxu0 0
      %981 = vmatpush1.bf16.msra.mxu0 0
      %982 = vmatprep.subr.bf16.mxu0 0
      %983 = vmatpush1.bf16.msra.mxu0 0
      %984 = vmatprep.subr.bf16.mxu0 0
      %985 = vmatpush1.bf16.msra.mxu0 0
      %986 = vmatprep.mubr.bf16.mxu0 0
      %987 = vmatmul.mubr.bf16.gmra.mrb[0].mxu0 %v949
      %v988 = vpop.f32.mrb[0].mxu0
      %v989 = vadd.f32 0.0, %v988
      %v990 = vpop.f32.mrb[0].mxu0
      %v991 = vpop.f32.mrb[0].mxu0
      %v992 = vadd.f32 0.0, %v991
      %v993 = vpop.f32.mrb[0].mxu0
      %994 = vdwg.mxu0
      %v995 = vadd.f32 %v901, %v989
      %v996 = vadd.f32 %v902, %v992
      %v997 = vld [vmem:[%s579] sm:$0x1e]
      %v998 = vld [vmem:[%s579 + $0x8] sm:$0x1e]
      %v1001 = vunpack.c.l.b16 %v997
      %v1002 = vunpack.c.h.b16 %v997
      %v1003 = vunpack.c.l.b16 %v998
      %v1004 = vunpack.c.h.b16 %v998
      %v1005 = vpack.c.b16 %v1001, %v1001
      %v1006 = vpack.c.b16 %v1002, %v1002
      %v1007 = vpack.c.b16 %v1003, %v1003
      %v1008 = vpack.c.b16 %v1004, %v1004
      %v1009 = vrot.slane %v1005, 5
      %v1010 = vrot.slane %v1009, 4
      %v1011 = vrot.slane %v1006, 5
      %v1012 = vsel %vm782, %v1010, %v1011
      %v1013 = vrot.slane %v1007, 5
      %v1014 = vrot.slane %v1013, 4
      %v1015 = vrot.slane %v1008, 5
      %v1016 = vsel %vm782, %v1014, %v1015
      %s1017 = scalar_lea.vmem %s5, 20
      %v1018 = vld [vmem:[%s1017] sm:$0xf]
      %v1019 = vunpack.c.l.b16 %v1012
      %v1020 = vunpack.c.l.b16 %v1016
      %v1021 = vpack.c.b16 %v1020, %v1019
      %v1023 = vsel %vm667, %v1021, 0
      %v1026 = vsel %vm671, %v1018, 0
      %1028 = vmatprep.subr.bf16.mxu0 0
      %1029 = vmatpush1.bf16.msra.mxu0 %v1026
      %1030 = vmatprep.subr.bf16.mxu0 0
      %1031 = vmatpush1.bf16.msra.mxu0 0
      %1032 = vmatprep.subr.bf16.mxu0 0
      %1033 = vmatpush1.bf16.msra.mxu0 0
      %1034 = vmatprep.subr.bf16.mxu0 0
      %1035 = vmatpush1.bf16.msra.mxu0 0
      %1036 = vmatprep.subr.bf16.mxu0 0
      %1037 = vmatpush1.bf16.msra.mxu0 0
      %1038 = vmatprep.subr.bf16.mxu0 0
      %1039 = vmatpush1.bf16.msra.mxu0 0
      %1040 = vmatprep.subr.bf16.mxu0 0
      %1041 = vmatpush1.bf16.msra.mxu0 0
      %1042 = vmatprep.subr.bf16.mxu0 0
      %1043 = vmatpush1.bf16.msra.mxu0 0
      %1044 = vmatprep.subr.bf16.mxu0 0
      %1045 = vmatpush1.bf16.msra.mxu0 0
      %1046 = vmatprep.subr.bf16.mxu0 0
      %1047 = vmatpush1.bf16.msra.mxu0 0
      %1048 = vmatprep.subr.bf16.mxu0 0
      %1049 = vmatpush1.bf16.msra.mxu0 0
      %1050 = vmatprep.subr.bf16.mxu0 0
      %1051 = vmatpush1.bf16.msra.mxu0 0
      %1052 = vmatprep.subr.bf16.mxu0 0
      %1053 = vmatpush1.bf16.msra.mxu0 0
      %1054 = vmatprep.subr.bf16.mxu0 0
      %1055 = vmatpush1.bf16.msra.mxu0 0
      %1056 = vmatprep.subr.bf16.mxu0 0
      %1057 = vmatpush1.bf16.msra.mxu0 0
      %1058 = vmatprep.subr.bf16.mxu0 0
      %1059 = vmatpush1.bf16.msra.mxu0 0
      %1060 = vmatprep.mubr.bf16.mxu0 0
      %1061 = vmatmul.mubr.bf16.gmra.mrb[0].mxu0 %v1023
      %v1062 = vpop.f32.mrb[0].mxu0
      %v1063 = vadd.f32 0.0, %v1062
      %v1064 = vpop.f32.mrb[0].mxu0
      %v1065 = vpop.f32.mrb[0].mxu0
      %v1066 = vadd.f32 0.0, %v1065
      %v1067 = vpop.f32.mrb[0].mxu0
      %1068 = vdwg.mxu0
      %v1069 = vadd.f32 %v995, %v1063
      %v1070 = vadd.f32 %v996, %v1066
      %s1071 = scalar_lea.vmem [#allocation2], 16
      %v1072 = vld [vmem:[%s1071] sm:$0xf]
      %v1073 = vld [vmem:[%s1071 + $0x8] sm:$0xf]
      %s1074 = scalar_lea.vmem %s5, 24
      %v1075 = vld [vmem:[%s1074] sm:$0xf]
      %v1078 = vunpack.c.l.b16 %v1072
      %v1079 = vunpack.c.l.b16 %v1073
      %v1080 = vpack.c.b16 %v1079, %v1078
      %v1082 = vsel %vm667, %v1080, 0
      %v1085 = vsel %vm671, %v1075, 0
      %1087 = vmatprep.subr.bf16.mxu0 0
      %1088 = vmatpush1.bf16.msra.mxu0 %v1085
      %1089 = vmatprep.subr.bf16.mxu0 0
      %1090 = vmatpush1.bf16.msra.mxu0 0
      %1091 = vmatprep.subr.bf16.mxu0 0
      %1092 = vmatpush1.bf16.msra.mxu0 0
      %1093 = vmatprep.subr.bf16.mxu0 0
      %1094 = vmatpush1.bf16.msra.mxu0 0
      %1095 = vmatprep.subr.bf16.mxu0 0
      %1096 = vmatpush1.bf16.msra.mxu0 0
      %1097 = vmatprep.subr.bf16.mxu0 0
      %1098 = vmatpush1.bf16.msra.mxu0 0
      %1099 = vmatprep.subr.bf16.mxu0 0
      %1100 = vmatpush1.bf16.msra.mxu0 0
      %1101 = vmatprep.subr.bf16.mxu0 0
      %1102 = vmatpush1.bf16.msra.mxu0 0
      %1103 = vmatprep.subr.bf16.mxu0 0
      %1104 = vmatpush1.bf16.msra.mxu0 0
      %1105 = vmatprep.subr.bf16.mxu0 0
      %1106 = vmatpush1.bf16.msra.mxu0 0
      %1107 = vmatprep.subr.bf16.mxu0 0
      %1108 = vmatpush1.bf16.msra.mxu0 0
      %1109 = vmatprep.subr.bf16.mxu0 0
      %1110 = vmatpush1.bf16.msra.mxu0 0
      %1111 = vmatprep.subr.bf16.mxu0 0
      %1112 = vmatpush1.bf16.msra.mxu0 0
      %1113 = vmatprep.subr.bf16.mxu0 0
      %1114 = vmatpush1.bf16.msra.mxu0 0
      %1115 = vmatprep.subr.bf16.mxu0 0
      %1116 = vmatpush1.bf16.msra.mxu0 0
      %1117 = vmatprep.subr.bf16.mxu0 0
      %1118 = vmatpush1.bf16.msra.mxu0 0
      %1119 = vmatprep.mubr.bf16.mxu0 0
      %1120 = vmatmul.mubr.bf16.gmra.mrb[0].mxu0 %v1082
      %v1121 = vpop.f32.mrb[0].mxu0
      %v1122 = vadd.f32 0.0, %v1121
      %v1123 = vpop.f32.mrb[0].mxu0
      %v1124 = vpop.f32.mrb[0].mxu0
      %v1125 = vadd.f32 0.0, %v1124
      %v1126 = vpop.f32.mrb[0].mxu0
      %1127 = vdwg.mxu0
      %v1128 = vadd.f32 %v1069, %v1122
      %v1129 = vadd.f32 %v1070, %v1125
      %v1130 = vld [vmem:[%s1071] sm:$0x1f]
      %v1131 = vld [vmem:[%s1071 + $0x8] sm:$0x1f]
      %v1134 = vunpack.c.l.b16 %v1130
      %v1135 = vunpack.c.h.b16 %v1130
      %v1136 = vunpack.c.l.b16 %v1131
      %v1137 = vunpack.c.h.b16 %v1131
      %v1138 = vpack.c.b16 %v1134, %v1134
      %v1139 = vpack.c.b16 %v1135, %v1135
      %v1140 = vpack.c.b16 %v1136, %v1136
      %v1141 = vpack.c.b16 %v1137, %v1137
      %v1143 = vshrl.u32 %v1138, 16
      %v1145 = vrot.slane %v1143, 4
      %v1146 = vshll.u32 %v1138, 16
      %v1148 = vrot.slane %v1146, 5
      %v1149 = vor.u32 %v1145, %v1148
      %v1150 = vrot.slane %v1149, 4
      %v1152 = vshll.u32 %v1139, 16
      %v1154 = vrot.slane %v1152, 5
      %v1155 = vsel %vm633, %v1150, %v1154
      %v1157 = vshrl.u32 %v1140, 16
      %v1159 = vrot.slane %v1157, 4
      %v1160 = vshll.u32 %v1140, 16
      %v1162 = vrot.slane %v1160, 5
      %v1163 = vor.u32 %v1159, %v1162
      %v1164 = vrot.slane %v1163, 4
      %v1166 = vshll.u32 %v1141, 16
      %v1168 = vrot.slane %v1166, 5
      %v1169 = vsel %vm633, %v1164, %v1168
      %s1170 = scalar_lea.vmem %s5, 28
      %v1171 = vld [vmem:[%s1170] sm:$0xf]
      %v1172 = vunpack.c.l.b16 %v1155
      %v1173 = vunpack.c.l.b16 %v1169
      %v1174 = vpack.c.b16 %v1173, %v1172
      %v1176 = vsel %vm667, %v1174, 0
      %v1179 = vsel %vm671, %v1171, 0
      %1181 = vmatprep.subr.bf16.mxu0 0
      %1182 = vmatpush1.bf16.msra.mxu0 %v1179
      %1183 = vmatprep.subr.bf16.mxu0 0
      %1184 = vmatpush1.bf16.msra.mxu0 0
      %1185 = vmatprep.subr.bf16.mxu0 0
      %1186 = vmatpush1.bf16.msra.mxu0 0
      %1187 = vmatprep.subr.bf16.mxu0 0
      %1188 = vmatpush1.bf16.msra.mxu0 0
      %1189 = vmatprep.subr.bf16.mxu0 0
      %1190 = vmatpush1.bf16.msra.mxu0 0
      %1191 = vmatprep.subr.bf16.mxu0 0
      %1192 = vmatpush1.bf16.msra.mxu0 0
      %1193 = vmatprep.subr.bf16.mxu0 0
      %1194 = vmatpush1.bf16.msra.mxu0 0
      %1195 = vmatprep.subr.bf16.mxu0 0
      %1196 = vmatpush1.bf16.msra.mxu0 0
      %1197 = vmatprep.subr.bf16.mxu0 0
      %1198 = vmatpush1.bf16.msra.mxu0 0
      %1199 = vmatprep.subr.bf16.mxu0 0
      %1200 = vmatpush1.bf16.msra.mxu0 0
      %1201 = vmatprep.subr.bf16.mxu0 0
      %1202 = vmatpush1.bf16.msra.mxu0 0
      %1203 = vmatprep.subr.bf16.mxu0 0
      %1204 = vmatpush1.bf16.msra.mxu0 0
      %1205 = vmatprep.subr.bf16.mxu0 0
      %1206 = vmatpush1.bf16.msra.mxu0 0
      %1207 = vmatprep.subr.bf16.mxu0 0
      %1208 = vmatpush1.bf16.msra.mxu0 0
      %1209 = vmatprep.subr.bf16.mxu0 0
      %1210 = vmatpush1.bf16.msra.mxu0 0
      %1211 = vmatprep.subr.bf16.mxu0 0
      %1212 = vmatpush1.bf16.msra.mxu0 0
      %1213 = vmatprep.mubr.bf16.mxu0 0
      %1214 = vmatmul.mubr.bf16.gmra.mrb[0].mxu0 %v1176
      %v1215 = vpop.f32.mrb[0].mxu0
      %v1216 = vadd.f32 0.0, %v1215
      %v1217 = vpop.f32.mrb[0].mxu0
      %v1218 = vpop.f32.mrb[0].mxu0
      %v1219 = vadd.f32 0.0, %v1218
      %v1220 = vpop.f32.mrb[0].mxu0
      %1221 = vdwg.mxu0
      %v1222 = vadd.f32 %v1128, %v1216
      %v1223 = vadd.f32 %v1129, %v1219
      %v1224 = vld [vmem:[%s1071] sm:$0x1e]
      %v1225 = vld [vmem:[%s1071 + $0x8] sm:$0x1e]
      %v1228 = vunpack.c.l.b16 %v1224
      %v1229 = vunpack.c.h.b16 %v1224
      %v1230 = vunpack.c.l.b16 %v1225
      %v1231 = vunpack.c.h.b16 %v1225
      %v1232 = vpack.c.b16 %v1228, %v1228
      %v1233 = vpack.c.b16 %v1229, %v1229
      %v1234 = vpack.c.b16 %v1230, %v1230
      %v1235 = vpack.c.b16 %v1231, %v1231
      %v1236 = vrot.slane %v1232, 5
      %v1237 = vrot.slane %v1236, 4
      %v1238 = vrot.slane %v1233, 5
      %v1239 = vsel %vm782, %v1237, %v1238
      %v1240 = vrot.slane %v1234, 5
      %v1241 = vrot.slane %v1240, 4
      %v1242 = vrot.slane %v1235, 5
      %v1243 = vsel %vm782, %v1241, %v1242
      %s1244 = scalar_lea.vmem %s5, 32
      %v1245 = vld [vmem:[%s1244] sm:$0xf]
      %v1246 = vunpack.c.l.b16 %v1239
      %v1247 = vunpack.c.l.b16 %v1243
      %v1248 = vpack.c.b16 %v1247, %v1246
      %v1250 = vsel %vm667, %v1248, 0
      %v1253 = vsel %vm671, %v1245, 0
      %1255 = vmatprep.subr.bf16.mxu0 0
      %1256 = vmatpush1.bf16.msra.mxu0 %v1253
      %1257 = vmatprep.subr.bf16.mxu0 0
      %1258 = vmatpush1.bf16.msra.mxu0 0
      %1259 = vmatprep.subr.bf16.mxu0 0
      %1260 = vmatpush1.bf16.msra.mxu0 0
      %1261 = vmatprep.subr.bf16.mxu0 0
      %1262 = vmatpush1.bf16.msra.mxu0 0
      %1263 = vmatprep.subr.bf16.mxu0 0
      %1264 = vmatpush1.bf16.msra.mxu0 0
      %1265 = vmatprep.subr.bf16.mxu0 0
      %1266 = vmatpush1.bf16.msra.mxu0 0
      %1267 = vmatprep.subr.bf16.mxu0 0
      %1268 = vmatpush1.bf16.msra.mxu0 0
      %1269 = vmatprep.subr.bf16.mxu0 0
      %1270 = vmatpush1.bf16.msra.mxu0 0
      %1271 = vmatprep.subr.bf16.mxu0 0
      %1272 = vmatpush1.bf16.msra.mxu0 0
      %1273 = vmatprep.subr.bf16.mxu0 0
      %1274 = vmatpush1.bf16.msra.mxu0 0
      %1275 = vmatprep.subr.bf16.mxu0 0
      %1276 = vmatpush1.bf16.msra.mxu0 0
      %1277 = vmatprep.subr.bf16.mxu0 0
      %1278 = vmatpush1.bf16.msra.mxu0 0
      %1279 = vmatprep.subr.bf16.mxu0 0
      %1280 = vmatpush1.bf16.msra.mxu0 0
      %1281 = vmatprep.subr.bf16.mxu0 0
      %1282 = vmatpush1.bf16.msra.mxu0 0
      %1283 = vmatprep.subr.bf16.mxu0 0
      %1284 = vmatpush1.bf16.msra.mxu0 0
      %1285 = vmatprep.subr.bf16.mxu0 0
      %1286 = vmatpush1.bf16.msra.mxu0 0
      %1287 = vmatprep.mubr.bf16.mxu0 0
      %1288 = vmatmul.mubr.bf16.gmra.mrb[0].mxu0 %v1250
      %v1289 = vpop.f32.mrb[0].mxu0
      %v1290 = vadd.f32 0.0, %v1289
      %v1291 = vpop.f32.mrb[0].mxu0
      %v1292 = vpop.f32.mrb[0].mxu0
      %v1293 = vadd.f32 0.0, %v1292
      %v1294 = vpop.f32.mrb[0].mxu0
      %1295 = vdwg.mxu0
      %v1296 = vadd.f32 %v1222, %v1290
      %v1297 = vadd.f32 %v1223, %v1293
      %v1298 = vld [vmem:[%s6] sm:$0x1]
      %v1300 = vlaneseq
      %v1301 = vshrl.u32 %v1300, 7
      %v1302 = vsub.s32 0, %v1301
      %v1303 = vrot.slane %v1298, %v1302
      %v1305 = vadd.f32 %v1296, %v1303
      %v1306 = vadd.f32 %v1297, %v1303
      %v1307 = vpack.c.bf16 %v1305, %v1305
      %v1308 = vpack.c.bf16 %v1306, %v1306
      %vm1309 = vcmask 60416
      %1310 = vst.msk [vmem:[%s474] sm:$0xf] %vm1309, %v1307
      %1311 = vst.msk [vmem:[%s474 + $0x4] sm:$0xf] %vm1309, %v1308
      %v1312 = vsel %vm667, %v1305, 0.0
      %v1313 = vsel %vm667, %v1306, 0.0
      %v1314 = vadd.f32 %v1312, %v1313
      %v1315 = vrot.slane %v1314, 4
      %v1316 = vadd.f32 %v1314, %v1315
      %v1317 = vrot.slane %v1316, 2
      %v1318 = vadd.f32 %v1316, %v1317
      %v1319 = vrot.slane %v1318, 1
      %v1320 = vadd.f32 %v1318, %v1319
      %vm1321 = vcmask 57344
      %1322 = vst.msk [vmem:[%s483] sm:$0x1] %vm1321, %v1320
      %v1323 = vmul.f32 %v1305, %v1305
      %v1324 = vmul.f32 %v1306, %v1306
      %v1325 = vsel %vm667, %v1323, 0.0
      %v1326 = vsel %vm667, %v1324, 0.0
      %v1327 = vadd.f32 %v1325, %v1326
      %v1328 = vrot.slane %v1327, 4
      %v1329 = vadd.f32 %v1327, %v1328
      %v1330 = vrot.slane %v1329, 2
      %v1331 = vadd.f32 %v1329, %v1330
      %v1332 = vrot.slane %v1331, 1
      %v1333 = vadd.f32 %v1331, %v1332
      %1334 = vst.msk [vmem:[%s483 + $0x1] sm:$0x1] %vm1321, %v1333
      %s1335 = smul.u32 2, %s25
      %p1336 = scmp.lt.s32.totalorder %s24, 1
      %s1337 = scalar_select %p1336, %s24, 1
      %p1338 = scmp.lt.s32.totalorder %s1335, 7
      %s1339 = scalar_select %p1338, %s1335, 7
      %s1340 = smul.addr %s1337, 8
      %s1341 = sadd.s32 %s1339, %s1340
      %s1342 = smul.addr %s1341, 4
      %s1343 = scalar_lea.vmem %s7, %s1342
      %p1344 = scmp.lt.s32.totalorder %s24, 1
      %s1345 = scalar_select %p1344, %s24, 1
      %p1346 = scmp.lt.s32.totalorder %s25, 3
      %s1347 = scalar_select %p1346, %s25, 3
      %s1348 = smul.addr %s1345, 4
      %s1349 = sadd.s32 %s1347, %s1348
      %s1350 = smul.addr %s1349, 2
      %s1351 = scalar_lea.vmem %s8, %s1350
      // Predicated region
      $region57: #{down_forward.3} parent=47 // pred_check
        %p1352 = pneg %p236
      $region58: #{down_forward.3} parent=47 // pred_check_branch
        %1354 = sbr.rel (%p1352) target = $region60
      $region59: #{down_forward.3} parent=47 // pred_region
        %s1355 = smul.u32 2, %s25
      $region60: #{down_forward.3} parent=47 // pred_fallthru
        _
      // Predicated region
      $region61: #{down_forward.3} parent=47 // pred_check
        %p1356 = pneg %p264
      $region62: #{down_forward.3} parent=47 // pred_check_branch
        %1358 = sbr.rel (%p1356) target = $region64
      $region63: #{down_forward.3} parent=47 // pred_region
        _
      $region64: #{down_forward.3} parent=47 // pred_fallthru
        _
    $region48: #{down_forward.3} parent=5 // pred_fallthru
      _
    %p1359 = scmp.le.s32.totalorder 2, %s15
    // Predicated region
    $region65: #{down_forward.3} parent=5 // pred_check
      %p1360 = pneg %p1359
    $region66: #{down_forward.3} parent=5 // pred_check_branch
      %1362 = sbr.rel (%p1360) target = $region68
    $region67: #{down_forward.3} parent=5 // pred_region
      %s1363 = ssub.s32 %s15, 2
      // Predicated region
      $region69: #{down_forward.3} parent=67 // pred_check
        %p1364 = pneg %p242
      $region70: #{down_forward.3} parent=67 // pred_check_branch
        %1366 = sbr.rel (%p1364) target = $region72
      $region71: #{down_forward.3} parent=67 // pred_region
        %s1367 = smul.u32 2, %s27
        %p1368 = scmp.lt.s32.totalorder %s26, 1
        %s1369 = scalar_select %p1368, %s26, 1
        %p1370 = scmp.lt.s32.totalorder %s1367, 7
        %s1371 = scalar_select %p1370, %s1367, 7
        %s1372 = smul.addr %s1369, 8
        %s1373 = sadd.s32 %s1371, %s1372
        %s1374 = smul.addr %s1373, 4
        %s1375 = scalar_lea.vmem %s7, %s1374
      $region72: #{down_forward.3} parent=67 // pred_fallthru
        _
      // Predicated region
      $region73: #{down_forward.3} parent=67 // pred_check
        %p1376 = pneg %p270
      $region74: #{down_forward.3} parent=67 // pred_check_branch
        %1378 = sbr.rel (%p1376) target = $region76
      $region75: #{down_forward.3} parent=67 // pred_region
        %p1379 = scmp.lt.s32.totalorder %s26, 1
        %s1380 = scalar_select %p1379, %s26, 1
        %p1381 = scmp.lt.s32.totalorder %s27, 3
        %s1382 = scalar_select %p1381, %s27, 3
        %s1383 = smul.addr %s1380, 4
        %s1384 = sadd.s32 %s1382, %s1383
        %s1385 = smul.addr %s1384, 2
        %s1386 = scalar_lea.vmem %s8, %s1385
      $region76: #{down_forward.3} parent=67 // pred_fallthru
        _
    $region68: #{down_forward.3} parent=5 // pred_fallthru
      _
  $region6: #{down_forward.3} parent=0 // loop_footer
    %s19 = sadd.s32 1, %s15
  $region7: #{down_forward.3} parent=0 // loop_footer_branch
    %14 = sbr.rel target = $region3
  $region8: #{down_forward.3} parent=0 // loop_exit
    _

</llo_original>
